<compile_context>
chip_gen: v7x
topology: tpu7x:2x2x1
jax: 0.10.0
libtpu: 0.0.40
codegen_flags: <defaults>
</compile_context>

<pallas_src>
import jax
import jax.numpy as jnp
from jax.experimental import pallas as pl
from jax.experimental.pallas import tpu as pltpu

# ----------------------------- configuration ------------------------------ #
B = 2
C_IN = 3
IMG_H = 64
IMG_W = 64
PATCH = 16
G = IMG_H // PATCH              # 4  : patch-grid side of the square dual image
GW = (IMG_W // 2) // PATCH      # 2  : patch-grid width of the downsampled image
NN = G * G                      # 16 : patches in the dual image (orig 576)
S = NN + 1                      # 17 : tokens incl. cls           (orig 577)
D = 128                         # embed dim                       (orig 768)
HEADS = 4
HD = D // HEADS                 # 32
DEPTH = 2                       # transformer blocks              (orig 12)
DMLP = 2 * D                    # MLP hidden                      (orig 4*D)
LIN = 64                        # ClassBlock linear               (orig 512)
NCLS = 16                       # class_num                       (orig 751)
PP = PATCH * PATCH              # 256
PATCH_DIM = C_IN * PP           # 768

LN_EPS = 1e-6
BN_EPS = 1e-5
SCALE = HD ** -0.5


# ---------------- single fused kernel: mask + ViT + ClassBlock ------------- #
def _vit_kernel(xds_ref, dwf_ref, thr_ref, wpe_ref, add_ref,
                ln1g_ref, ln1b_ref, wqkv_ref, bqkv_ref, wproj_ref, bproj_ref,
                ln2g_ref, ln2b_ref, wfc1_ref, bfc1_ref, wfc2_ref, bfc2_ref,
                lnfg_ref, lnfb_ref,
                cw1_ref, cb1_ref, csc_ref, csh_ref, cw2_ref, cb2_ref,
                out_ref):

    def ln(v, g, b):
        mu = jnp.mean(v, axis=-1, keepdims=True)
        var = jnp.mean(jnp.square(v - mu), axis=-1, keepdims=True)
        return (v - mu) * jax.lax.rsqrt(var + LN_EPS) * g + b

    # ---- fused preprocessing (parsing mask + dual image + patch embed) ----
    # xds_ref rows are already ordered in dual-token order (each downsampled
    # patch appears twice); rows with (n % 4) >= 2 belong to the masked copy.
    xp = xds_ref[0]                                             # (NN, PATCH_DIM) f32
    prod = xp * dwf_ref[...]                                    # per-channel (w1-w0)
    diff = prod[:, :PP] + prod[:, PP:2 * PP] + prod[:, 2 * PP:]  # (NN, PP) per-pixel
    row_id = jax.lax.broadcasted_iota(jnp.int32, (NN, PP), 0)
    masked_row = (row_id % (2 * GW)) >= GW                      # right half of dual img
    # argmax over 2 classes == (x . (w1-w0) > b0-b1); zero pixels where class 0
    keep = jnp.where(jnp.logical_and(masked_row, diff <= thr_ref[...]), 0.0, 1.0)
    xsel = xp * jnp.concatenate([keep, keep, keep], axis=1)     # (NN, PATCH_DIM)

    emb = jnp.dot(xsel.astype(jnp.bfloat16), wpe_ref[...],
                  preferred_element_type=jnp.float32)           # (NN, D)
    # row 0 of add_ref is cls + pos[0]; rows 1.. are patch-embed bias + pos[1..]
    x = jnp.concatenate([jnp.zeros((1, D), jnp.float32), emb], axis=0) + add_ref[...]

    # ---- transformer blocks (stacked weights, bounded live ranges) ---------
    def layer(l, x):
        h = ln(x, ln1g_ref[l], ln1b_ref[l])
        # fused lane-dense QKV GEMM (scale already folded into Q slab)
        qkv = jnp.dot(h.astype(jnp.bfloat16), wqkv_ref[l],
                      preferred_element_type=jnp.float32) + bqkv_ref[l]   # (S, 3D)
        heads = []
        for hh in range(HEADS):                                 # static, 4 iters
            q = qkv[:, hh * HD:(hh + 1) * HD]
            k = qkv[:, D + hh * HD:D + (hh + 1) * HD]
            v = qkv[:, 2 * D + hh * HD:2 * D + (hh + 1) * HD]
            s = jax.lax.dot_general(q.astype(jnp.bfloat16), k.astype(jnp.bfloat16),
                                    (((1,), (1,)), ((), ())),
                                    preferred_element_type=jnp.float32)   # (S, S)
            s = s - jnp.max(s, axis=-1, keepdims=True)
            e = jnp.exp(s)
            p = e * pl.reciprocal(jnp.sum(e, axis=-1, keepdims=True), approx=True)
            heads.append(jnp.dot(p.astype(jnp.bfloat16), v.astype(jnp.bfloat16),
                                 preferred_element_type=jnp.float32))     # (S, HD)
        # lane-concat heads -> one K=128 output-projection GEMM
        attn = jnp.concatenate(heads, axis=1)                             # (S, D)
        x = x + jnp.dot(attn.astype(jnp.bfloat16), wproj_ref[l],
                        preferred_element_type=jnp.float32) + bproj_ref[l]

        h2 = ln(x, ln2g_ref[l], ln2b_ref[l])
        m = jnp.dot(h2.astype(jnp.bfloat16), wfc1_ref[l],
                    preferred_element_type=jnp.float32) + bfc1_ref[l]
        # TODO(synk): timm ViT uses exact (erf) GELU; tanh approximation here.
        m = jax.nn.gelu(m, approximate=True)
        x = x + jnp.dot(m.astype(jnp.bfloat16), wfc2_ref[l],
                        preferred_element_type=jnp.float32) + bfc2_ref[l]
        return x

    x = jax.lax.fori_loop(0, DEPTH, layer, x, unroll=True)

    # ---- final norm, token pooling, ClassBlock -----------------------------
    x = ln(x, lnfg_ref[...], lnfb_ref[...])
    pooled = jnp.mean(x, axis=0, keepdims=True)     # AdaptiveAvgPool2d((1, D)) -> (1, D)

    f = jnp.dot(pooled.astype(jnp.bfloat16), cw1_ref[...],
                preferred_element_type=jnp.float32) + cb1_ref[...]
    f = f * csc_ref[...] + csh_ref[...]             # BatchNorm1d (eval, folded)
    logit = jnp.dot(f.astype(jnp.bfloat16), cw2_ref[...],
                    preferred_element_type=jnp.float32) + cb2_ref[...]

    # pack feature (lanes 0..LIN-1) and logits (lanes LIN..LIN+NCLS-1) into one
    # lane-dense (1, 128) slab -> single unmasked store.
    pad = jnp.zeros((1, D - LIN - NCLS), jnp.float32)
    out_ref[...] = jnp.concatenate([f, logit, pad], axis=1)[None]


def _const_spec(arr):
    nd = arr.ndim
    return pl.BlockSpec(arr.shape, lambda b, _nd=nd: (0,) * _nd)


def vit_forward_packed(xds_ext, consts):
    in_specs = [pl.BlockSpec((1, NN, PATCH_DIM), lambda b: (b, 0, 0))]
    in_specs += [_const_spec(c) for c in consts]
    packed = pl.pallas_call(
        _vit_kernel,
        grid=(B,),
        in_specs=in_specs,
        out_specs=pl.BlockSpec((1, 1, D), lambda b: (b, 0, 0)),
        out_shape=jax.ShapeDtypeStruct((B, 1, D), jnp.float32),
        compiler_params=pltpu.CompilerParams(
            dimension_semantics=("parallel",)),   # v7x: one batch elem per TC
    )(xds_ext, *consts)
    return packed


# ------------------------------- JAX glue ---------------------------------- #
def pivit_weak_forward(x_img, params):
    vp, pp, cb = params["vit"], params["parsing"], params["cb"]

    # ---- 1. bilinear width/2 downsample (exact adjacent-pair average) -----
    x_ds = x_img.reshape(B, C_IN, IMG_H, IMG_W // 2, 2).mean(axis=-1)    # (B,3,64,32)

    # ---- patch-row layout of the downsampled image, duplicated into the
    #      dual-token order (the mask/dual-image assembly happens in-kernel) -
    xp = x_ds.reshape(B, C_IN, G, PATCH, GW, PATCH)
    xp = jnp.transpose(xp, (0, 2, 4, 1, 3, 5)).reshape(B, G * GW, PATCH_DIM)
    tok_src = jnp.array([gy * GW + (gx % GW)
                         for gy in range(G) for gx in range(2 * GW)], jnp.int32)
    xds_ext = xp[:, tok_src, :]                                          # (B, NN, 768)

    # ---- parsing stand-in: argmax(2-class 1x1 linear) == dot(w1-w0) > b0-b1
    dwf = jnp.repeat(pp["w"][1] - pp["w"][0], PP).reshape(1, PATCH_DIM)
    thr = (pp["b"][0] - pp["b"][1]).reshape(1, 1)

    # ---- ViT constants -----------------------------------------------------
    # row 0: cls + pos[0]; rows 1..: patch-embed bias + pos[1..]
    add_mat = vp["pos"][0] + jnp.concatenate(
        [vp["cls"].reshape(1, D),
         jnp.broadcast_to(vp["b_pe"].reshape(1, D), (NN, D))], axis=0)

    blocks = vp["blocks"]
    stk = lambda name: jnp.stack([blk[name] for blk in blocks])
    vec = lambda name: stk(name).reshape(DEPTH, 1, -1)

    # fold 1/sqrt(HD) into the Q columns of the fused QKV slab (cols 0..D-1)
    scale_cols = jnp.concatenate([jnp.full((D,), SCALE, jnp.float32),
                                  jnp.ones((2 * D,), jnp.float32)])
    wqkv = (stk("w_qkv") * scale_cols).astype(jnp.bfloat16)              # (DEPTH,D,3D)
    bqkv = (stk("b_qkv") * scale_cols).reshape(DEPTH, 1, 3 * D)

    bn_scale = cb["bn_g"] / jnp.sqrt(cb["bn_rv"] + BN_EPS)
    bn_shift = cb["bn_b"] - cb["bn_rm"] * bn_scale

    consts = (
        dwf, thr,
        vp["w_pe"].astype(jnp.bfloat16), add_mat,
        vec("ln1_g"), vec("ln1_b"),
        wqkv, bqkv,
        stk("w_proj").astype(jnp.bfloat16), vec("b_proj"),
        vec("ln2_g"), vec("ln2_b"),
        stk("w_fc1").astype(jnp.bfloat16), vec("b_fc1"),
        stk("w_fc2").astype(jnp.bfloat16), vec("b_fc2"),
        vp["ln_f_g"].reshape(1, D), vp["ln_f_b"].reshape(1, D),
        cb["w1"].astype(jnp.bfloat16), cb["b1"].reshape(1, LIN),
        bn_scale.reshape(1, LIN), bn_shift.reshape(1, LIN),
        cb["w2"].astype(jnp.bfloat16), cb["b2"].reshape(1, NCLS),
    )

    packed = vit_forward_packed(xds_ext, consts)                         # (B, 1, 128)
    feat = packed[:, 0, :LIN]
    logits = packed[:, 0, LIN:LIN + NCLS]
    # ClassBlock(test=False) -> [logits, feature]
    return [logits, feat]


# ------------------------------ parameters --------------------------------- #
def init_params(key):
    ks = iter(jax.random.split(key, 64))

    def n(shape, std):
        return jax.random.normal(next(ks), shape, jnp.float32) * std

    vit = {
        "w_pe": n((PATCH_DIM, D), 0.02),
        "b_pe": jnp.zeros((D,), jnp.float32),
        "cls": n((1, 1, D), 0.02),
        "pos": n((1, S, D), 0.02),
        "blocks": [],
        "ln_f_g": jnp.ones((D,), jnp.float32),
        "ln_f_b": jnp.zeros((D,), jnp.float32),
    }
    for _ in range(DEPTH):
        vit["blocks"].append({
            "ln1_g": jnp.ones((D,), jnp.float32), "ln1_b": jnp.zeros((D,), jnp.float32),
            "w_qkv": n((D, 3 * D), 0.02), "b_qkv": jnp.zeros((3 * D,), jnp.float32),
            "w_proj": n((D, D), 0.02), "b_proj": jnp.zeros((D,), jnp.float32),
            "ln2_g": jnp.ones((D,), jnp.float32), "ln2_b": jnp.zeros((D,), jnp.float32),
            "w_fc1": n((D, DMLP), 0.02), "b_fc1": jnp.zeros((DMLP,), jnp.float32),
            "w_fc2": n((DMLP, D), 0.02), "b_fc2": jnp.zeros((D,), jnp.float32),
        })

    # stand-in for the pretrained PSPNet binary parsing model (2 classes)
    parsing = {"w": n((2, C_IN), 0.5), "b": n((2,), 0.1)}

    cb = {
        "w1": n((D, LIN), (2.0 / LIN) ** 0.5),      # kaiming fan_out
        "b1": jnp.zeros((LIN,), jnp.float32),
        "bn_g": 1.0 + n((LIN,), 0.02),
        "bn_b": jnp.zeros((LIN,), jnp.float32),
        "bn_rm": jnp.zeros((LIN,), jnp.float32),
        "bn_rv": jnp.ones((LIN,), jnp.float32),
        "w2": n((LIN, NCLS), 0.001),
        "b2": jnp.zeros((NCLS,), jnp.float32),
    }
    return {"vit": vit, "parsing": parsing, "cb": cb}


# --------------------------------- main ------------------------------------ #
if __name__ == "__main__":
    key = jax.random.PRNGKey(0)
    pkey, xkey = jax.random.split(key)
    params = init_params(pkey)
    x = jax.random.normal(xkey, (B, C_IN, IMG_H, IMG_W), jnp.float32)

    fwd = jax.jit(pivit_weak_forward)
    logits, feat = fwd(x, params)
    jax.block_until_ready((logits, feat))
    assert logits.shape == (B, NCLS) and feat.shape == (B, LIN)
    print("KERNEL_OK")
</pallas_src>

<mosaic_0001>
module attributes {stable_mosaic.version = 11 : i64} {
  func.func @_vit_kernel(%arg0: i32, %arg1: memref<1x16x768xf32, #tpu.memory_space<vmem>>, %arg2: memref<1x768xf32, #tpu.memory_space<vmem>>, %arg3: memref<1x1xf32, #tpu.memory_space<vmem>>, %arg4: memref<768x128xbf16, #tpu.memory_space<vmem>>, %arg5: memref<17x128xf32, #tpu.memory_space<vmem>>, %arg6: memref<2x1x128xf32, #tpu.memory_space<vmem>>, %arg7: memref<2x1x128xf32, #tpu.memory_space<vmem>>, %arg8: memref<2x128x384xbf16, #tpu.memory_space<vmem>>, %arg9: memref<2x1x384xf32, #tpu.memory_space<vmem>>, %arg10: memref<2x128x128xbf16, #tpu.memory_space<vmem>>, %arg11: memref<2x1x128xf32, #tpu.memory_space<vmem>>, %arg12: memref<2x1x128xf32, #tpu.memory_space<vmem>>, %arg13: memref<2x1x128xf32, #tpu.memory_space<vmem>>, %arg14: memref<2x128x256xbf16, #tpu.memory_space<vmem>>, %arg15: memref<2x1x256xf32, #tpu.memory_space<vmem>>, %arg16: memref<2x256x128xbf16, #tpu.memory_space<vmem>>, %arg17: memref<2x1x128xf32, #tpu.memory_space<vmem>>, %arg18: memref<1x128xf32, #tpu.memory_space<vmem>>, %arg19: memref<1x128xf32, #tpu.memory_space<vmem>>, %arg20: memref<128x64xbf16, #tpu.memory_space<vmem>>, %arg21: memref<1x64xf32, #tpu.memory_space<vmem>>, %arg22: memref<1x64xf32, #tpu.memory_space<vmem>>, %arg23: memref<1x64xf32, #tpu.memory_space<vmem>>, %arg24: memref<64x16xbf16, #tpu.memory_space<vmem>>, %arg25: memref<1x16xf32, #tpu.memory_space<vmem>>, %arg26: memref<1x1x128xf32, #tpu.memory_space<vmem>>) attributes {dimension_semantics = [#tpu.dimension_semantics<parallel>], iteration_bounds = array<i64: 2>, scalar_prefetch = 0 : i64, scratch_operands = 0 : i64, tpu.core_type = #tpu.core_type<tc>, window_params = [{transform_indices = @transform_0, window_bounds = array<i64: 1, 16, 768>}, {pipeline_mode = #tpu.pipeline_mode<synchronous>, transform_indices = @transform_1, window_bounds = array<i64: 1, 768>}, {pipeline_mode = #tpu.pipeline_mode<synchronous>, transform_indices = @transform_2, window_bounds = array<i64: 1, 1>}, {pipeline_mode = #tpu.pipeline_mode<synchronous>, transform_indices = @transform_3, window_bounds = array<i64: 768, 128>}, {pipeline_mode = #tpu.pipeline_mode<synchronous>, transform_indices = @transform_4, window_bounds = array<i64: 17, 128>}, {pipeline_mode = #tpu.pipeline_mode<synchronous>, transform_indices = @transform_5, window_bounds = array<i64: 2, 1, 128>}, {pipeline_mode = #tpu.pipeline_mode<synchronous>, transform_indices = @transform_6, window_bounds = array<i64: 2, 1, 128>}, {pipeline_mode = #tpu.pipeline_mode<synchronous>, transform_indices = @transform_7, window_bounds = array<i64: 2, 128, 384>}, {pipeline_mode = #tpu.pipeline_mode<synchronous>, transform_indices = @transform_8, window_bounds = array<i64: 2, 1, 384>}, {pipeline_mode = #tpu.pipeline_mode<synchronous>, transform_indices = @transform_9, window_bounds = array<i64: 2, 128, 128>}, {pipeline_mode = #tpu.pipeline_mode<synchronous>, transform_indices = @transform_10, window_bounds = array<i64: 2, 1, 128>}, {pipeline_mode = #tpu.pipeline_mode<synchronous>, transform_indices = @transform_11, window_bounds = array<i64: 2, 1, 128>}, {pipeline_mode = #tpu.pipeline_mode<synchronous>, transform_indices = @transform_12, window_bounds = array<i64: 2, 1, 128>}, {pipeline_mode = #tpu.pipeline_mode<synchronous>, transform_indices = @transform_13, window_bounds = array<i64: 2, 128, 256>}, {pipeline_mode = #tpu.pipeline_mode<synchronous>, transform_indices = @transform_14, window_bounds = array<i64: 2, 1, 256>}, {pipeline_mode = #tpu.pipeline_mode<synchronous>, transform_indices = @transform_15, window_bounds = array<i64: 2, 256, 128>}, {pipeline_mode = #tpu.pipeline_mode<synchronous>, transform_indices = @transform_16, window_bounds = array<i64: 2, 1, 128>}, {pipeline_mode = #tpu.pipeline_mode<synchronous>, transform_indices = @transform_17, window_bounds = array<i64: 1, 128>}, {pipeline_mode = #tpu.pipeline_mode<synchronous>, transform_indices = @transform_18, window_bounds = array<i64: 1, 128>}, {pipeline_mode = #tpu.pipeline_mode<synchronous>, transform_indices = @transform_19, window_bounds = array<i64: 128, 64>}, {pipeline_mode = #tpu.pipeline_mode<synchronous>, transform_indices = @transform_20, window_bounds = array<i64: 1, 64>}, {pipeline_mode = #tpu.pipeline_mode<synchronous>, transform_indices = @transform_21, window_bounds = array<i64: 1, 64>}, {pipeline_mode = #tpu.pipeline_mode<synchronous>, transform_indices = @transform_22, window_bounds = array<i64: 1, 64>}, {pipeline_mode = #tpu.pipeline_mode<synchronous>, transform_indices = @transform_23, window_bounds = array<i64: 64, 16>}, {pipeline_mode = #tpu.pipeline_mode<synchronous>, transform_indices = @transform_24, window_bounds = array<i64: 1, 16>}, {transform_indices = @transform_25, window_bounds = array<i64: 1, 1, 128>}]} {
    %c0 = arith.constant 0 : index
    %c0_0 = arith.constant 0 : index
    %c0_1 = arith.constant 0 : index
    %0 = vector.load %arg1[%c0, %c0_0, %c0_1] : memref<1x16x768xf32, #tpu.memory_space<vmem>>, vector<1x16x768xf32>
    %1 = vector.shape_cast %0 : vector<1x16x768xf32> to vector<16x768xf32>
    %c0_2 = arith.constant 0 : index
    %c0_3 = arith.constant 0 : index
    %2 = vector.load %arg2[%c0_2, %c0_3] : memref<1x768xf32, #tpu.memory_space<vmem>>, vector<1x768xf32>
    %3 = vector.broadcast %2 : vector<1x768xf32> to vector<16x768xf32>
    %4 = arith.mulf %1, %3 : vector<16x768xf32>
    %5 = vector.extract_strided_slice %4 {offsets = [0, 0], sizes = [16, 256], strides = [1, 1]} : vector<16x768xf32> to vector<16x256xf32>
    %6 = vector.extract_strided_slice %4 {offsets = [0, 256], sizes = [16, 256], strides = [1, 1]} : vector<16x768xf32> to vector<16x256xf32>
    %7 = arith.addf %5, %6 : vector<16x256xf32>
    %8 = vector.extract_strided_slice %4 {offsets = [0, 512], sizes = [16, 256], strides = [1, 1]} : vector<16x768xf32> to vector<16x256xf32>
    %9 = arith.addf %7, %8 : vector<16x256xf32>
    %10 = tpu.iota {dimensions = array<i32: 0>} : vector<16x256xi32>
    %c4_i32 = arith.constant 4 : i32
    %c0_i32 = arith.constant 0 : i32
    %11 = arith.cmpi eq, %c4_i32, %c0_i32 : i32
    %c1_i32 = arith.constant 1 : i32
    %12 = arith.select %11, %c1_i32, %c4_i32 : i32
    %13 = vector.broadcast %12 : i32 to vector<16x256xi32>
    %14 = arith.remsi %10, %13 : vector<16x256xi32>
    %c0_i32_4 = arith.constant 0 : i32
    %15 = vector.broadcast %c0_i32_4 : i32 to vector<16x256xi32>
    %16 = arith.cmpi ne, %14, %15 : vector<16x256xi32>
    %c0_i32_5 = arith.constant 0 : i32
    %17 = vector.broadcast %c0_i32_5 : i32 to vector<16x256xi32>
    %18 = arith.cmpi slt, %14, %17 : vector<16x256xi32>
    %c0_i32_6 = arith.constant 0 : i32
    %19 = arith.cmpi slt, %12, %c0_i32_6 : i32
    %20 = vector.broadcast %19 : i1 to vector<16x256xi1>
    %21 = vector.broadcast %20 : vector<16x256xi1> to vector<16x256xi1>
    %22 = arith.xori %18, %21 : vector<16x256xi1>
    %23 = arith.andi %22, %16 : vector<16x256xi1>
    %24 = vector.broadcast %12 : i32 to vector<16x256xi32>
    %25 = arith.addi %14, %24 : vector<16x256xi32>
    %26 = arith.select %23, %25, %14 : vector<16x256xi1>, vector<16x256xi32>
    %c2_i32 = arith.constant 2 : i32
    %27 = vector.broadcast %c2_i32 : i32 to vector<16x256xi32>
    %28 = arith.cmpi sge, %26, %27 : vector<16x256xi32>
    %c0_7 = arith.constant 0 : index
    %c0_8 = arith.constant 0 : index
    %29 = vector.load %arg3[%c0_7, %c0_8] : memref<1x1xf32, #tpu.memory_space<vmem>>, vector<1x1xf32>
    %30 = vector.broadcast %29 : vector<1x1xf32> to vector<16x256xf32>
    %31 = arith.cmpf ole, %9, %30 : vector<16x256xf32>
    %32 = arith.andi %28, %31 : vector<16x256xi1>
    %cst = arith.constant 0.000000e+00 : f32
    %cst_9 = arith.constant 1.000000e+00 : f32
    %33 = vector.broadcast %cst : f32 to vector<16x256xf32>
    %34 = vector.broadcast %cst_9 : f32 to vector<16x256xf32>
    %35 = arith.select %32, %33, %34 : vector<16x256xi1>, vector<16x256xf32>
    %36 = tpu.concatenate %35, %35, %35 in 1 : vector<16x256xf32>, vector<16x256xf32>, vector<16x256xf32> -> vector<16x768xf32>
    %37 = arith.mulf %1, %36 : vector<16x768xf32>
    %38 = arith.truncf %37 : vector<16x768xf32> to vector<16x768xbf16>
    %c0_10 = arith.constant 0 : index
    %c0_11 = arith.constant 0 : index
    %39 = vector.load %arg4[%c0_10, %c0_11] : memref<768x128xbf16, #tpu.memory_space<vmem>>, vector<768x128xbf16>
    %cst_12 = arith.constant dense<0.000000e+00> : vector<16x128xf32>
    %40 = tpu.matmul %38, %39, %cst_12 {dimension_numbers = #tpu.dot_dimension_numbers<[1], [0], [0], [1], [0, 0, 1, 1], [], []>} : vector<16x768xbf16>, vector<768x128xbf16>, vector<16x128xf32> -> vector<16x128xf32>
    %cst_13 = arith.constant 0.000000e+00 : f32
    %41 = vector.broadcast %cst_13 : f32 to vector<1x128xf32>
    %42 = tpu.concatenate %41, %40 in 0 : vector<1x128xf32>, vector<16x128xf32> -> vector<17x128xf32>
    %c0_14 = arith.constant 0 : index
    %c0_15 = arith.constant 0 : index
    %43 = vector.load %arg5[%c0_14, %c0_15] : memref<17x128xf32, #tpu.memory_space<vmem>>, vector<17x128xf32>
    %44 = arith.addf %42, %43 : vector<17x128xf32>
    %c0_i32_16 = arith.constant 0 : i32
    %45 = arith.index_cast %c0_i32_16 : i32 to index
    %c0_17 = arith.constant 0 : index
    %c0_18 = arith.constant 0 : index
    %46 = vector.load %arg6[%45, %c0_17, %c0_18] : memref<2x1x128xf32, #tpu.memory_space<vmem>>, vector<1x1x128xf32>
    %47 = vector.shape_cast %46 : vector<1x1x128xf32> to vector<1x128xf32>
    %48 = arith.index_cast %c0_i32_16 : i32 to index
    %c0_19 = arith.constant 0 : index
    %c0_20 = arith.constant 0 : index
    %49 = vector.load %arg7[%48, %c0_19, %c0_20] : memref<2x1x128xf32, #tpu.memory_space<vmem>>, vector<1x1x128xf32>
    %50 = vector.shape_cast %49 : vector<1x1x128xf32> to vector<1x128xf32>
    %cst_21 = arith.constant dense<0.000000e+00> : vector<17xf32>
    %51 = vector.multi_reduction <add>, %44, %cst_21 [1] : vector<17x128xf32> to vector<17xf32>
    %52 = vector.shape_cast %51 : vector<17xf32> to vector<17x1xf32>
    %cst_22 = arith.constant 1.280000e+02 : f32
    %53 = vector.broadcast %cst_22 : f32 to vector<17x1xf32>
    %54 = arith.divf %52, %53 : vector<17x1xf32>
    %55 = vector.broadcast %54 : vector<17x1xf32> to vector<17x128xf32>
    %56 = arith.subf %44, %55 : vector<17x128xf32>
    %57 = arith.mulf %56, %56 : vector<17x128xf32>
    %cst_23 = arith.constant dense<0.000000e+00> : vector<17xf32>
    %58 = vector.multi_reduction <add>, %57, %cst_23 [1] : vector<17x128xf32> to vector<17xf32>
    %59 = vector.shape_cast %58 : vector<17xf32> to vector<17x1xf32>
    %cst_24 = arith.constant 1.280000e+02 : f32
    %60 = vector.broadcast %cst_24 : f32 to vector<17x1xf32>
    %61 = arith.divf %59, %60 : vector<17x1xf32>
    %62 = vector.broadcast %54 : vector<17x1xf32> to vector<17x128xf32>
    %63 = arith.subf %44, %62 : vector<17x128xf32>
    %cst_25 = arith.constant 9.99999997E-7 : f32
    %64 = vector.broadcast %cst_25 : f32 to vector<17x1xf32>
    %65 = arith.addf %61, %64 : vector<17x1xf32>
    %66 = math.rsqrt %65 : vector<17x1xf32>
    %67 = vector.broadcast %66 : vector<17x1xf32> to vector<17x128xf32>
    %68 = arith.mulf %63, %67 : vector<17x128xf32>
    %69 = vector.broadcast %47 : vector<1x128xf32> to vector<17x128xf32>
    %70 = arith.mulf %68, %69 : vector<17x128xf32>
    %71 = vector.broadcast %50 : vector<1x128xf32> to vector<17x128xf32>
    %72 = arith.addf %70, %71 : vector<17x128xf32>
    %73 = arith.truncf %72 : vector<17x128xf32> to vector<17x128xbf16>
    %74 = arith.index_cast %c0_i32_16 : i32 to index
    %c0_26 = arith.constant 0 : index
    %c0_27 = arith.constant 0 : index
    %75 = vector.load %arg8[%74, %c0_26, %c0_27] : memref<2x128x384xbf16, #tpu.memory_space<vmem>>, vector<1x128x384xbf16>
    %76 = vector.shape_cast %75 : vector<1x128x384xbf16> to vector<128x384xbf16>
    %cst_28 = arith.constant dense<0.000000e+00> : vector<17x384xf32>
    %77 = tpu.matmul %73, %76, %cst_28 {dimension_numbers = #tpu.dot_dimension_numbers<[1], [0], [0], [1], [0, 0, 1, 1], [], []>} : vector<17x128xbf16>, vector<128x384xbf16>, vector<17x384xf32> -> vector<17x384xf32>
    %78 = arith.index_cast %c0_i32_16 : i32 to index
    %c0_29 = arith.constant 0 : index
    %c0_30 = arith.constant 0 : index
    %79 = vector.load %arg9[%78, %c0_29, %c0_30] : memref<2x1x384xf32, #tpu.memory_space<vmem>>, vector<1x1x384xf32>
    %80 = vector.shape_cast %79 : vector<1x1x384xf32> to vector<1x384xf32>
    %81 = vector.broadcast %80 : vector<1x384xf32> to vector<17x384xf32>
    %82 = arith.addf %77, %81 : vector<17x384xf32>
    %83 = vector.extract_strided_slice %82 {offsets = [0, 0], sizes = [17, 32], strides = [1, 1]} : vector<17x384xf32> to vector<17x32xf32>
    %84 = vector.extract_strided_slice %82 {offsets = [0, 128], sizes = [17, 32], strides = [1, 1]} : vector<17x384xf32> to vector<17x32xf32>
    %85 = vector.extract_strided_slice %82 {offsets = [0, 256], sizes = [17, 32], strides = [1, 1]} : vector<17x384xf32> to vector<17x32xf32>
    %86 = arith.truncf %83 : vector<17x32xf32> to vector<17x32xbf16>
    %87 = arith.truncf %84 : vector<17x32xf32> to vector<17x32xbf16>
    %cst_31 = arith.constant dense<0.000000e+00> : vector<17x17xf32>
    %88 = tpu.matmul %86, %87, %cst_31 {dimension_numbers = #tpu.dot_dimension_numbers<[1], [1], [0], [0], [0, 0, 1, 0], [], []>} : vector<17x32xbf16>, vector<17x32xbf16>, vector<17x17xf32> -> vector<17x17xf32>
    %cst_32 = arith.constant dense<0xFF800000> : vector<17xf32>
    %89 = vector.multi_reduction <maximumf>, %88, %cst_32 [1] : vector<17x17xf32> to vector<17xf32>
    %90 = vector.shape_cast %89 : vector<17xf32> to vector<17x1xf32>
    %91 = vector.broadcast %90 : vector<17x1xf32> to vector<17x17xf32>
    %92 = arith.subf %88, %91 : vector<17x17xf32>
    %93 = math.exp %92 : vector<17x17xf32>
    %cst_33 = arith.constant dense<0.000000e+00> : vector<17xf32>
    %94 = vector.multi_reduction <add>, %93, %cst_33 [1] : vector<17x17xf32> to vector<17xf32>
    %95 = vector.shape_cast %94 : vector<17xf32> to vector<17x1xf32>
    %96 = tpu.reciprocal %95 {approx = true} : vector<17x1xf32> -> vector<17x1xf32>
    %97 = vector.broadcast %96 : vector<17x1xf32> to vector<17x17xf32>
    %98 = arith.mulf %93, %97 : vector<17x17xf32>
    %99 = arith.truncf %98 : vector<17x17xf32> to vector<17x17xbf16>
    %100 = arith.truncf %85 : vector<17x32xf32> to vector<17x32xbf16>
    %cst_34 = arith.constant dense<0.000000e+00> : vector<17x32xf32>
    %101 = tpu.matmul %99, %100, %cst_34 {dimension_numbers = #tpu.dot_dimension_numbers<[1], [0], [0], [1], [0, 0, 1, 1], [], []>} : vector<17x17xbf16>, vector<17x32xbf16>, vector<17x32xf32> -> vector<17x32xf32>
    %102 = vector.extract_strided_slice %82 {offsets = [0, 32], sizes = [17, 32], strides = [1, 1]} : vector<17x384xf32> to vector<17x32xf32>
    %103 = vector.extract_strided_slice %82 {offsets = [0, 160], sizes = [17, 32], strides = [1, 1]} : vector<17x384xf32> to vector<17x32xf32>
    %104 = vector.extract_strided_slice %82 {offsets = [0, 288], sizes = [17, 32], strides = [1, 1]} : vector<17x384xf32> to vector<17x32xf32>
    %105 = arith.truncf %102 : vector<17x32xf32> to vector<17x32xbf16>
    %106 = arith.truncf %103 : vector<17x32xf32> to vector<17x32xbf16>
    %cst_35 = arith.constant dense<0.000000e+00> : vector<17x17xf32>
    %107 = tpu.matmul %105, %106, %cst_35 {dimension_numbers = #tpu.dot_dimension_numbers<[1], [1], [0], [0], [0, 0, 1, 0], [], []>} : vector<17x32xbf16>, vector<17x32xbf16>, vector<17x17xf32> -> vector<17x17xf32>
    %cst_36 = arith.constant dense<0xFF800000> : vector<17xf32>
    %108 = vector.multi_reduction <maximumf>, %107, %cst_36 [1] : vector<17x17xf32> to vector<17xf32>
    %109 = vector.shape_cast %108 : vector<17xf32> to vector<17x1xf32>
    %110 = vector.broadcast %109 : vector<17x1xf32> to vector<17x17xf32>
    %111 = arith.subf %107, %110 : vector<17x17xf32>
    %112 = math.exp %111 : vector<17x17xf32>
    %cst_37 = arith.constant dense<0.000000e+00> : vector<17xf32>
    %113 = vector.multi_reduction <add>, %112, %cst_37 [1] : vector<17x17xf32> to vector<17xf32>
    %114 = vector.shape_cast %113 : vector<17xf32> to vector<17x1xf32>
    %115 = tpu.reciprocal %114 {approx = true} : vector<17x1xf32> -> vector<17x1xf32>
    %116 = vector.broadcast %115 : vector<17x1xf32> to vector<17x17xf32>
    %117 = arith.mulf %112, %116 : vector<17x17xf32>
    %118 = arith.truncf %117 : vector<17x17xf32> to vector<17x17xbf16>
    %119 = arith.truncf %104 : vector<17x32xf32> to vector<17x32xbf16>
    %cst_38 = arith.constant dense<0.000000e+00> : vector<17x32xf32>
    %120 = tpu.matmul %118, %119, %cst_38 {dimension_numbers = #tpu.dot_dimension_numbers<[1], [0], [0], [1], [0, 0, 1, 1], [], []>} : vector<17x17xbf16>, vector<17x32xbf16>, vector<17x32xf32> -> vector<17x32xf32>
    %121 = vector.extract_strided_slice %82 {offsets = [0, 64], sizes = [17, 32], strides = [1, 1]} : vector<17x384xf32> to vector<17x32xf32>
    %122 = vector.extract_strided_slice %82 {offsets = [0, 192], sizes = [17, 32], strides = [1, 1]} : vector<17x384xf32> to vector<17x32xf32>
    %123 = vector.extract_strided_slice %82 {offsets = [0, 320], sizes = [17, 32], strides = [1, 1]} : vector<17x384xf32> to vector<17x32xf32>
    %124 = arith.truncf %121 : vector<17x32xf32> to vector<17x32xbf16>
    %125 = arith.truncf %122 : vector<17x32xf32> to vector<17x32xbf16>
    %cst_39 = arith.constant dense<0.000000e+00> : vector<17x17xf32>
    %126 = tpu.matmul %124, %125, %cst_39 {dimension_numbers = #tpu.dot_dimension_numbers<[1], [1], [0], [0], [0, 0, 1, 0], [], []>} : vector<17x32xbf16>, vector<17x32xbf16>, vector<17x17xf32> -> vector<17x17xf32>
    %cst_40 = arith.constant dense<0xFF800000> : vector<17xf32>
    %127 = vector.multi_reduction <maximumf>, %126, %cst_40 [1] : vector<17x17xf32> to vector<17xf32>
    %128 = vector.shape_cast %127 : vector<17xf32> to vector<17x1xf32>
    %129 = vector.broadcast %128 : vector<17x1xf32> to vector<17x17xf32>
    %130 = arith.subf %126, %129 : vector<17x17xf32>
    %131 = math.exp %130 : vector<17x17xf32>
    %cst_41 = arith.constant dense<0.000000e+00> : vector<17xf32>
    %132 = vector.multi_reduction <add>, %131, %cst_41 [1] : vector<17x17xf32> to vector<17xf32>
    %133 = vector.shape_cast %132 : vector<17xf32> to vector<17x1xf32>
    %134 = tpu.reciprocal %133 {approx = true} : vector<17x1xf32> -> vector<17x1xf32>
    %135 = vector.broadcast %134 : vector<17x1xf32> to vector<17x17xf32>
    %136 = arith.mulf %131, %135 : vector<17x17xf32>
    %137 = arith.truncf %136 : vector<17x17xf32> to vector<17x17xbf16>
    %138 = arith.truncf %123 : vector<17x32xf32> to vector<17x32xbf16>
    %cst_42 = arith.constant dense<0.000000e+00> : vector<17x32xf32>
    %139 = tpu.matmul %137, %138, %cst_42 {dimension_numbers = #tpu.dot_dimension_numbers<[1], [0], [0], [1], [0, 0, 1, 1], [], []>} : vector<17x17xbf16>, vector<17x32xbf16>, vector<17x32xf32> -> vector<17x32xf32>
    %140 = vector.extract_strided_slice %82 {offsets = [0, 96], sizes = [17, 32], strides = [1, 1]} : vector<17x384xf32> to vector<17x32xf32>
    %141 = vector.extract_strided_slice %82 {offsets = [0, 224], sizes = [17, 32], strides = [1, 1]} : vector<17x384xf32> to vector<17x32xf32>
    %142 = vector.extract_strided_slice %82 {offsets = [0, 352], sizes = [17, 32], strides = [1, 1]} : vector<17x384xf32> to vector<17x32xf32>
    %143 = arith.truncf %140 : vector<17x32xf32> to vector<17x32xbf16>
    %144 = arith.truncf %141 : vector<17x32xf32> to vector<17x32xbf16>
    %cst_43 = arith.constant dense<0.000000e+00> : vector<17x17xf32>
    %145 = tpu.matmul %143, %144, %cst_43 {dimension_numbers = #tpu.dot_dimension_numbers<[1], [1], [0], [0], [0, 0, 1, 0], [], []>} : vector<17x32xbf16>, vector<17x32xbf16>, vector<17x17xf32> -> vector<17x17xf32>
    %cst_44 = arith.constant dense<0xFF800000> : vector<17xf32>
    %146 = vector.multi_reduction <maximumf>, %145, %cst_44 [1] : vector<17x17xf32> to vector<17xf32>
    %147 = vector.shape_cast %146 : vector<17xf32> to vector<17x1xf32>
    %148 = vector.broadcast %147 : vector<17x1xf32> to vector<17x17xf32>
    %149 = arith.subf %145, %148 : vector<17x17xf32>
    %150 = math.exp %149 : vector<17x17xf32>
    %cst_45 = arith.constant dense<0.000000e+00> : vector<17xf32>
    %151 = vector.multi_reduction <add>, %150, %cst_45 [1] : vector<17x17xf32> to vector<17xf32>
    %152 = vector.shape_cast %151 : vector<17xf32> to vector<17x1xf32>
    %153 = tpu.reciprocal %152 {approx = true} : vector<17x1xf32> -> vector<17x1xf32>
    %154 = vector.broadcast %153 : vector<17x1xf32> to vector<17x17xf32>
    %155 = arith.mulf %150, %154 : vector<17x17xf32>
    %156 = arith.truncf %155 : vector<17x17xf32> to vector<17x17xbf16>
    %157 = arith.truncf %142 : vector<17x32xf32> to vector<17x32xbf16>
    %cst_46 = arith.constant dense<0.000000e+00> : vector<17x32xf32>
    %158 = tpu.matmul %156, %157, %cst_46 {dimension_numbers = #tpu.dot_dimension_numbers<[1], [0], [0], [1], [0, 0, 1, 1], [], []>} : vector<17x17xbf16>, vector<17x32xbf16>, vector<17x32xf32> -> vector<17x32xf32>
    %159 = tpu.concatenate %101, %120, %139, %158 in 1 : vector<17x32xf32>, vector<17x32xf32>, vector<17x32xf32>, vector<17x32xf32> -> vector<17x128xf32>
    %160 = arith.truncf %159 : vector<17x128xf32> to vector<17x128xbf16>
    %161 = arith.index_cast %c0_i32_16 : i32 to index
    %c0_47 = arith.constant 0 : index
    %c0_48 = arith.constant 0 : index
    %162 = vector.load %arg10[%161, %c0_47, %c0_48] : memref<2x128x128xbf16, #tpu.memory_space<vmem>>, vector<1x128x128xbf16>
    %163 = vector.shape_cast %162 : vector<1x128x128xbf16> to vector<128x128xbf16>
    %cst_49 = arith.constant dense<0.000000e+00> : vector<17x128xf32>
    %164 = tpu.matmul %160, %163, %cst_49 {dimension_numbers = #tpu.dot_dimension_numbers<[1], [0], [0], [1], [0, 0, 1, 1], [], []>} : vector<17x128xbf16>, vector<128x128xbf16>, vector<17x128xf32> -> vector<17x128xf32>
    %165 = arith.addf %44, %164 : vector<17x128xf32>
    %166 = arith.index_cast %c0_i32_16 : i32 to index
    %c0_50 = arith.constant 0 : index
    %c0_51 = arith.constant 0 : index
    %167 = vector.load %arg11[%166, %c0_50, %c0_51] : memref<2x1x128xf32, #tpu.memory_space<vmem>>, vector<1x1x128xf32>
    %168 = vector.shape_cast %167 : vector<1x1x128xf32> to vector<1x128xf32>
    %169 = vector.broadcast %168 : vector<1x128xf32> to vector<17x128xf32>
    %170 = arith.addf %165, %169 : vector<17x128xf32>
    %171 = arith.index_cast %c0_i32_16 : i32 to index
    %c0_52 = arith.constant 0 : index
    %c0_53 = arith.constant 0 : index
    %172 = vector.load %arg12[%171, %c0_52, %c0_53] : memref<2x1x128xf32, #tpu.memory_space<vmem>>, vector<1x1x128xf32>
    %173 = vector.shape_cast %172 : vector<1x1x128xf32> to vector<1x128xf32>
    %174 = arith.index_cast %c0_i32_16 : i32 to index
    %c0_54 = arith.constant 0 : index
    %c0_55 = arith.constant 0 : index
    %175 = vector.load %arg13[%174, %c0_54, %c0_55] : memref<2x1x128xf32, #tpu.memory_space<vmem>>, vector<1x1x128xf32>
    %176 = vector.shape_cast %175 : vector<1x1x128xf32> to vector<1x128xf32>
    %cst_56 = arith.constant dense<0.000000e+00> : vector<17xf32>
    %177 = vector.multi_reduction <add>, %170, %cst_56 [1] : vector<17x128xf32> to vector<17xf32>
    %178 = vector.shape_cast %177 : vector<17xf32> to vector<17x1xf32>
    %cst_57 = arith.constant 1.280000e+02 : f32
    %179 = vector.broadcast %cst_57 : f32 to vector<17x1xf32>
    %180 = arith.divf %178, %179 : vector<17x1xf32>
    %181 = vector.broadcast %180 : vector<17x1xf32> to vector<17x128xf32>
    %182 = arith.subf %170, %181 : vector<17x128xf32>
    %183 = arith.mulf %182, %182 : vector<17x128xf32>
    %cst_58 = arith.constant dense<0.000000e+00> : vector<17xf32>
    %184 = vector.multi_reduction <add>, %183, %cst_58 [1] : vector<17x128xf32> to vector<17xf32>
    %185 = vector.shape_cast %184 : vector<17xf32> to vector<17x1xf32>
    %cst_59 = arith.constant 1.280000e+02 : f32
    %186 = vector.broadcast %cst_59 : f32 to vector<17x1xf32>
    %187 = arith.divf %185, %186 : vector<17x1xf32>
    %188 = vector.broadcast %180 : vector<17x1xf32> to vector<17x128xf32>
    %189 = arith.subf %170, %188 : vector<17x128xf32>
    %cst_60 = arith.constant 9.99999997E-7 : f32
    %190 = vector.broadcast %cst_60 : f32 to vector<17x1xf32>
    %191 = arith.addf %187, %190 : vector<17x1xf32>
    %192 = math.rsqrt %191 : vector<17x1xf32>
    %193 = vector.broadcast %192 : vector<17x1xf32> to vector<17x128xf32>
    %194 = arith.mulf %189, %193 : vector<17x128xf32>
    %195 = vector.broadcast %173 : vector<1x128xf32> to vector<17x128xf32>
    %196 = arith.mulf %194, %195 : vector<17x128xf32>
    %197 = vector.broadcast %176 : vector<1x128xf32> to vector<17x128xf32>
    %198 = arith.addf %196, %197 : vector<17x128xf32>
    %199 = arith.truncf %198 : vector<17x128xf32> to vector<17x128xbf16>
    %200 = arith.index_cast %c0_i32_16 : i32 to index
    %c0_61 = arith.constant 0 : index
    %c0_62 = arith.constant 0 : index
    %201 = vector.load %arg14[%200, %c0_61, %c0_62] : memref<2x128x256xbf16, #tpu.memory_space<vmem>>, vector<1x128x256xbf16>
    %202 = vector.shape_cast %201 : vector<1x128x256xbf16> to vector<128x256xbf16>
    %cst_63 = arith.constant dense<0.000000e+00> : vector<17x256xf32>
    %203 = tpu.matmul %199, %202, %cst_63 {dimension_numbers = #tpu.dot_dimension_numbers<[1], [0], [0], [1], [0, 0, 1, 1], [], []>} : vector<17x128xbf16>, vector<128x256xbf16>, vector<17x256xf32> -> vector<17x256xf32>
    %204 = arith.index_cast %c0_i32_16 : i32 to index
    %c0_64 = arith.constant 0 : index
    %c0_65 = arith.constant 0 : index
    %205 = vector.load %arg15[%204, %c0_64, %c0_65] : memref<2x1x256xf32, #tpu.memory_space<vmem>>, vector<1x1x256xf32>
    %206 = vector.shape_cast %205 : vector<1x1x256xf32> to vector<1x256xf32>
    %207 = vector.broadcast %206 : vector<1x256xf32> to vector<17x256xf32>
    %208 = arith.addf %203, %207 : vector<17x256xf32>
    %209 = arith.mulf %208, %208 : vector<17x256xf32>
    %210 = arith.mulf %208, %209 : vector<17x256xf32>
    %cst_66 = arith.constant 4.471500e-02 : f32
    %211 = vector.broadcast %cst_66 : f32 to vector<17x256xf32>
    %212 = arith.mulf %211, %210 : vector<17x256xf32>
    %213 = arith.addf %208, %212 : vector<17x256xf32>
    %cst_67 = arith.constant 0.797884583 : f32
    %214 = vector.broadcast %cst_67 : f32 to vector<17x256xf32>
    %215 = arith.mulf %214, %213 : vector<17x256xf32>
    %216 = math.tanh %215 : vector<17x256xf32>
    %cst_68 = arith.constant 1.000000e+00 : f32
    %217 = vector.broadcast %cst_68 : f32 to vector<17x256xf32>
    %218 = arith.addf %217, %216 : vector<17x256xf32>
    %cst_69 = arith.constant 5.000000e-01 : f32
    %219 = vector.broadcast %cst_69 : f32 to vector<17x256xf32>
    %220 = arith.mulf %219, %218 : vector<17x256xf32>
    %221 = arith.mulf %208, %220 : vector<17x256xf32>
    %222 = arith.truncf %221 : vector<17x256xf32> to vector<17x256xbf16>
    %223 = arith.index_cast %c0_i32_16 : i32 to index
    %c0_70 = arith.constant 0 : index
    %c0_71 = arith.constant 0 : index
    %224 = vector.load %arg16[%223, %c0_70, %c0_71] : memref<2x256x128xbf16, #tpu.memory_space<vmem>>, vector<1x256x128xbf16>
    %225 = vector.shape_cast %224 : vector<1x256x128xbf16> to vector<256x128xbf16>
    %cst_72 = arith.constant dense<0.000000e+00> : vector<17x128xf32>
    %226 = tpu.matmul %222, %225, %cst_72 {dimension_numbers = #tpu.dot_dimension_numbers<[1], [0], [0], [1], [0, 0, 1, 1], [], []>} : vector<17x256xbf16>, vector<256x128xbf16>, vector<17x128xf32> -> vector<17x128xf32>
    %227 = arith.addf %170, %226 : vector<17x128xf32>
    %228 = arith.index_cast %c0_i32_16 : i32 to index
    %c0_73 = arith.constant 0 : index
    %c0_74 = arith.constant 0 : index
    %229 = vector.load %arg17[%228, %c0_73, %c0_74] : memref<2x1x128xf32, #tpu.memory_space<vmem>>, vector<1x1x128xf32>
    %230 = vector.shape_cast %229 : vector<1x1x128xf32> to vector<1x128xf32>
    %231 = vector.broadcast %230 : vector<1x128xf32> to vector<17x128xf32>
    %232 = arith.addf %227, %231 : vector<17x128xf32>
    %c1_i32_75 = arith.constant 1 : i32
    %233 = arith.index_cast %c1_i32_75 : i32 to index
    %c0_76 = arith.constant 0 : index
    %c0_77 = arith.constant 0 : index
    %234 = vector.load %arg6[%233, %c0_76, %c0_77] : memref<2x1x128xf32, #tpu.memory_space<vmem>>, vector<1x1x128xf32>
    %235 = vector.shape_cast %234 : vector<1x1x128xf32> to vector<1x128xf32>
    %236 = arith.index_cast %c1_i32_75 : i32 to index
    %c0_78 = arith.constant 0 : index
    %c0_79 = arith.constant 0 : index
    %237 = vector.load %arg7[%236, %c0_78, %c0_79] : memref<2x1x128xf32, #tpu.memory_space<vmem>>, vector<1x1x128xf32>
    %238 = vector.shape_cast %237 : vector<1x1x128xf32> to vector<1x128xf32>
    %cst_80 = arith.constant dense<0.000000e+00> : vector<17xf32>
    %239 = vector.multi_reduction <add>, %232, %cst_80 [1] : vector<17x128xf32> to vector<17xf32>
    %240 = vector.shape_cast %239 : vector<17xf32> to vector<17x1xf32>
    %cst_81 = arith.constant 1.280000e+02 : f32
    %241 = vector.broadcast %cst_81 : f32 to vector<17x1xf32>
    %242 = arith.divf %240, %241 : vector<17x1xf32>
    %243 = vector.broadcast %242 : vector<17x1xf32> to vector<17x128xf32>
    %244 = arith.subf %232, %243 : vector<17x128xf32>
    %245 = arith.mulf %244, %244 : vector<17x128xf32>
    %cst_82 = arith.constant dense<0.000000e+00> : vector<17xf32>
    %246 = vector.multi_reduction <add>, %245, %cst_82 [1] : vector<17x128xf32> to vector<17xf32>
    %247 = vector.shape_cast %246 : vector<17xf32> to vector<17x1xf32>
    %cst_83 = arith.constant 1.280000e+02 : f32
    %248 = vector.broadcast %cst_83 : f32 to vector<17x1xf32>
    %249 = arith.divf %247, %248 : vector<17x1xf32>
    %250 = vector.broadcast %242 : vector<17x1xf32> to vector<17x128xf32>
    %251 = arith.subf %232, %250 : vector<17x128xf32>
    %cst_84 = arith.constant 9.99999997E-7 : f32
    %252 = vector.broadcast %cst_84 : f32 to vector<17x1xf32>
    %253 = arith.addf %249, %252 : vector<17x1xf32>
    %254 = math.rsqrt %253 : vector<17x1xf32>
    %255 = vector.broadcast %254 : vector<17x1xf32> to vector<17x128xf32>
    %256 = arith.mulf %251, %255 : vector<17x128xf32>
    %257 = vector.broadcast %235 : vector<1x128xf32> to vector<17x128xf32>
    %258 = arith.mulf %256, %257 : vector<17x128xf32>
    %259 = vector.broadcast %238 : vector<1x128xf32> to vector<17x128xf32>
    %260 = arith.addf %258, %259 : vector<17x128xf32>
    %261 = arith.truncf %260 : vector<17x128xf32> to vector<17x128xbf16>
    %262 = arith.index_cast %c1_i32_75 : i32 to index
    %c0_85 = arith.constant 0 : index
    %c0_86 = arith.constant 0 : index
    %263 = vector.load %arg8[%262, %c0_85, %c0_86] : memref<2x128x384xbf16, #tpu.memory_space<vmem>>, vector<1x128x384xbf16>
    %264 = vector.shape_cast %263 : vector<1x128x384xbf16> to vector<128x384xbf16>
    %cst_87 = arith.constant dense<0.000000e+00> : vector<17x384xf32>
    %265 = tpu.matmul %261, %264, %cst_87 {dimension_numbers = #tpu.dot_dimension_numbers<[1], [0], [0], [1], [0, 0, 1, 1], [], []>} : vector<17x128xbf16>, vector<128x384xbf16>, vector<17x384xf32> -> vector<17x384xf32>
    %266 = arith.index_cast %c1_i32_75 : i32 to index
    %c0_88 = arith.constant 0 : index
    %c0_89 = arith.constant 0 : index
    %267 = vector.load %arg9[%266, %c0_88, %c0_89] : memref<2x1x384xf32, #tpu.memory_space<vmem>>, vector<1x1x384xf32>
    %268 = vector.shape_cast %267 : vector<1x1x384xf32> to vector<1x384xf32>
    %269 = vector.broadcast %268 : vector<1x384xf32> to vector<17x384xf32>
    %270 = arith.addf %265, %269 : vector<17x384xf32>
    %271 = vector.extract_strided_slice %270 {offsets = [0, 0], sizes = [17, 32], strides = [1, 1]} : vector<17x384xf32> to vector<17x32xf32>
    %272 = vector.extract_strided_slice %270 {offsets = [0, 128], sizes = [17, 32], strides = [1, 1]} : vector<17x384xf32> to vector<17x32xf32>
    %273 = vector.extract_strided_slice %270 {offsets = [0, 256], sizes = [17, 32], strides = [1, 1]} : vector<17x384xf32> to vector<17x32xf32>
    %274 = arith.truncf %271 : vector<17x32xf32> to vector<17x32xbf16>
    %275 = arith.truncf %272 : vector<17x32xf32> to vector<17x32xbf16>
    %cst_90 = arith.constant dense<0.000000e+00> : vector<17x17xf32>
    %276 = tpu.matmul %274, %275, %cst_90 {dimension_numbers = #tpu.dot_dimension_numbers<[1], [1], [0], [0], [0, 0, 1, 0], [], []>} : vector<17x32xbf16>, vector<17x32xbf16>, vector<17x17xf32> -> vector<17x17xf32>
    %cst_91 = arith.constant dense<0xFF800000> : vector<17xf32>
    %277 = vector.multi_reduction <maximumf>, %276, %cst_91 [1] : vector<17x17xf32> to vector<17xf32>
    %278 = vector.shape_cast %277 : vector<17xf32> to vector<17x1xf32>
    %279 = vector.broadcast %278 : vector<17x1xf32> to vector<17x17xf32>
    %280 = arith.subf %276, %279 : vector<17x17xf32>
    %281 = math.exp %280 : vector<17x17xf32>
    %cst_92 = arith.constant dense<0.000000e+00> : vector<17xf32>
    %282 = vector.multi_reduction <add>, %281, %cst_92 [1] : vector<17x17xf32> to vector<17xf32>
    %283 = vector.shape_cast %282 : vector<17xf32> to vector<17x1xf32>
    %284 = tpu.reciprocal %283 {approx = true} : vector<17x1xf32> -> vector<17x1xf32>
    %285 = vector.broadcast %284 : vector<17x1xf32> to vector<17x17xf32>
    %286 = arith.mulf %281, %285 : vector<17x17xf32>
    %287 = arith.truncf %286 : vector<17x17xf32> to vector<17x17xbf16>
    %288 = arith.truncf %273 : vector<17x32xf32> to vector<17x32xbf16>
    %cst_93 = arith.constant dense<0.000000e+00> : vector<17x32xf32>
    %289 = tpu.matmul %287, %288, %cst_93 {dimension_numbers = #tpu.dot_dimension_numbers<[1], [0], [0], [1], [0, 0, 1, 1], [], []>} : vector<17x17xbf16>, vector<17x32xbf16>, vector<17x32xf32> -> vector<17x32xf32>
    %290 = vector.extract_strided_slice %270 {offsets = [0, 32], sizes = [17, 32], strides = [1, 1]} : vector<17x384xf32> to vector<17x32xf32>
    %291 = vector.extract_strided_slice %270 {offsets = [0, 160], sizes = [17, 32], strides = [1, 1]} : vector<17x384xf32> to vector<17x32xf32>
    %292 = vector.extract_strided_slice %270 {offsets = [0, 288], sizes = [17, 32], strides = [1, 1]} : vector<17x384xf32> to vector<17x32xf32>
    %293 = arith.truncf %290 : vector<17x32xf32> to vector<17x32xbf16>
    %294 = arith.truncf %291 : vector<17x32xf32> to vector<17x32xbf16>
    %cst_94 = arith.constant dense<0.000000e+00> : vector<17x17xf32>
    %295 = tpu.matmul %293, %294, %cst_94 {dimension_numbers = #tpu.dot_dimension_numbers<[1], [1], [0], [0], [0, 0, 1, 0], [], []>} : vector<17x32xbf16>, vector<17x32xbf16>, vector<17x17xf32> -> vector<17x17xf32>
    %cst_95 = arith.constant dense<0xFF800000> : vector<17xf32>
    %296 = vector.multi_reduction <maximumf>, %295, %cst_95 [1] : vector<17x17xf32> to vector<17xf32>
    %297 = vector.shape_cast %296 : vector<17xf32> to vector<17x1xf32>
    %298 = vector.broadcast %297 : vector<17x1xf32> to vector<17x17xf32>
    %299 = arith.subf %295, %298 : vector<17x17xf32>
    %300 = math.exp %299 : vector<17x17xf32>
    %cst_96 = arith.constant dense<0.000000e+00> : vector<17xf32>
    %301 = vector.multi_reduction <add>, %300, %cst_96 [1] : vector<17x17xf32> to vector<17xf32>
    %302 = vector.shape_cast %301 : vector<17xf32> to vector<17x1xf32>
    %303 = tpu.reciprocal %302 {approx = true} : vector<17x1xf32> -> vector<17x1xf32>
    %304 = vector.broadcast %303 : vector<17x1xf32> to vector<17x17xf32>
    %305 = arith.mulf %300, %304 : vector<17x17xf32>
    %306 = arith.truncf %305 : vector<17x17xf32> to vector<17x17xbf16>
    %307 = arith.truncf %292 : vector<17x32xf32> to vector<17x32xbf16>
    %cst_97 = arith.constant dense<0.000000e+00> : vector<17x32xf32>
    %308 = tpu.matmul %306, %307, %cst_97 {dimension_numbers = #tpu.dot_dimension_numbers<[1], [0], [0], [1], [0, 0, 1, 1], [], []>} : vector<17x17xbf16>, vector<17x32xbf16>, vector<17x32xf32> -> vector<17x32xf32>
    %309 = vector.extract_strided_slice %270 {offsets = [0, 64], sizes = [17, 32], strides = [1, 1]} : vector<17x384xf32> to vector<17x32xf32>
    %310 = vector.extract_strided_slice %270 {offsets = [0, 192], sizes = [17, 32], strides = [1, 1]} : vector<17x384xf32> to vector<17x32xf32>
    %311 = vector.extract_strided_slice %270 {offsets = [0, 320], sizes = [17, 32], strides = [1, 1]} : vector<17x384xf32> to vector<17x32xf32>
    %312 = arith.truncf %309 : vector<17x32xf32> to vector<17x32xbf16>
    %313 = arith.truncf %310 : vector<17x32xf32> to vector<17x32xbf16>
    %cst_98 = arith.constant dense<0.000000e+00> : vector<17x17xf32>
    %314 = tpu.matmul %312, %313, %cst_98 {dimension_numbers = #tpu.dot_dimension_numbers<[1], [1], [0], [0], [0, 0, 1, 0], [], []>} : vector<17x32xbf16>, vector<17x32xbf16>, vector<17x17xf32> -> vector<17x17xf32>
    %cst_99 = arith.constant dense<0xFF800000> : vector<17xf32>
    %315 = vector.multi_reduction <maximumf>, %314, %cst_99 [1] : vector<17x17xf32> to vector<17xf32>
    %316 = vector.shape_cast %315 : vector<17xf32> to vector<17x1xf32>
    %317 = vector.broadcast %316 : vector<17x1xf32> to vector<17x17xf32>
    %318 = arith.subf %314, %317 : vector<17x17xf32>
    %319 = math.exp %318 : vector<17x17xf32>
    %cst_100 = arith.constant dense<0.000000e+00> : vector<17xf32>
    %320 = vector.multi_reduction <add>, %319, %cst_100 [1] : vector<17x17xf32> to vector<17xf32>
    %321 = vector.shape_cast %320 : vector<17xf32> to vector<17x1xf32>
    %322 = tpu.reciprocal %321 {approx = true} : vector<17x1xf32> -> vector<17x1xf32>
    %323 = vector.broadcast %322 : vector<17x1xf32> to vector<17x17xf32>
    %324 = arith.mulf %319, %323 : vector<17x17xf32>
    %325 = arith.truncf %324 : vector<17x17xf32> to vector<17x17xbf16>
    %326 = arith.truncf %311 : vector<17x32xf32> to vector<17x32xbf16>
    %cst_101 = arith.constant dense<0.000000e+00> : vector<17x32xf32>
    %327 = tpu.matmul %325, %326, %cst_101 {dimension_numbers = #tpu.dot_dimension_numbers<[1], [0], [0], [1], [0, 0, 1, 1], [], []>} : vector<17x17xbf16>, vector<17x32xbf16>, vector<17x32xf32> -> vector<17x32xf32>
    %328 = vector.extract_strided_slice %270 {offsets = [0, 96], sizes = [17, 32], strides = [1, 1]} : vector<17x384xf32> to vector<17x32xf32>
    %329 = vector.extract_strided_slice %270 {offsets = [0, 224], sizes = [17, 32], strides = [1, 1]} : vector<17x384xf32> to vector<17x32xf32>
    %330 = vector.extract_strided_slice %270 {offsets = [0, 352], sizes = [17, 32], strides = [1, 1]} : vector<17x384xf32> to vector<17x32xf32>
    %331 = arith.truncf %328 : vector<17x32xf32> to vector<17x32xbf16>
    %332 = arith.truncf %329 : vector<17x32xf32> to vector<17x32xbf16>
    %cst_102 = arith.constant dense<0.000000e+00> : vector<17x17xf32>
    %333 = tpu.matmul %331, %332, %cst_102 {dimension_numbers = #tpu.dot_dimension_numbers<[1], [1], [0], [0], [0, 0, 1, 0], [], []>} : vector<17x32xbf16>, vector<17x32xbf16>, vector<17x17xf32> -> vector<17x17xf32>
    %cst_103 = arith.constant dense<0xFF800000> : vector<17xf32>
    %334 = vector.multi_reduction <maximumf>, %333, %cst_103 [1] : vector<17x17xf32> to vector<17xf32>
    %335 = vector.shape_cast %334 : vector<17xf32> to vector<17x1xf32>
    %336 = vector.broadcast %335 : vector<17x1xf32> to vector<17x17xf32>
    %337 = arith.subf %333, %336 : vector<17x17xf32>
    %338 = math.exp %337 : vector<17x17xf32>
    %cst_104 = arith.constant dense<0.000000e+00> : vector<17xf32>
    %339 = vector.multi_reduction <add>, %338, %cst_104 [1] : vector<17x17xf32> to vector<17xf32>
    %340 = vector.shape_cast %339 : vector<17xf32> to vector<17x1xf32>
    %341 = tpu.reciprocal %340 {approx = true} : vector<17x1xf32> -> vector<17x1xf32>
    %342 = vector.broadcast %341 : vector<17x1xf32> to vector<17x17xf32>
    %343 = arith.mulf %338, %342 : vector<17x17xf32>
    %344 = arith.truncf %343 : vector<17x17xf32> to vector<17x17xbf16>
    %345 = arith.truncf %330 : vector<17x32xf32> to vector<17x32xbf16>
    %cst_105 = arith.constant dense<0.000000e+00> : vector<17x32xf32>
    %346 = tpu.matmul %344, %345, %cst_105 {dimension_numbers = #tpu.dot_dimension_numbers<[1], [0], [0], [1], [0, 0, 1, 1], [], []>} : vector<17x17xbf16>, vector<17x32xbf16>, vector<17x32xf32> -> vector<17x32xf32>
    %347 = tpu.concatenate %289, %308, %327, %346 in 1 : vector<17x32xf32>, vector<17x32xf32>, vector<17x32xf32>, vector<17x32xf32> -> vector<17x128xf32>
    %348 = arith.truncf %347 : vector<17x128xf32> to vector<17x128xbf16>
    %349 = arith.index_cast %c1_i32_75 : i32 to index
    %c0_106 = arith.constant 0 : index
    %c0_107 = arith.constant 0 : index
    %350 = vector.load %arg10[%349, %c0_106, %c0_107] : memref<2x128x128xbf16, #tpu.memory_space<vmem>>, vector<1x128x128xbf16>
    %351 = vector.shape_cast %350 : vector<1x128x128xbf16> to vector<128x128xbf16>
    %cst_108 = arith.constant dense<0.000000e+00> : vector<17x128xf32>
    %352 = tpu.matmul %348, %351, %cst_108 {dimension_numbers = #tpu.dot_dimension_numbers<[1], [0], [0], [1], [0, 0, 1, 1], [], []>} : vector<17x128xbf16>, vector<128x128xbf16>, vector<17x128xf32> -> vector<17x128xf32>
    %353 = arith.addf %232, %352 : vector<17x128xf32>
    %354 = arith.index_cast %c1_i32_75 : i32 to index
    %c0_109 = arith.constant 0 : index
    %c0_110 = arith.constant 0 : index
    %355 = vector.load %arg11[%354, %c0_109, %c0_110] : memref<2x1x128xf32, #tpu.memory_space<vmem>>, vector<1x1x128xf32>
    %356 = vector.shape_cast %355 : vector<1x1x128xf32> to vector<1x128xf32>
    %357 = vector.broadcast %356 : vector<1x128xf32> to vector<17x128xf32>
    %358 = arith.addf %353, %357 : vector<17x128xf32>
    %359 = arith.index_cast %c1_i32_75 : i32 to index
    %c0_111 = arith.constant 0 : index
    %c0_112 = arith.constant 0 : index
    %360 = vector.load %arg12[%359, %c0_111, %c0_112] : memref<2x1x128xf32, #tpu.memory_space<vmem>>, vector<1x1x128xf32>
    %361 = vector.shape_cast %360 : vector<1x1x128xf32> to vector<1x128xf32>
    %362 = arith.index_cast %c1_i32_75 : i32 to index
    %c0_113 = arith.constant 0 : index
    %c0_114 = arith.constant 0 : index
    %363 = vector.load %arg13[%362, %c0_113, %c0_114] : memref<2x1x128xf32, #tpu.memory_space<vmem>>, vector<1x1x128xf32>
    %364 = vector.shape_cast %363 : vector<1x1x128xf32> to vector<1x128xf32>
    %cst_115 = arith.constant dense<0.000000e+00> : vector<17xf32>
    %365 = vector.multi_reduction <add>, %358, %cst_115 [1] : vector<17x128xf32> to vector<17xf32>
    %366 = vector.shape_cast %365 : vector<17xf32> to vector<17x1xf32>
    %cst_116 = arith.constant 1.280000e+02 : f32
    %367 = vector.broadcast %cst_116 : f32 to vector<17x1xf32>
    %368 = arith.divf %366, %367 : vector<17x1xf32>
    %369 = vector.broadcast %368 : vector<17x1xf32> to vector<17x128xf32>
    %370 = arith.subf %358, %369 : vector<17x128xf32>
    %371 = arith.mulf %370, %370 : vector<17x128xf32>
    %cst_117 = arith.constant dense<0.000000e+00> : vector<17xf32>
    %372 = vector.multi_reduction <add>, %371, %cst_117 [1] : vector<17x128xf32> to vector<17xf32>
    %373 = vector.shape_cast %372 : vector<17xf32> to vector<17x1xf32>
    %cst_118 = arith.constant 1.280000e+02 : f32
    %374 = vector.broadcast %cst_118 : f32 to vector<17x1xf32>
    %375 = arith.divf %373, %374 : vector<17x1xf32>
    %376 = vector.broadcast %368 : vector<17x1xf32> to vector<17x128xf32>
    %377 = arith.subf %358, %376 : vector<17x128xf32>
    %cst_119 = arith.constant 9.99999997E-7 : f32
    %378 = vector.broadcast %cst_119 : f32 to vector<17x1xf32>
    %379 = arith.addf %375, %378 : vector<17x1xf32>
    %380 = math.rsqrt %379 : vector<17x1xf32>
    %381 = vector.broadcast %380 : vector<17x1xf32> to vector<17x128xf32>
    %382 = arith.mulf %377, %381 : vector<17x128xf32>
    %383 = vector.broadcast %361 : vector<1x128xf32> to vector<17x128xf32>
    %384 = arith.mulf %382, %383 : vector<17x128xf32>
    %385 = vector.broadcast %364 : vector<1x128xf32> to vector<17x128xf32>
    %386 = arith.addf %384, %385 : vector<17x128xf32>
    %387 = arith.truncf %386 : vector<17x128xf32> to vector<17x128xbf16>
    %388 = arith.index_cast %c1_i32_75 : i32 to index
    %c0_120 = arith.constant 0 : index
    %c0_121 = arith.constant 0 : index
    %389 = vector.load %arg14[%388, %c0_120, %c0_121] : memref<2x128x256xbf16, #tpu.memory_space<vmem>>, vector<1x128x256xbf16>
    %390 = vector.shape_cast %389 : vector<1x128x256xbf16> to vector<128x256xbf16>
    %cst_122 = arith.constant dense<0.000000e+00> : vector<17x256xf32>
    %391 = tpu.matmul %387, %390, %cst_122 {dimension_numbers = #tpu.dot_dimension_numbers<[1], [0], [0], [1], [0, 0, 1, 1], [], []>} : vector<17x128xbf16>, vector<128x256xbf16>, vector<17x256xf32> -> vector<17x256xf32>
    %392 = arith.index_cast %c1_i32_75 : i32 to index
    %c0_123 = arith.constant 0 : index
    %c0_124 = arith.constant 0 : index
    %393 = vector.load %arg15[%392, %c0_123, %c0_124] : memref<2x1x256xf32, #tpu.memory_space<vmem>>, vector<1x1x256xf32>
    %394 = vector.shape_cast %393 : vector<1x1x256xf32> to vector<1x256xf32>
    %395 = vector.broadcast %394 : vector<1x256xf32> to vector<17x256xf32>
    %396 = arith.addf %391, %395 : vector<17x256xf32>
    %397 = arith.mulf %396, %396 : vector<17x256xf32>
    %398 = arith.mulf %396, %397 : vector<17x256xf32>
    %cst_125 = arith.constant 4.471500e-02 : f32
    %399 = vector.broadcast %cst_125 : f32 to vector<17x256xf32>
    %400 = arith.mulf %399, %398 : vector<17x256xf32>
    %401 = arith.addf %396, %400 : vector<17x256xf32>
    %cst_126 = arith.constant 0.797884583 : f32
    %402 = vector.broadcast %cst_126 : f32 to vector<17x256xf32>
    %403 = arith.mulf %402, %401 : vector<17x256xf32>
    %404 = math.tanh %403 : vector<17x256xf32>
    %cst_127 = arith.constant 1.000000e+00 : f32
    %405 = vector.broadcast %cst_127 : f32 to vector<17x256xf32>
    %406 = arith.addf %405, %404 : vector<17x256xf32>
    %cst_128 = arith.constant 5.000000e-01 : f32
    %407 = vector.broadcast %cst_128 : f32 to vector<17x256xf32>
    %408 = arith.mulf %407, %406 : vector<17x256xf32>
    %409 = arith.mulf %396, %408 : vector<17x256xf32>
    %410 = arith.truncf %409 : vector<17x256xf32> to vector<17x256xbf16>
    %411 = arith.index_cast %c1_i32_75 : i32 to index
    %c0_129 = arith.constant 0 : index
    %c0_130 = arith.constant 0 : index
    %412 = vector.load %arg16[%411, %c0_129, %c0_130] : memref<2x256x128xbf16, #tpu.memory_space<vmem>>, vector<1x256x128xbf16>
    %413 = vector.shape_cast %412 : vector<1x256x128xbf16> to vector<256x128xbf16>
    %cst_131 = arith.constant dense<0.000000e+00> : vector<17x128xf32>
    %414 = tpu.matmul %410, %413, %cst_131 {dimension_numbers = #tpu.dot_dimension_numbers<[1], [0], [0], [1], [0, 0, 1, 1], [], []>} : vector<17x256xbf16>, vector<256x128xbf16>, vector<17x128xf32> -> vector<17x128xf32>
    %415 = arith.addf %358, %414 : vector<17x128xf32>
    %416 = arith.index_cast %c1_i32_75 : i32 to index
    %c0_132 = arith.constant 0 : index
    %c0_133 = arith.constant 0 : index
    %417 = vector.load %arg17[%416, %c0_132, %c0_133] : memref<2x1x128xf32, #tpu.memory_space<vmem>>, vector<1x1x128xf32>
    %418 = vector.shape_cast %417 : vector<1x1x128xf32> to vector<1x128xf32>
    %419 = vector.broadcast %418 : vector<1x128xf32> to vector<17x128xf32>
    %420 = arith.addf %415, %419 : vector<17x128xf32>
    %c2_i32_134 = arith.constant 2 : i32
    %c0_135 = arith.constant 0 : index
    %c0_136 = arith.constant 0 : index
    %421 = vector.load %arg18[%c0_135, %c0_136] : memref<1x128xf32, #tpu.memory_space<vmem>>, vector<1x128xf32>
    %c0_137 = arith.constant 0 : index
    %c0_138 = arith.constant 0 : index
    %422 = vector.load %arg19[%c0_137, %c0_138] : memref<1x128xf32, #tpu.memory_space<vmem>>, vector<1x128xf32>
    %cst_139 = arith.constant dense<0.000000e+00> : vector<17xf32>
    %423 = vector.multi_reduction <add>, %420, %cst_139 [1] : vector<17x128xf32> to vector<17xf32>
    %424 = vector.shape_cast %423 : vector<17xf32> to vector<17x1xf32>
    %cst_140 = arith.constant 1.280000e+02 : f32
    %425 = vector.broadcast %cst_140 : f32 to vector<17x1xf32>
    %426 = arith.divf %424, %425 : vector<17x1xf32>
    %427 = vector.broadcast %426 : vector<17x1xf32> to vector<17x128xf32>
    %428 = arith.subf %420, %427 : vector<17x128xf32>
    %429 = arith.mulf %428, %428 : vector<17x128xf32>
    %cst_141 = arith.constant dense<0.000000e+00> : vector<17xf32>
    %430 = vector.multi_reduction <add>, %429, %cst_141 [1] : vector<17x128xf32> to vector<17xf32>
    %431 = vector.shape_cast %430 : vector<17xf32> to vector<17x1xf32>
    %cst_142 = arith.constant 1.280000e+02 : f32
    %432 = vector.broadcast %cst_142 : f32 to vector<17x1xf32>
    %433 = arith.divf %431, %432 : vector<17x1xf32>
    %434 = vector.broadcast %426 : vector<17x1xf32> to vector<17x128xf32>
    %435 = arith.subf %420, %434 : vector<17x128xf32>
    %cst_143 = arith.constant 9.99999997E-7 : f32
    %436 = vector.broadcast %cst_143 : f32 to vector<17x1xf32>
    %437 = arith.addf %433, %436 : vector<17x1xf32>
    %438 = math.rsqrt %437 : vector<17x1xf32>
    %439 = vector.broadcast %438 : vector<17x1xf32> to vector<17x128xf32>
    %440 = arith.mulf %435, %439 : vector<17x128xf32>
    %441 = vector.broadcast %421 : vector<1x128xf32> to vector<17x128xf32>
    %442 = arith.mulf %440, %441 : vector<17x128xf32>
    %443 = vector.broadcast %422 : vector<1x128xf32> to vector<17x128xf32>
    %444 = arith.addf %442, %443 : vector<17x128xf32>
    %cst_144 = arith.constant dense<0.000000e+00> : vector<128xf32>
    %445 = vector.multi_reduction <add>, %444, %cst_144 [0] : vector<17x128xf32> to vector<128xf32>
    %446 = vector.shape_cast %445 : vector<128xf32> to vector<1x128xf32>
    %cst_145 = arith.constant 1.700000e+01 : f32
    %447 = vector.broadcast %cst_145 : f32 to vector<1x128xf32>
    %448 = arith.divf %446, %447 : vector<1x128xf32>
    %449 = arith.truncf %448 : vector<1x128xf32> to vector<1x128xbf16>
    %c0_146 = arith.constant 0 : index
    %c0_147 = arith.constant 0 : index
    %450 = vector.load %arg20[%c0_146, %c0_147] : memref<128x64xbf16, #tpu.memory_space<vmem>>, vector<128x64xbf16>
    %cst_148 = arith.constant dense<0.000000e+00> : vector<1x64xf32>
    %451 = tpu.matmul %449, %450, %cst_148 {dimension_numbers = #tpu.dot_dimension_numbers<[1], [0], [0], [1], [0, 0, 1, 1], [], []>} : vector<1x128xbf16>, vector<128x64xbf16>, vector<1x64xf32> -> vector<1x64xf32>
    %c0_149 = arith.constant 0 : index
    %c0_150 = arith.constant 0 : index
    %452 = vector.load %arg21[%c0_149, %c0_150] : memref<1x64xf32, #tpu.memory_space<vmem>>, vector<1x64xf32>
    %453 = arith.addf %451, %452 : vector<1x64xf32>
    %c0_151 = arith.constant 0 : index
    %c0_152 = arith.constant 0 : index
    %454 = vector.load %arg22[%c0_151, %c0_152] : memref<1x64xf32, #tpu.memory_space<vmem>>, vector<1x64xf32>
    %455 = arith.mulf %453, %454 : vector<1x64xf32>
    %c0_153 = arith.constant 0 : index
    %c0_154 = arith.constant 0 : index
    %456 = vector.load %arg23[%c0_153, %c0_154] : memref<1x64xf32, #tpu.memory_space<vmem>>, vector<1x64xf32>
    %457 = arith.addf %455, %456 : vector<1x64xf32>
    %458 = arith.truncf %457 : vector<1x64xf32> to vector<1x64xbf16>
    %c0_155 = arith.constant 0 : index
    %c0_156 = arith.constant 0 : index
    %459 = vector.load %arg24[%c0_155, %c0_156] : memref<64x16xbf16, #tpu.memory_space<vmem>>, vector<64x16xbf16>
    %cst_157 = arith.constant dense<0.000000e+00> : vector<1x16xf32>
    %460 = tpu.matmul %458, %459, %cst_157 {dimension_numbers = #tpu.dot_dimension_numbers<[1], [0], [0], [1], [0, 0, 1, 1], [], []>} : vector<1x64xbf16>, vector<64x16xbf16>, vector<1x16xf32> -> vector<1x16xf32>
    %c0_158 = arith.constant 0 : index
    %c0_159 = arith.constant 0 : index
    %461 = vector.load %arg25[%c0_158, %c0_159] : memref<1x16xf32, #tpu.memory_space<vmem>>, vector<1x16xf32>
    %462 = arith.addf %460, %461 : vector<1x16xf32>
    %cst_160 = arith.constant 0.000000e+00 : f32
    %463 = vector.broadcast %cst_160 : f32 to vector<1x48xf32>
    %464 = tpu.concatenate %457, %462, %463 in 1 : vector<1x64xf32>, vector<1x16xf32>, vector<1x48xf32> -> vector<1x128xf32>
    %465 = vector.shape_cast %464 : vector<1x128xf32> to vector<1x1x128xf32>
    %c0_161 = arith.constant 0 : index
    %c0_162 = arith.constant 0 : index
    %c0_163 = arith.constant 0 : index
    %466 = vector.load %arg26[%c0_161, %c0_162, %c0_163] : memref<1x1x128xf32, #tpu.memory_space<vmem>>, vector<1x1x128xf32>
    tpu.vector_store %arg26[%c0_161, %c0_162, %c0_163], %465 {strides = array<i32>} : memref<1x1x128xf32, #tpu.memory_space<vmem>>, vector<1x1x128xf32>,
    return
  }
  func.func @transform_0(%arg0: i32) -> (i32, i32, i32) {
    %c0_i32 = arith.constant 0 : i32
    %c0_i32_0 = arith.constant 0 : i32
    %c0_i32_1 = arith.constant 0 : i32
    return %arg0, %c0_i32, %c0_i32_0 : i32, i32, i32
  }
  func.func @transform_1(%arg0: i32) -> (i32, i32) {
    %c0_i32 = arith.constant 0 : i32
    %c0_i32_0 = arith.constant 0 : i32
    %c0_i32_1 = arith.constant 0 : i32
    return %c0_i32, %c0_i32_0 : i32, i32
  }
  func.func @transform_2(%arg0: i32) -> (i32, i32) {
    %c0_i32 = arith.constant 0 : i32
    %c0_i32_0 = arith.constant 0 : i32
    %c0_i32_1 = arith.constant 0 : i32
    return %c0_i32, %c0_i32_0 : i32, i32
  }
  func.func @transform_3(%arg0: i32) -> (i32, i32) {
    %c0_i32 = arith.constant 0 : i32
    %c0_i32_0 = arith.constant 0 : i32
    %c0_i32_1 = arith.constant 0 : i32
    return %c0_i32, %c0_i32_0 : i32, i32
  }
  func.func @transform_4(%arg0: i32) -> (i32, i32) {
    %c0_i32 = arith.constant 0 : i32
    %c0_i32_0 = arith.constant 0 : i32
    %c0_i32_1 = arith.constant 0 : i32
    return %c0_i32, %c0_i32_0 : i32, i32
  }
  func.func @transform_5(%arg0: i32) -> (i32, i32, i32) {
    %c0_i32 = arith.constant 0 : i32
    %c0_i32_0 = arith.constant 0 : i32
    %c0_i32_1 = arith.constant 0 : i32
    %c0_i32_2 = arith.constant 0 : i32
    return %c0_i32, %c0_i32_0, %c0_i32_1 : i32, i32, i32
  }
  func.func @transform_6(%arg0: i32) -> (i32, i32, i32) {
    %c0_i32 = arith.constant 0 : i32
    %c0_i32_0 = arith.constant 0 : i32
    %c0_i32_1 = arith.constant 0 : i32
    %c0_i32_2 = arith.constant 0 : i32
    return %c0_i32, %c0_i32_0, %c0_i32_1 : i32, i32, i32
  }
  func.func @transform_7(%arg0: i32) -> (i32, i32, i32) {
    %c0_i32 = arith.constant 0 : i32
    %c0_i32_0 = arith.constant 0 : i32
    %c0_i32_1 = arith.constant 0 : i32
    %c0_i32_2 = arith.constant 0 : i32
    return %c0_i32, %c0_i32_0, %c0_i32_1 : i32, i32, i32
  }
  func.func @transform_8(%arg0: i32) -> (i32, i32, i32) {
    %c0_i32 = arith.constant 0 : i32
    %c0_i32_0 = arith.constant 0 : i32
    %c0_i32_1 = arith.constant 0 : i32
    %c0_i32_2 = arith.constant 0 : i32
    return %c0_i32, %c0_i32_0, %c0_i32_1 : i32, i32, i32
  }
  func.func @transform_9(%arg0: i32) -> (i32, i32, i32) {
    %c0_i32 = arith.constant 0 : i32
    %c0_i32_0 = arith.constant 0 : i32
    %c0_i32_1 = arith.constant 0 : i32
    %c0_i32_2 = arith.constant 0 : i32
    return %c0_i32, %c0_i32_0, %c0_i32_1 : i32, i32, i32
  }
  func.func @transform_10(%arg0: i32) -> (i32, i32, i32) {
    %c0_i32 = arith.constant 0 : i32
    %c0_i32_0 = arith.constant 0 : i32
    %c0_i32_1 = arith.constant 0 : i32
    %c0_i32_2 = arith.constant 0 : i32
    return %c0_i32, %c0_i32_0, %c0_i32_1 : i32, i32, i32
  }
  func.func @transform_11(%arg0: i32) -> (i32, i32, i32) {
    %c0_i32 = arith.constant 0 : i32
    %c0_i32_0 = arith.constant 0 : i32
    %c0_i32_1 = arith.constant 0 : i32
    %c0_i32_2 = arith.constant 0 : i32
    return %c0_i32, %c0_i32_0, %c0_i32_1 : i32, i32, i32
  }
  func.func @transform_12(%arg0: i32) -> (i32, i32, i32) {
    %c0_i32 = arith.constant 0 : i32
    %c0_i32_0 = arith.constant 0 : i32
    %c0_i32_1 = arith.constant 0 : i32
    %c0_i32_2 = arith.constant 0 : i32
    return %c0_i32, %c0_i32_0, %c0_i32_1 : i32, i32, i32
  }
  func.func @transform_13(%arg0: i32) -> (i32, i32, i32) {
    %c0_i32 = arith.constant 0 : i32
    %c0_i32_0 = arith.constant 0 : i32
    %c0_i32_1 = arith.constant 0 : i32
    %c0_i32_2 = arith.constant 0 : i32
    return %c0_i32, %c0_i32_0, %c0_i32_1 : i32, i32, i32
  }
  func.func @transform_14(%arg0: i32) -> (i32, i32, i32) {
    %c0_i32 = arith.constant 0 : i32
    %c0_i32_0 = arith.constant 0 : i32
    %c0_i32_1 = arith.constant 0 : i32
    %c0_i32_2 = arith.constant 0 : i32
    return %c0_i32, %c0_i32_0, %c0_i32_1 : i32, i32, i32
  }
  func.func @transform_15(%arg0: i32) -> (i32, i32, i32) {
    %c0_i32 = arith.constant 0 : i32
    %c0_i32_0 = arith.constant 0 : i32
    %c0_i32_1 = arith.constant 0 : i32
    %c0_i32_2 = arith.constant 0 : i32
    return %c0_i32, %c0_i32_0, %c0_i32_1 : i32, i32, i32
  }
  func.func @transform_16(%arg0: i32) -> (i32, i32, i32) {
    %c0_i32 = arith.constant 0 : i32
    %c0_i32_0 = arith.constant 0 : i32
    %c0_i32_1 = arith.constant 0 : i32
    %c0_i32_2 = arith.constant 0 : i32
    return %c0_i32, %c0_i32_0, %c0_i32_1 : i32, i32, i32
  }
  func.func @transform_17(%arg0: i32) -> (i32, i32) {
    %c0_i32 = arith.constant 0 : i32
    %c0_i32_0 = arith.constant 0 : i32
    %c0_i32_1 = arith.constant 0 : i32
    return %c0_i32, %c0_i32_0 : i32, i32
  }
  func.func @transform_18(%arg0: i32) -> (i32, i32) {
    %c0_i32 = arith.constant 0 : i32
    %c0_i32_0 = arith.constant 0 : i32
    %c0_i32_1 = arith.constant 0 : i32
    return %c0_i32, %c0_i32_0 : i32, i32
  }
  func.func @transform_19(%arg0: i32) -> (i32, i32) {
    %c0_i32 = arith.constant 0 : i32
    %c0_i32_0 = arith.constant 0 : i32
    %c0_i32_1 = arith.constant 0 : i32
    return %c0_i32, %c0_i32_0 : i32, i32
  }
  func.func @transform_20(%arg0: i32) -> (i32, i32) {
    %c0_i32 = arith.constant 0 : i32
    %c0_i32_0 = arith.constant 0 : i32
    %c0_i32_1 = arith.constant 0 : i32
    return %c0_i32, %c0_i32_0 : i32, i32
  }
  func.func @transform_21(%arg0: i32) -> (i32, i32) {
    %c0_i32 = arith.constant 0 : i32
    %c0_i32_0 = arith.constant 0 : i32
    %c0_i32_1 = arith.constant 0 : i32
    return %c0_i32, %c0_i32_0 : i32, i32
  }
  func.func @transform_22(%arg0: i32) -> (i32, i32) {
    %c0_i32 = arith.constant 0 : i32
    %c0_i32_0 = arith.constant 0 : i32
    %c0_i32_1 = arith.constant 0 : i32
    return %c0_i32, %c0_i32_0 : i32, i32
  }
  func.func @transform_23(%arg0: i32) -> (i32, i32) {
    %c0_i32 = arith.constant 0 : i32
    %c0_i32_0 = arith.constant 0 : i32
    %c0_i32_1 = arith.constant 0 : i32
    return %c0_i32, %c0_i32_0 : i32, i32
  }
  func.func @transform_24(%arg0: i32) -> (i32, i32) {
    %c0_i32 = arith.constant 0 : i32
    %c0_i32_0 = arith.constant 0 : i32
    %c0_i32_1 = arith.constant 0 : i32
    return %c0_i32, %c0_i32_0 : i32, i32
  }
  func.func @transform_25(%arg0: i32) -> (i32, i32, i32) {
    %c0_i32 = arith.constant 0 : i32
    %c0_i32_0 = arith.constant 0 : i32
    %c0_i32_1 = arith.constant 0 : i32
    return %arg0, %c0_i32, %c0_i32_0 : i32, i32, i32
  }
}

</mosaic_0001>

<llo_original>
// kernel: pivit_weak_forward.1
$region0: #{pivit_weak_forward.1}
  #allocation0 [shape = 'u32[]', space=smem, size = 0x4, offset = 0x4, fixed_abs, tag = 'smem constant byte address 0x4 - core index']
  #allocation1 [shape = 'u32[144,128]{1,0:T(1,128)}', space=vmem, size = 0x12000, scoped, tag = 'internal scratch']
  #allocation2 [shape = 'f32[1,1]{1,0:T(1,128)S(1)}', space=vmem, size = 0x200, scoped, tag = 'scoped memory for pivit_weak_forward.1']
  %s0 = inlined_call_operand.vmem [shape: f32[2,16,768], index: 0, kind: input, shape index: {}]
  %s1 = inlined_call_operand.vmem [shape: f32[1,768], index: 1, kind: input, shape index: {}]
  %s2 = inlined_call_operand.<no memory space> [shape: f32[1,1], index: 2, kind: input, shape index: {}]
  %s3 = inlined_call_operand.vmem [shape: bf16[768,128], index: 3, kind: input, shape index: {}]
  %s4 = inlined_call_operand.vmem [shape: f32[17,128], index: 4, kind: input, shape index: {}]
  %s5 = inlined_call_operand.vmem [shape: f32[2,1,128], index: 5, kind: input, shape index: {}]
  %s6 = inlined_call_operand.vmem [shape: f32[2,1,128], index: 6, kind: input, shape index: {}]
  %s7 = inlined_call_operand.vmem [shape: bf16[2,128,384], index: 7, kind: input, shape index: {}]
  %s8 = inlined_call_operand.vmem [shape: f32[2,1,384], index: 8, kind: input, shape index: {}]
  %s9 = inlined_call_operand.vmem [shape: bf16[2,128,128], index: 9, kind: input, shape index: {}]
  %s10 = inlined_call_operand.vmem [shape: f32[2,1,128], index: 10, kind: input, shape index: {}]
  %s11 = inlined_call_operand.vmem [shape: f32[2,1,128], index: 11, kind: input, shape index: {}]
  %s12 = inlined_call_operand.vmem [shape: f32[2,1,128], index: 12, kind: input, shape index: {}]
  %s13 = inlined_call_operand.vmem [shape: bf16[2,128,256], index: 13, kind: input, shape index: {}]
  %s14 = inlined_call_operand.vmem [shape: f32[2,1,256], index: 14, kind: input, shape index: {}]
  %s15 = inlined_call_operand.vmem [shape: bf16[2,256,128], index: 15, kind: input, shape index: {}]
  %s16 = inlined_call_operand.vmem [shape: f32[2,1,128], index: 16, kind: input, shape index: {}]
  %s17 = inlined_call_operand.vmem [shape: f32[1,128], index: 17, kind: input, shape index: {}]
  %s18 = inlined_call_operand.vmem [shape: f32[1,128], index: 18, kind: input, shape index: {}]
  %s19 = inlined_call_operand.vmem [shape: bf16[128,64], index: 19, kind: input, shape index: {}]
  %s20 = inlined_call_operand.vmem [shape: f32[1,64], index: 20, kind: input, shape index: {}]
  %s21 = inlined_call_operand.vmem [shape: f32[1,64], index: 21, kind: input, shape index: {}]
  %s22 = inlined_call_operand.vmem [shape: f32[1,64], index: 22, kind: input, shape index: {}]
  %s23 = inlined_call_operand.vmem [shape: bf16[64,16], index: 23, kind: input, shape index: {}]
  %s24 = inlined_call_operand.vmem [shape: f32[1,16], index: 24, kind: input, shape index: {}]
  %s25 = inlined_call_operand.vmem [shape: f32[2,1,128], index: 25, kind: output, shape index: {}]
  %s26 = sld [smem:[#allocation0]]
  $region133: #{pivit_weak_forward.1} parent=0
    _
  %s28 = ssub.s32 1, %s26
  %s29 = scalar_select 0, %s28, %s26
  %v30 = vstv %s2
  %31 = vst [vmem:[#allocation2] sm:$0x1] %v30
  loop: start=0, step=1, limit=4
  $region2: #{pivit_weak_forward.1} parent=0 // loop_pre_header
    _
  $region3: #{pivit_weak_forward.1} parent=0 // loop_header
    %s33 = sphi 0, %s37
    %p34 = scmp.ge.s32.totalorder %s33, 4
    %s43 = sphi 0, %s45
    %s46 = sphi 0, %s43
    %s47 = sphi 0, %s46
    %s63 = sphi 0, %s47
    %s67 = sphi 0, %s67
    %s69 = sphi 0, %s67
    %s70 = sphi 0, %s69
    %s84 = sphi 0, %s70
    %s88 = sphi 0, %s88
    %s90 = sphi 0, %s88
    %s91 = sphi 0, %s90
    %s105 = sphi 0, %s91
    %s109 = sphi 0, %s109
    %s111 = sphi 0, %s109
    %s112 = sphi 0, %s111
    %s126 = sphi 0, %s112
    %s130 = sphi 0, %s130
    %s132 = sphi 0, %s130
    %s133 = sphi 0, %s132
    %s147 = sphi 0, %s133
    %s151 = sphi 0, %s151
    %s153 = sphi 0, %s151
    %s154 = sphi 0, %s153
    %s168 = sphi 0, %s154
    %s172 = sphi 0, %s172
    %s174 = sphi 0, %s172
    %s175 = sphi 0, %s174
    %s189 = sphi 0, %s175
    %s193 = sphi 0, %s193
    %s195 = sphi 0, %s193
    %s196 = sphi 0, %s195
    %s210 = sphi 0, %s196
    %s214 = sphi 0, %s214
    %s216 = sphi 0, %s214
    %s217 = sphi 0, %s216
    %s231 = sphi 0, %s217
    %s235 = sphi 0, %s235
    %s237 = sphi 0, %s235
    %s238 = sphi 0, %s237
    %s252 = sphi 0, %s238
    %s256 = sphi 0, %s256
    %s258 = sphi 0, %s256
    %s259 = sphi 0, %s258
    %s273 = sphi 0, %s259
    %s277 = sphi 0, %s277
    %s279 = sphi 0, %s277
    %s280 = sphi 0, %s279
    %s294 = sphi 0, %s280
    %s298 = sphi 0, %s298
    %s300 = sphi 0, %s298
    %s301 = sphi 0, %s300
    %s315 = sphi 0, %s301
    %s319 = sphi 0, %s319
    %s321 = sphi 0, %s319
    %s322 = sphi 0, %s321
    %s336 = sphi 0, %s322
    %s340 = sphi 0, %s340
    %s342 = sphi 0, %s340
    %s343 = sphi 0, %s342
    %s357 = sphi 0, %s343
    %s361 = sphi 0, %s361
    %s363 = sphi 0, %s361
    %s364 = sphi 0, %s363
    %s378 = sphi 0, %s364
    %s382 = sphi 0, %s382
    %s384 = sphi 0, %s382
    %s385 = sphi 0, %s384
    %s399 = sphi 0, %s385
    %s403 = sphi 0, %s403
    %s405 = sphi 0, %s403
    %s406 = sphi 0, %s405
    %s420 = sphi 0, %s406
    %s424 = sphi 0, %s424
    %s426 = sphi 0, %s424
    %s427 = sphi 0, %s426
    %s441 = sphi 0, %s427
    %s445 = sphi 0, %s445
    %s447 = sphi 0, %s445
    %s448 = sphi 0, %s447
    %s462 = sphi 0, %s448
    %s466 = sphi 0, %s466
    %s468 = sphi 0, %s466
    %s469 = sphi 0, %s468
    %s483 = sphi 0, %s469
    %s487 = sphi 0, %s487
    %s489 = sphi 0, %s487
    %s490 = sphi 0, %s489
    %s504 = sphi 0, %s490
    %s508 = sphi 0, %s508
    %s510 = sphi 0, %s508
    %s511 = sphi 0, %s510
    %s525 = sphi 0, %s511
    %s529 = sphi 0, %s529
    %s531 = sphi 0, %s529
    %s532 = sphi 0, %s531
    %s546 = sphi 0, %s532
    %s550 = sphi 0, %s550
    %s552 = sphi 0, %s550
    %s553 = sphi 0, %s552
    %s567 = sphi 0, %s553
    %s573 = sphi 0, %s575
    %s576 = sphi 0, %s573
    %s577 = sphi 0, %s576
    %s593 = sphi 0, %s577
  $region4: #{pivit_weak_forward.1} parent=0 // loop_header_branch
    %36 = sbr.rel (%p34) target = $region8
  $region5: #{pivit_weak_forward.1} parent=0 // loop_body
    %s38 = ssub.s32 %s33, 1
    %s39 = ssub.s32 %s33, 2
    %s40 = sadd.s32 %s33, 1
    %s41 = ssub.s32 %s33, %s40
    %p42 = scmp.eq.s32.totalorder %s41, 0
    %s44 = sadd.s32 %s43, 1
    %s45 = scalar_select %p42, %s43, %s44
    %p48 = pneg %p42
    %p49 = scmp.eq.s32.totalorder %s33, 1
    %p50 = por %p48, %p49
    %p51 = scmp.ne.s32.totalorder %s43, %s46
    %p52 = scmp.eq.s32.totalorder %s33, 0
    %p53 = por %p51, %p52
    %p54 = scmp.ne.s32.totalorder %s43, %s46
    %p55 = scmp.eq.s32.totalorder %s38, 1
    %p56 = por %p54, %p55
    %p57 = scmp.ne.s32.totalorder %s46, %s47
    %p58 = scmp.eq.s32.totalorder %s38, 0
    %p59 = por %p57, %p58
    %p60 = scmp.ne.s32.totalorder %s46, %s47
    %p61 = scmp.eq.s32.totalorder %s39, 1
    %p62 = por %p60, %p61
    %p64 = scmp.ne.s32.totalorder %s47, %s63
    %p65 = scmp.eq.s32.totalorder %s39, 0
    %p66 = por %p64, %p65
    %s68 = sadd.s32 %s67, 1
    %p71 = scmp.eq.s32.totalorder %s33, 1
    %p72 = scmp.ne.s32.totalorder %s67, %s69
    %p73 = scmp.eq.s32.totalorder %s33, 0
    %p74 = por %p72, %p73
    %p75 = scmp.ne.s32.totalorder %s67, %s69
    %p76 = scmp.eq.s32.totalorder %s38, 1
    %p77 = por %p75, %p76
    %p78 = scmp.ne.s32.totalorder %s69, %s70
    %p79 = scmp.eq.s32.totalorder %s38, 0
    %p80 = por %p78, %p79
    %p81 = scmp.ne.s32.totalorder %s69, %s70
    %p82 = scmp.eq.s32.totalorder %s39, 1
    %p83 = por %p81, %p82
    %p85 = scmp.ne.s32.totalorder %s70, %s84
    %p86 = scmp.eq.s32.totalorder %s39, 0
    %p87 = por %p85, %p86
    %s89 = sadd.s32 %s88, 1
    %p92 = scmp.eq.s32.totalorder %s33, 1
    %p93 = scmp.ne.s32.totalorder %s88, %s90
    %p94 = scmp.eq.s32.totalorder %s33, 0
    %p95 = por %p93, %p94
    %p96 = scmp.ne.s32.totalorder %s88, %s90
    %p97 = scmp.eq.s32.totalorder %s38, 1
    %p98 = por %p96, %p97
    %p99 = scmp.ne.s32.totalorder %s90, %s91
    %p100 = scmp.eq.s32.totalorder %s38, 0
    %p101 = por %p99, %p100
    %p102 = scmp.ne.s32.totalorder %s90, %s91
    %p103 = scmp.eq.s32.totalorder %s39, 1
    %p104 = por %p102, %p103
    %p106 = scmp.ne.s32.totalorder %s91, %s105
    %p107 = scmp.eq.s32.totalorder %s39, 0
    %p108 = por %p106, %p107
    %s110 = sadd.s32 %s109, 1
    %p113 = scmp.eq.s32.totalorder %s33, 1
    %p114 = scmp.ne.s32.totalorder %s109, %s111
    %p115 = scmp.eq.s32.totalorder %s33, 0
    %p116 = por %p114, %p115
    %p117 = scmp.ne.s32.totalorder %s109, %s111
    %p118 = scmp.eq.s32.totalorder %s38, 1
    %p119 = por %p117, %p118
    %p120 = scmp.ne.s32.totalorder %s111, %s112
    %p121 = scmp.eq.s32.totalorder %s38, 0
    %p122 = por %p120, %p121
    %p123 = scmp.ne.s32.totalorder %s111, %s112
    %p124 = scmp.eq.s32.totalorder %s39, 1
    %p125 = por %p123, %p124
    %p127 = scmp.ne.s32.totalorder %s112, %s126
    %p128 = scmp.eq.s32.totalorder %s39, 0
    %p129 = por %p127, %p128
    %s131 = sadd.s32 %s130, 1
    %p134 = scmp.eq.s32.totalorder %s33, 1
    %p135 = scmp.ne.s32.totalorder %s130, %s132
    %p136 = scmp.eq.s32.totalorder %s33, 0
    %p137 = por %p135, %p136
    %p138 = scmp.ne.s32.totalorder %s130, %s132
    %p139 = scmp.eq.s32.totalorder %s38, 1
    %p140 = por %p138, %p139
    %p141 = scmp.ne.s32.totalorder %s132, %s133
    %p142 = scmp.eq.s32.totalorder %s38, 0
    %p143 = por %p141, %p142
    %p144 = scmp.ne.s32.totalorder %s132, %s133
    %p145 = scmp.eq.s32.totalorder %s39, 1
    %p146 = por %p144, %p145
    %p148 = scmp.ne.s32.totalorder %s133, %s147
    %p149 = scmp.eq.s32.totalorder %s39, 0
    %p150 = por %p148, %p149
    %s152 = sadd.s32 %s151, 1
    %p155 = scmp.eq.s32.totalorder %s33, 1
    %p156 = scmp.ne.s32.totalorder %s151, %s153
    %p157 = scmp.eq.s32.totalorder %s33, 0
    %p158 = por %p156, %p157
    %p159 = scmp.ne.s32.totalorder %s151, %s153
    %p160 = scmp.eq.s32.totalorder %s38, 1
    %p161 = por %p159, %p160
    %p162 = scmp.ne.s32.totalorder %s153, %s154
    %p163 = scmp.eq.s32.totalorder %s38, 0
    %p164 = por %p162, %p163
    %p165 = scmp.ne.s32.totalorder %s153, %s154
    %p166 = scmp.eq.s32.totalorder %s39, 1
    %p167 = por %p165, %p166
    %p169 = scmp.ne.s32.totalorder %s154, %s168
    %p170 = scmp.eq.s32.totalorder %s39, 0
    %p171 = por %p169, %p170
    %s173 = sadd.s32 %s172, 1
    %p176 = scmp.eq.s32.totalorder %s33, 1
    %p177 = scmp.ne.s32.totalorder %s172, %s174
    %p178 = scmp.eq.s32.totalorder %s33, 0
    %p179 = por %p177, %p178
    %p180 = scmp.ne.s32.totalorder %s172, %s174
    %p181 = scmp.eq.s32.totalorder %s38, 1
    %p182 = por %p180, %p181
    %p183 = scmp.ne.s32.totalorder %s174, %s175
    %p184 = scmp.eq.s32.totalorder %s38, 0
    %p185 = por %p183, %p184
    %p186 = scmp.ne.s32.totalorder %s174, %s175
    %p187 = scmp.eq.s32.totalorder %s39, 1
    %p188 = por %p186, %p187
    %p190 = scmp.ne.s32.totalorder %s175, %s189
    %p191 = scmp.eq.s32.totalorder %s39, 0
    %p192 = por %p190, %p191
    %s194 = sadd.s32 %s193, 1
    %p197 = scmp.eq.s32.totalorder %s33, 1
    %p198 = scmp.ne.s32.totalorder %s193, %s195
    %p199 = scmp.eq.s32.totalorder %s33, 0
    %p200 = por %p198, %p199
    %p201 = scmp.ne.s32.totalorder %s193, %s195
    %p202 = scmp.eq.s32.totalorder %s38, 1
    %p203 = por %p201, %p202
    %p204 = scmp.ne.s32.totalorder %s195, %s196
    %p205 = scmp.eq.s32.totalorder %s38, 0
    %p206 = por %p204, %p205
    %p207 = scmp.ne.s32.totalorder %s195, %s196
    %p208 = scmp.eq.s32.totalorder %s39, 1
    %p209 = por %p207, %p208
    %p211 = scmp.ne.s32.totalorder %s196, %s210
    %p212 = scmp.eq.s32.totalorder %s39, 0
    %p213 = por %p211, %p212
    %s215 = sadd.s32 %s214, 1
    %p218 = scmp.eq.s32.totalorder %s33, 1
    %p219 = scmp.ne.s32.totalorder %s214, %s216
    %p220 = scmp.eq.s32.totalorder %s33, 0
    %p221 = por %p219, %p220
    %p222 = scmp.ne.s32.totalorder %s214, %s216
    %p223 = scmp.eq.s32.totalorder %s38, 1
    %p224 = por %p222, %p223
    %p225 = scmp.ne.s32.totalorder %s216, %s217
    %p226 = scmp.eq.s32.totalorder %s38, 0
    %p227 = por %p225, %p226
    %p228 = scmp.ne.s32.totalorder %s216, %s217
    %p229 = scmp.eq.s32.totalorder %s39, 1
    %p230 = por %p228, %p229
    %p232 = scmp.ne.s32.totalorder %s217, %s231
    %p233 = scmp.eq.s32.totalorder %s39, 0
    %p234 = por %p232, %p233
    %s236 = sadd.s32 %s235, 1
    %p239 = scmp.eq.s32.totalorder %s33, 1
    %p240 = scmp.ne.s32.totalorder %s235, %s237
    %p241 = scmp.eq.s32.totalorder %s33, 0
    %p242 = por %p240, %p241
    %p243 = scmp.ne.s32.totalorder %s235, %s237
    %p244 = scmp.eq.s32.totalorder %s38, 1
    %p245 = por %p243, %p244
    %p246 = scmp.ne.s32.totalorder %s237, %s238
    %p247 = scmp.eq.s32.totalorder %s38, 0
    %p248 = por %p246, %p247
    %p249 = scmp.ne.s32.totalorder %s237, %s238
    %p250 = scmp.eq.s32.totalorder %s39, 1
    %p251 = por %p249, %p250
    %p253 = scmp.ne.s32.totalorder %s238, %s252
    %p254 = scmp.eq.s32.totalorder %s39, 0
    %p255 = por %p253, %p254
    %s257 = sadd.s32 %s256, 1
    %p260 = scmp.eq.s32.totalorder %s33, 1
    %p261 = scmp.ne.s32.totalorder %s256, %s258
    %p262 = scmp.eq.s32.totalorder %s33, 0
    %p263 = por %p261, %p262
    %p264 = scmp.ne.s32.totalorder %s256, %s258
    %p265 = scmp.eq.s32.totalorder %s38, 1
    %p266 = por %p264, %p265
    %p267 = scmp.ne.s32.totalorder %s258, %s259
    %p268 = scmp.eq.s32.totalorder %s38, 0
    %p269 = por %p267, %p268
    %p270 = scmp.ne.s32.totalorder %s258, %s259
    %p271 = scmp.eq.s32.totalorder %s39, 1
    %p272 = por %p270, %p271
    %p274 = scmp.ne.s32.totalorder %s259, %s273
    %p275 = scmp.eq.s32.totalorder %s39, 0
    %p276 = por %p274, %p275
    %s278 = sadd.s32 %s277, 1
    %p281 = scmp.eq.s32.totalorder %s33, 1
    %p282 = scmp.ne.s32.totalorder %s277, %s279
    %p283 = scmp.eq.s32.totalorder %s33, 0
    %p284 = por %p282, %p283
    %p285 = scmp.ne.s32.totalorder %s277, %s279
    %p286 = scmp.eq.s32.totalorder %s38, 1
    %p287 = por %p285, %p286
    %p288 = scmp.ne.s32.totalorder %s279, %s280
    %p289 = scmp.eq.s32.totalorder %s38, 0
    %p290 = por %p288, %p289
    %p291 = scmp.ne.s32.totalorder %s279, %s280
    %p292 = scmp.eq.s32.totalorder %s39, 1
    %p293 = por %p291, %p292
    %p295 = scmp.ne.s32.totalorder %s280, %s294
    %p296 = scmp.eq.s32.totalorder %s39, 0
    %p297 = por %p295, %p296
    %s299 = sadd.s32 %s298, 1
    %p302 = scmp.eq.s32.totalorder %s33, 1
    %p303 = scmp.ne.s32.totalorder %s298, %s300
    %p304 = scmp.eq.s32.totalorder %s33, 0
    %p305 = por %p303, %p304
    %p306 = scmp.ne.s32.totalorder %s298, %s300
    %p307 = scmp.eq.s32.totalorder %s38, 1
    %p308 = por %p306, %p307
    %p309 = scmp.ne.s32.totalorder %s300, %s301
    %p310 = scmp.eq.s32.totalorder %s38, 0
    %p311 = por %p309, %p310
    %p312 = scmp.ne.s32.totalorder %s300, %s301
    %p313 = scmp.eq.s32.totalorder %s39, 1
    %p314 = por %p312, %p313
    %p316 = scmp.ne.s32.totalorder %s301, %s315
    %p317 = scmp.eq.s32.totalorder %s39, 0
    %p318 = por %p316, %p317
    %s320 = sadd.s32 %s319, 1
    %p323 = scmp.eq.s32.totalorder %s33, 1
    %p324 = scmp.ne.s32.totalorder %s319, %s321
    %p325 = scmp.eq.s32.totalorder %s33, 0
    %p326 = por %p324, %p325
    %p327 = scmp.ne.s32.totalorder %s319, %s321
    %p328 = scmp.eq.s32.totalorder %s38, 1
    %p329 = por %p327, %p328
    %p330 = scmp.ne.s32.totalorder %s321, %s322
    %p331 = scmp.eq.s32.totalorder %s38, 0
    %p332 = por %p330, %p331
    %p333 = scmp.ne.s32.totalorder %s321, %s322
    %p334 = scmp.eq.s32.totalorder %s39, 1
    %p335 = por %p333, %p334
    %p337 = scmp.ne.s32.totalorder %s322, %s336
    %p338 = scmp.eq.s32.totalorder %s39, 0
    %p339 = por %p337, %p338
    %s341 = sadd.s32 %s340, 1
    %p344 = scmp.eq.s32.totalorder %s33, 1
    %p345 = scmp.ne.s32.totalorder %s340, %s342
    %p346 = scmp.eq.s32.totalorder %s33, 0
    %p347 = por %p345, %p346
    %p348 = scmp.ne.s32.totalorder %s340, %s342
    %p349 = scmp.eq.s32.totalorder %s38, 1
    %p350 = por %p348, %p349
    %p351 = scmp.ne.s32.totalorder %s342, %s343
    %p352 = scmp.eq.s32.totalorder %s38, 0
    %p353 = por %p351, %p352
    %p354 = scmp.ne.s32.totalorder %s342, %s343
    %p355 = scmp.eq.s32.totalorder %s39, 1
    %p356 = por %p354, %p355
    %p358 = scmp.ne.s32.totalorder %s343, %s357
    %p359 = scmp.eq.s32.totalorder %s39, 0
    %p360 = por %p358, %p359
    %s362 = sadd.s32 %s361, 1
    %p365 = scmp.eq.s32.totalorder %s33, 1
    %p366 = scmp.ne.s32.totalorder %s361, %s363
    %p367 = scmp.eq.s32.totalorder %s33, 0
    %p368 = por %p366, %p367
    %p369 = scmp.ne.s32.totalorder %s361, %s363
    %p370 = scmp.eq.s32.totalorder %s38, 1
    %p371 = por %p369, %p370
    %p372 = scmp.ne.s32.totalorder %s363, %s364
    %p373 = scmp.eq.s32.totalorder %s38, 0
    %p374 = por %p372, %p373
    %p375 = scmp.ne.s32.totalorder %s363, %s364
    %p376 = scmp.eq.s32.totalorder %s39, 1
    %p377 = por %p375, %p376
    %p379 = scmp.ne.s32.totalorder %s364, %s378
    %p380 = scmp.eq.s32.totalorder %s39, 0
    %p381 = por %p379, %p380
    %s383 = sadd.s32 %s382, 1
    %p386 = scmp.eq.s32.totalorder %s33, 1
    %p387 = scmp.ne.s32.totalorder %s382, %s384
    %p388 = scmp.eq.s32.totalorder %s33, 0
    %p389 = por %p387, %p388
    %p390 = scmp.ne.s32.totalorder %s382, %s384
    %p391 = scmp.eq.s32.totalorder %s38, 1
    %p392 = por %p390, %p391
    %p393 = scmp.ne.s32.totalorder %s384, %s385
    %p394 = scmp.eq.s32.totalorder %s38, 0
    %p395 = por %p393, %p394
    %p396 = scmp.ne.s32.totalorder %s384, %s385
    %p397 = scmp.eq.s32.totalorder %s39, 1
    %p398 = por %p396, %p397
    %p400 = scmp.ne.s32.totalorder %s385, %s399
    %p401 = scmp.eq.s32.totalorder %s39, 0
    %p402 = por %p400, %p401
    %s404 = sadd.s32 %s403, 1
    %p407 = scmp.eq.s32.totalorder %s33, 1
    %p408 = scmp.ne.s32.totalorder %s403, %s405
    %p409 = scmp.eq.s32.totalorder %s33, 0
    %p410 = por %p408, %p409
    %p411 = scmp.ne.s32.totalorder %s403, %s405
    %p412 = scmp.eq.s32.totalorder %s38, 1
    %p413 = por %p411, %p412
    %p414 = scmp.ne.s32.totalorder %s405, %s406
    %p415 = scmp.eq.s32.totalorder %s38, 0
    %p416 = por %p414, %p415
    %p417 = scmp.ne.s32.totalorder %s405, %s406
    %p418 = scmp.eq.s32.totalorder %s39, 1
    %p419 = por %p417, %p418
    %p421 = scmp.ne.s32.totalorder %s406, %s420
    %p422 = scmp.eq.s32.totalorder %s39, 0
    %p423 = por %p421, %p422
    %s425 = sadd.s32 %s424, 1
    %p428 = scmp.eq.s32.totalorder %s33, 1
    %p429 = scmp.ne.s32.totalorder %s424, %s426
    %p430 = scmp.eq.s32.totalorder %s33, 0
    %p431 = por %p429, %p430
    %p432 = scmp.ne.s32.totalorder %s424, %s426
    %p433 = scmp.eq.s32.totalorder %s38, 1
    %p434 = por %p432, %p433
    %p435 = scmp.ne.s32.totalorder %s426, %s427
    %p436 = scmp.eq.s32.totalorder %s38, 0
    %p437 = por %p435, %p436
    %p438 = scmp.ne.s32.totalorder %s426, %s427
    %p439 = scmp.eq.s32.totalorder %s39, 1
    %p440 = por %p438, %p439
    %p442 = scmp.ne.s32.totalorder %s427, %s441
    %p443 = scmp.eq.s32.totalorder %s39, 0
    %p444 = por %p442, %p443
    %s446 = sadd.s32 %s445, 1
    %p449 = scmp.eq.s32.totalorder %s33, 1
    %p450 = scmp.ne.s32.totalorder %s445, %s447
    %p451 = scmp.eq.s32.totalorder %s33, 0
    %p452 = por %p450, %p451
    %p453 = scmp.ne.s32.totalorder %s445, %s447
    %p454 = scmp.eq.s32.totalorder %s38, 1
    %p455 = por %p453, %p454
    %p456 = scmp.ne.s32.totalorder %s447, %s448
    %p457 = scmp.eq.s32.totalorder %s38, 0
    %p458 = por %p456, %p457
    %p459 = scmp.ne.s32.totalorder %s447, %s448
    %p460 = scmp.eq.s32.totalorder %s39, 1
    %p461 = por %p459, %p460
    %p463 = scmp.ne.s32.totalorder %s448, %s462
    %p464 = scmp.eq.s32.totalorder %s39, 0
    %p465 = por %p463, %p464
    %s467 = sadd.s32 %s466, 1
    %p470 = scmp.eq.s32.totalorder %s33, 1
    %p471 = scmp.ne.s32.totalorder %s466, %s468
    %p472 = scmp.eq.s32.totalorder %s33, 0
    %p473 = por %p471, %p472
    %p474 = scmp.ne.s32.totalorder %s466, %s468
    %p475 = scmp.eq.s32.totalorder %s38, 1
    %p476 = por %p474, %p475
    %p477 = scmp.ne.s32.totalorder %s468, %s469
    %p478 = scmp.eq.s32.totalorder %s38, 0
    %p479 = por %p477, %p478
    %p480 = scmp.ne.s32.totalorder %s468, %s469
    %p481 = scmp.eq.s32.totalorder %s39, 1
    %p482 = por %p480, %p481
    %p484 = scmp.ne.s32.totalorder %s469, %s483
    %p485 = scmp.eq.s32.totalorder %s39, 0
    %p486 = por %p484, %p485
    %s488 = sadd.s32 %s487, 1
    %p491 = scmp.eq.s32.totalorder %s33, 1
    %p492 = scmp.ne.s32.totalorder %s487, %s489
    %p493 = scmp.eq.s32.totalorder %s33, 0
    %p494 = por %p492, %p493
    %p495 = scmp.ne.s32.totalorder %s487, %s489
    %p496 = scmp.eq.s32.totalorder %s38, 1
    %p497 = por %p495, %p496
    %p498 = scmp.ne.s32.totalorder %s489, %s490
    %p499 = scmp.eq.s32.totalorder %s38, 0
    %p500 = por %p498, %p499
    %p501 = scmp.ne.s32.totalorder %s489, %s490
    %p502 = scmp.eq.s32.totalorder %s39, 1
    %p503 = por %p501, %p502
    %p505 = scmp.ne.s32.totalorder %s490, %s504
    %p506 = scmp.eq.s32.totalorder %s39, 0
    %p507 = por %p505, %p506
    %s509 = sadd.s32 %s508, 1
    %p512 = scmp.eq.s32.totalorder %s33, 1
    %p513 = scmp.ne.s32.totalorder %s508, %s510
    %p514 = scmp.eq.s32.totalorder %s33, 0
    %p515 = por %p513, %p514
    %p516 = scmp.ne.s32.totalorder %s508, %s510
    %p517 = scmp.eq.s32.totalorder %s38, 1
    %p518 = por %p516, %p517
    %p519 = scmp.ne.s32.totalorder %s510, %s511
    %p520 = scmp.eq.s32.totalorder %s38, 0
    %p521 = por %p519, %p520
    %p522 = scmp.ne.s32.totalorder %s510, %s511
    %p523 = scmp.eq.s32.totalorder %s39, 1
    %p524 = por %p522, %p523
    %p526 = scmp.ne.s32.totalorder %s511, %s525
    %p527 = scmp.eq.s32.totalorder %s39, 0
    %p528 = por %p526, %p527
    %s530 = sadd.s32 %s529, 1
    %p533 = scmp.eq.s32.totalorder %s33, 1
    %p534 = scmp.ne.s32.totalorder %s529, %s531
    %p535 = scmp.eq.s32.totalorder %s33, 0
    %p536 = por %p534, %p535
    %p537 = scmp.ne.s32.totalorder %s529, %s531
    %p538 = scmp.eq.s32.totalorder %s38, 1
    %p539 = por %p537, %p538
    %p540 = scmp.ne.s32.totalorder %s531, %s532
    %p541 = scmp.eq.s32.totalorder %s38, 0
    %p542 = por %p540, %p541
    %p543 = scmp.ne.s32.totalorder %s531, %s532
    %p544 = scmp.eq.s32.totalorder %s39, 1
    %p545 = por %p543, %p544
    %p547 = scmp.ne.s32.totalorder %s532, %s546
    %p548 = scmp.eq.s32.totalorder %s39, 0
    %p549 = por %p547, %p548
    %s551 = sadd.s32 %s550, 1
    %p554 = scmp.eq.s32.totalorder %s33, 1
    %p555 = scmp.ne.s32.totalorder %s550, %s552
    %p556 = scmp.eq.s32.totalorder %s33, 0
    %p557 = por %p555, %p556
    %p558 = scmp.ne.s32.totalorder %s550, %s552
    %p559 = scmp.eq.s32.totalorder %s38, 1
    %p560 = por %p558, %p559
    %p561 = scmp.ne.s32.totalorder %s552, %s553
    %p562 = scmp.eq.s32.totalorder %s38, 0
    %p563 = por %p561, %p562
    %p564 = scmp.ne.s32.totalorder %s552, %s553
    %p565 = scmp.eq.s32.totalorder %s39, 1
    %p566 = por %p564, %p565
    %p568 = scmp.ne.s32.totalorder %s553, %s567
    %p569 = scmp.eq.s32.totalorder %s39, 0
    %p570 = por %p568, %p569
    %s571 = ssub.s32 %s33, %s40
    %p572 = scmp.eq.s32.totalorder %s571, 0
    %s574 = sadd.s32 %s573, 1
    %s575 = scalar_select %p572, %s573, %s574
    %p578 = pneg %p572
    %p579 = scmp.eq.s32.totalorder %s33, 1
    %p580 = por %p578, %p579
    %p581 = scmp.ne.s32.totalorder %s573, %s576
    %p582 = scmp.eq.s32.totalorder %s33, 0
    %p583 = por %p581, %p582
    %p584 = scmp.ne.s32.totalorder %s573, %s576
    %p585 = scmp.eq.s32.totalorder %s38, 1
    %p586 = por %p584, %p585
    %p587 = scmp.ne.s32.totalorder %s576, %s577
    %p588 = scmp.eq.s32.totalorder %s38, 0
    %p589 = por %p587, %p588
    %p590 = scmp.ne.s32.totalorder %s576, %s577
    %p591 = scmp.eq.s32.totalorder %s39, 1
    %p592 = por %p590, %p591
    %p594 = scmp.ne.s32.totalorder %s577, %s593
    %p595 = scmp.eq.s32.totalorder %s39, 0
    %p596 = por %p594, %p595
    %p597 = scmp.le.s32.totalorder 1, %s33
    %p598 = scmp.lt.s32.totalorder %s33, 3
    %p599 = pnand %p597, %p598
    %p600 = pneg %p599
    // Predicated region
    $region9: #{pivit_weak_forward.1} parent=5 // pred_check
      _
    $region10: #{pivit_weak_forward.1} parent=5 // pred_check_branch
      %602 = sbr.rel (%p599) target = $region12
    $region11: #{pivit_weak_forward.1} parent=5 // pred_region
      %s603 = ssub.s32 %s33, 1
      // Predicated region
      $region13: #{pivit_weak_forward.1} parent=11 // pred_check
        %p604 = pneg %p80
      $region14: #{pivit_weak_forward.1} parent=11 // pred_check_branch
        %606 = sbr.rel (%p604) target = $region16
      $region15: #{pivit_weak_forward.1} parent=11 // pred_region
        _
      $region16: #{pivit_weak_forward.1} parent=11 // pred_fallthru
        _
      // Predicated region
      $region17: #{pivit_weak_forward.1} parent=11 // pred_check
        %p607 = pneg %p101
      $region18: #{pivit_weak_forward.1} parent=11 // pred_check_branch
        %609 = sbr.rel (%p607) target = $region20
      $region19: #{pivit_weak_forward.1} parent=11 // pred_region
        _
      $region20: #{pivit_weak_forward.1} parent=11 // pred_fallthru
        _
      // Predicated region
      $region21: #{pivit_weak_forward.1} parent=11 // pred_check
        %p610 = pneg %p122
      $region22: #{pivit_weak_forward.1} parent=11 // pred_check_branch
        %612 = sbr.rel (%p610) target = $region24
      $region23: #{pivit_weak_forward.1} parent=11 // pred_region
        _
      $region24: #{pivit_weak_forward.1} parent=11 // pred_fallthru
        _
      // Predicated region
      $region25: #{pivit_weak_forward.1} parent=11 // pred_check
        %p613 = pneg %p143
      $region26: #{pivit_weak_forward.1} parent=11 // pred_check_branch
        %615 = sbr.rel (%p613) target = $region28
      $region27: #{pivit_weak_forward.1} parent=11 // pred_region
        _
      $region28: #{pivit_weak_forward.1} parent=11 // pred_fallthru
        _
      // Predicated region
      $region29: #{pivit_weak_forward.1} parent=11 // pred_check
        %p616 = pneg %p164
      $region30: #{pivit_weak_forward.1} parent=11 // pred_check_branch
        %618 = sbr.rel (%p616) target = $region32
      $region31: #{pivit_weak_forward.1} parent=11 // pred_region
        _
      $region32: #{pivit_weak_forward.1} parent=11 // pred_fallthru
        _
      // Predicated region
      $region33: #{pivit_weak_forward.1} parent=11 // pred_check
        %p619 = pneg %p185
      $region34: #{pivit_weak_forward.1} parent=11 // pred_check_branch
        %621 = sbr.rel (%p619) target = $region36
      $region35: #{pivit_weak_forward.1} parent=11 // pred_region
        _
      $region36: #{pivit_weak_forward.1} parent=11 // pred_fallthru
        _
      // Predicated region
      $region37: #{pivit_weak_forward.1} parent=11 // pred_check
        %p622 = pneg %p206
      $region38: #{pivit_weak_forward.1} parent=11 // pred_check_branch
        %624 = sbr.rel (%p622) target = $region40
      $region39: #{pivit_weak_forward.1} parent=11 // pred_region
        _
      $region40: #{pivit_weak_forward.1} parent=11 // pred_fallthru
        _
      // Predicated region
      $region41: #{pivit_weak_forward.1} parent=11 // pred_check
        %p625 = pneg %p227
      $region42: #{pivit_weak_forward.1} parent=11 // pred_check_branch
        %627 = sbr.rel (%p625) target = $region44
      $region43: #{pivit_weak_forward.1} parent=11 // pred_region
        _
      $region44: #{pivit_weak_forward.1} parent=11 // pred_fallthru
        _
      // Predicated region
      $region45: #{pivit_weak_forward.1} parent=11 // pred_check
        %p628 = pneg %p248
      $region46: #{pivit_weak_forward.1} parent=11 // pred_check_branch
        %630 = sbr.rel (%p628) target = $region48
      $region47: #{pivit_weak_forward.1} parent=11 // pred_region
        _
      $region48: #{pivit_weak_forward.1} parent=11 // pred_fallthru
        _
      // Predicated region
      $region49: #{pivit_weak_forward.1} parent=11 // pred_check
        %p631 = pneg %p269
      $region50: #{pivit_weak_forward.1} parent=11 // pred_check_branch
        %633 = sbr.rel (%p631) target = $region52
      $region51: #{pivit_weak_forward.1} parent=11 // pred_region
        _
      $region52: #{pivit_weak_forward.1} parent=11 // pred_fallthru
        _
      // Predicated region
      $region53: #{pivit_weak_forward.1} parent=11 // pred_check
        %p634 = pneg %p290
      $region54: #{pivit_weak_forward.1} parent=11 // pred_check_branch
        %636 = sbr.rel (%p634) target = $region56
      $region55: #{pivit_weak_forward.1} parent=11 // pred_region
        _
      $region56: #{pivit_weak_forward.1} parent=11 // pred_fallthru
        _
      // Predicated region
      $region57: #{pivit_weak_forward.1} parent=11 // pred_check
        %p637 = pneg %p311
      $region58: #{pivit_weak_forward.1} parent=11 // pred_check_branch
        %639 = sbr.rel (%p637) target = $region60
      $region59: #{pivit_weak_forward.1} parent=11 // pred_region
        _
      $region60: #{pivit_weak_forward.1} parent=11 // pred_fallthru
        _
      // Predicated region
      $region61: #{pivit_weak_forward.1} parent=11 // pred_check
        %p640 = pneg %p332
      $region62: #{pivit_weak_forward.1} parent=11 // pred_check_branch
        %642 = sbr.rel (%p640) target = $region64
      $region63: #{pivit_weak_forward.1} parent=11 // pred_region
        _
      $region64: #{pivit_weak_forward.1} parent=11 // pred_fallthru
        _
      // Predicated region
      $region65: #{pivit_weak_forward.1} parent=11 // pred_check
        %p643 = pneg %p353
      $region66: #{pivit_weak_forward.1} parent=11 // pred_check_branch
        %645 = sbr.rel (%p643) target = $region68
      $region67: #{pivit_weak_forward.1} parent=11 // pred_region
        _
      $region68: #{pivit_weak_forward.1} parent=11 // pred_fallthru
        _
      // Predicated region
      $region69: #{pivit_weak_forward.1} parent=11 // pred_check
        %p646 = pneg %p374
      $region70: #{pivit_weak_forward.1} parent=11 // pred_check_branch
        %648 = sbr.rel (%p646) target = $region72
      $region71: #{pivit_weak_forward.1} parent=11 // pred_region
        _
      $region72: #{pivit_weak_forward.1} parent=11 // pred_fallthru
        _
      // Predicated region
      $region73: #{pivit_weak_forward.1} parent=11 // pred_check
        %p649 = pneg %p395
      $region74: #{pivit_weak_forward.1} parent=11 // pred_check_branch
        %651 = sbr.rel (%p649) target = $region76
      $region75: #{pivit_weak_forward.1} parent=11 // pred_region
        _
      $region76: #{pivit_weak_forward.1} parent=11 // pred_fallthru
        _
      // Predicated region
      $region77: #{pivit_weak_forward.1} parent=11 // pred_check
        %p652 = pneg %p416
      $region78: #{pivit_weak_forward.1} parent=11 // pred_check_branch
        %654 = sbr.rel (%p652) target = $region80
      $region79: #{pivit_weak_forward.1} parent=11 // pred_region
        _
      $region80: #{pivit_weak_forward.1} parent=11 // pred_fallthru
        _
      // Predicated region
      $region81: #{pivit_weak_forward.1} parent=11 // pred_check
        %p655 = pneg %p437
      $region82: #{pivit_weak_forward.1} parent=11 // pred_check_branch
        %657 = sbr.rel (%p655) target = $region84
      $region83: #{pivit_weak_forward.1} parent=11 // pred_region
        _
      $region84: #{pivit_weak_forward.1} parent=11 // pred_fallthru
        _
      // Predicated region
      $region85: #{pivit_weak_forward.1} parent=11 // pred_check
        %p658 = pneg %p458
      $region86: #{pivit_weak_forward.1} parent=11 // pred_check_branch
        %660 = sbr.rel (%p658) target = $region88
      $region87: #{pivit_weak_forward.1} parent=11 // pred_region
        _
      $region88: #{pivit_weak_forward.1} parent=11 // pred_fallthru
        _
      // Predicated region
      $region89: #{pivit_weak_forward.1} parent=11 // pred_check
        %p661 = pneg %p479
      $region90: #{pivit_weak_forward.1} parent=11 // pred_check_branch
        %663 = sbr.rel (%p661) target = $region92
      $region91: #{pivit_weak_forward.1} parent=11 // pred_region
        _
      $region92: #{pivit_weak_forward.1} parent=11 // pred_fallthru
        _
      // Predicated region
      $region93: #{pivit_weak_forward.1} parent=11 // pred_check
        %p664 = pneg %p500
      $region94: #{pivit_weak_forward.1} parent=11 // pred_check_branch
        %666 = sbr.rel (%p664) target = $region96
      $region95: #{pivit_weak_forward.1} parent=11 // pred_region
        _
      $region96: #{pivit_weak_forward.1} parent=11 // pred_fallthru
        _
      // Predicated region
      $region97: #{pivit_weak_forward.1} parent=11 // pred_check
        %p667 = pneg %p521
      $region98: #{pivit_weak_forward.1} parent=11 // pred_check_branch
        %669 = sbr.rel (%p667) target = $region100
      $region99: #{pivit_weak_forward.1} parent=11 // pred_region
        _
      $region100: #{pivit_weak_forward.1} parent=11 // pred_fallthru
        _
      // Predicated region
      $region101: #{pivit_weak_forward.1} parent=11 // pred_check
        %p670 = pneg %p542
      $region102: #{pivit_weak_forward.1} parent=11 // pred_check_branch
        %672 = sbr.rel (%p670) target = $region104
      $region103: #{pivit_weak_forward.1} parent=11 // pred_region
        _
      $region104: #{pivit_weak_forward.1} parent=11 // pred_fallthru
        _
      // Predicated region
      $region105: #{pivit_weak_forward.1} parent=11 // pred_check
        %p673 = pneg %p563
      $region106: #{pivit_weak_forward.1} parent=11 // pred_check_branch
        %675 = sbr.rel (%p673) target = $region108
      $region107: #{pivit_weak_forward.1} parent=11 // pred_region
        _
      $region108: #{pivit_weak_forward.1} parent=11 // pred_fallthru
        _
    $region12: #{pivit_weak_forward.1} parent=5 // pred_fallthru
      _
    %p676 = scmp.lt.s32.totalorder %s33, 2
    // Predicated region
    $region109: #{pivit_weak_forward.1} parent=5 // pred_check
      %p677 = pneg %p676
    $region110: #{pivit_weak_forward.1} parent=5 // pred_check_branch
      %679 = sbr.rel (%p677) target = $region112
    $region111: #{pivit_weak_forward.1} parent=5 // pred_region
      // Predicated region
      $region113: #{pivit_weak_forward.1} parent=111 // pred_check
        %p680 = pneg %p53
      $region114: #{pivit_weak_forward.1} parent=111 // pred_check_branch
        %682 = sbr.rel (%p680) target = $region116
      $region115: #{pivit_weak_forward.1} parent=111 // pred_region
        %p683 = scmp.lt.s32.totalorder %s33, 1
        %s684 = scalar_select %p683, %s33, 1
        %s685 = smul.addr %s684, 12
        %s686 = smul.addr %s685, 8
        %s687 = scalar_lea.vmem %s0, %s686
      $region116: #{pivit_weak_forward.1} parent=111 // pred_fallthru
        _
    $region112: #{pivit_weak_forward.1} parent=5 // pred_fallthru
      _
    %p688 = scmp.le.s32.totalorder 1, %s33
    %p689 = scmp.lt.s32.totalorder %s33, 3
    %p690 = pnand %p688, %p689
    %p691 = pneg %p690
    // Predicated region
    $region117: #{pivit_weak_forward.1} parent=5 // pred_check
      _
    $region118: #{pivit_weak_forward.1} parent=5 // pred_check_branch
      %693 = sbr.rel (%p690) target = $region120
    $region119: #{pivit_weak_forward.1} parent=5 // pred_region
      %s694 = ssub.s32 %s33, 1
      %p695 = scmp.lt.s32.totalorder %s38, 1
      %s696 = scalar_select %p695, %s38, 1
      %s697 = smul.addr %s696, 12
      %s698 = smul.addr %s697, 8
      %s699 = scalar_lea.vmem %s0, %s698
      %p700 = pneg %p59
      %p701 = pneg %p56
      %p702 = pneg %p80
      %p703 = pneg %p77
      %p704 = pneg %p101
      %p705 = pneg %p98
      %p706 = pneg %p122
      %p707 = pneg %p119
      %p708 = pneg %p143
      %p709 = pneg %p140
      %p710 = pneg %p164
      %p711 = pneg %p161
      %p712 = pneg %p185
      %p713 = pneg %p182
      %p714 = pneg %p206
      %p715 = pneg %p203
      %p716 = pneg %p227
      %p717 = pneg %p224
      %p718 = pneg %p248
      %p719 = pneg %p245
      %p720 = pneg %p269
      %p721 = pneg %p266
      %p722 = pneg %p290
      %p723 = pneg %p287
      %p724 = pneg %p311
      %p725 = pneg %p308
      %p726 = pneg %p332
      %p727 = pneg %p329
      %p728 = pneg %p353
      %p729 = pneg %p350
      %p730 = pneg %p374
      %p731 = pneg %p371
      %p732 = pneg %p395
      %p733 = pneg %p392
      %p734 = pneg %p416
      %p735 = pneg %p413
      %p736 = pneg %p437
      %p737 = pneg %p434
      %p738 = pneg %p458
      %p739 = pneg %p455
      %p740 = pneg %p479
      %p741 = pneg %p476
      %p742 = pneg %p500
      %p743 = pneg %p497
      %p744 = pneg %p521
      %p745 = pneg %p518
      %p746 = pneg %p542
      %p747 = pneg %p539
      %p748 = pneg %p563
      %p749 = pneg %p560
      %p750 = pneg %p589
      %p751 = pneg %p586
      %p752 = scmp.lt.s32.totalorder %s38, 1
      %s753 = scalar_select %p752, %s38, 1
      %s754 = scalar_lea.vmem %s25, %s753
      %p755 = scmp.lt.s32.totalorder %s38, 1
      %s756 = scalar_select %p755, %s38, 1
      %s757 = smul.addr %s756, 12
      %s758 = smul.addr %s757, 8
      %s759 = scalar_lea.vmem %s0, %s758
      %p760 = scmp.lt.s32.totalorder %s38, 1
      %s761 = scalar_select %p760, %s38, 1
      %s762 = scalar_lea.vmem %s25, %s761
      %v764 = vld [vmem:[%s759] sm:$0xff]
      %v765 = vld [vmem:[%s759 + $0x8] sm:$0xff]
      %v766 = vld [vmem:[%s759 + $0x10] sm:$0xff]
      %v767 = vld [vmem:[%s759 + $0x18] sm:$0xff]
      %v768 = vld [vmem:[%s759 + $0x20] sm:$0xff]
      %v769 = vld [vmem:[%s759 + $0x28] sm:$0xff]
      %v770 = vld [vmem:[%s759 + $0x30] sm:$0xff]
      %v771 = vld [vmem:[%s759 + $0x38] sm:$0xff]
      %v772 = vld [vmem:[%s759 + $0x40] sm:$0xff]
      %v773 = vld [vmem:[%s759 + $0x48] sm:$0xff]
      %v774 = vld [vmem:[%s759 + $0x50] sm:$0xff]
      %v775 = vld [vmem:[%s759 + $0x58] sm:$0xff]
      %v776 = vld [vmem:[%s1] sm:$0x3f]
      %v778 = vlaneseq
      %v779 = vshrl.u32 %v778, 7
      %v780 = vsub.s32 0, %v779
      %v781 = vrot.slane %v776, %v780
      %v782 = vlaneseq
      %v783 = vshrl.u32 %v782, 7
      %v784 = vsub.s32 1, %v783
      %v785 = vrot.slane %v776, %v784
      %v786 = vlaneseq
      %v787 = vshrl.u32 %v786, 7
      %v788 = vsub.s32 2, %v787
      %v789 = vrot.slane %v776, %v788
      %v790 = vlaneseq
      %v791 = vshrl.u32 %v790, 7
      %v792 = vsub.s32 3, %v791
      %v793 = vrot.slane %v776, %v792
      %v794 = vlaneseq
      %v795 = vshrl.u32 %v794, 7
      %v796 = vsub.s32 4, %v795
      %v797 = vrot.slane %v776, %v796
      %v798 = vlaneseq
      %v799 = vshrl.u32 %v798, 7
      %v800 = vsub.s32 5, %v799
      %v801 = vrot.slane %v776, %v800
      %v808 = vmul.f32 %v764, %v781
      %v809 = vmul.f32 %v765, %v785
      %v810 = vmul.f32 %v766, %v789
      %v811 = vmul.f32 %v767, %v793
      %v812 = vmul.f32 %v768, %v797
      %v813 = vmul.f32 %v769, %v801
      %v814 = vmul.f32 %v770, %v781
      %v815 = vmul.f32 %v771, %v785
      %v816 = vmul.f32 %v772, %v789
      %v817 = vmul.f32 %v773, %v793
      %v818 = vmul.f32 %v774, %v797
      %v819 = vmul.f32 %v775, %v801
      %v820 = vadd.f32 %v808, %v810
      %v821 = vadd.f32 %v809, %v811
      %v822 = vadd.f32 %v814, %v816
      %v823 = vadd.f32 %v815, %v817
      %v824 = vadd.f32 %v820, %v812
      %v825 = vadd.f32 %v821, %v813
      %v826 = vadd.f32 %v822, %v818
      %v827 = vadd.f32 %v823, %v819
      %v828 = vlaneseq
      %v829 = vshrl.u32 %v828, 7
      %v830 = vadd.s32 %v829, 8
      %vm831 = vcmp.lt.s32.totalorder %v829, 0
      %v832 = vsub.s32 0, %v829
      %v833 = vsel %vm831, %v832, %v829
      %v834 = vshrl.u32 %v833, 2
      %v835 = vand.u32 %v833, 3
      %v836 = vsub.s32 0, %v835
      %v837 = vsel %vm831, %v836, %v835
      %vm838 = vcmp.lt.s32.totalorder %v830, 0
      %v839 = vsub.s32 0, %v830
      %v840 = vsel %vm838, %v839, %v830
      %v841 = vshrl.u32 %v840, 2
      %v842 = vand.u32 %v840, 3
      %v843 = vsub.s32 0, %v842
      %v844 = vsel %vm838, %v843, %v842
      %vm845 = vcmp.ne.s32.totalorder %v837, 0
      %vm846 = vcmp.ne.s32.totalorder %v844, 0
      %vm847 = vcmp.lt.s32.totalorder %v837, 0
      %vm848 = vcmp.lt.s32.totalorder %v844, 0
      %vm849 = vmand %vm847, %vm845
      %vm850 = vmand %vm848, %vm846
      %v851 = vadd.s32 %v837, 4
      %v852 = vadd.s32 %v844, 4
      %v853 = vsel %vm849, %v851, %v837
      %v854 = vsel %vm850, %v852, %v844
      %vm855 = vcmp.ge.s32.totalorder %v853, 2
      %vm856 = vcmp.ge.s32.totalorder %v854, 2
      %v857 = vld [vmem:[#allocation2] sm:$0x1]
      %v859 = vlaneseq
      %v860 = vshrl.u32 %v859, 7
      %v861 = vsub.s32 0, %v860
      %v862 = vrot.slane %v857, %v861
      %863 = vset.pattern.permute.xlu0 0
      %864 = vperm.xlu0 %863, %v862
      %v865 = vpop.permute.xlu0 %864
      %vm867 = vcmp.le.f32.partialorder %v824, %v865
      %vm868 = vcmp.le.f32.partialorder %v825, %v865
      %vm869 = vcmp.le.f32.partialorder %v826, %v865
      %vm870 = vcmp.le.f32.partialorder %v827, %v865
      %vm871 = vmand %vm855, %vm867
      %vm872 = vmand %vm855, %vm868
      %vm873 = vmand %vm856, %vm869
      %vm874 = vmand %vm856, %vm870
      %v875 = vsel %vm871, 0.0, 1.0
      %v876 = vsel %vm872, 0.0, 1.0
      %v877 = vsel %vm873, 0.0, 1.0
      %v878 = vsel %vm874, 0.0, 1.0
      %v879 = vmul.f32 %v764, %v875
      %v880 = vmul.f32 %v765, %v876
      %v881 = vmul.f32 %v766, %v875
      %v882 = vmul.f32 %v767, %v876
      %v883 = vmul.f32 %v768, %v875
      %v884 = vmul.f32 %v769, %v876
      %v885 = vmul.f32 %v770, %v877
      %v886 = vmul.f32 %v771, %v878
      %v887 = vmul.f32 %v772, %v877
      %v888 = vmul.f32 %v773, %v878
      %v889 = vmul.f32 %v774, %v877
      %v890 = vmul.f32 %v775, %v878
      %v891 = vpack.c.bf16 %v885, %v879
      %v892 = vpack.c.bf16 %v886, %v880
      %v893 = vpack.c.bf16 %v887, %v881
      %v894 = vpack.c.bf16 %v888, %v882
      %v895 = vpack.c.bf16 %v889, %v883
      %v896 = vpack.c.bf16 %v890, %v884
      %v897 = vld [vmem:[%s3] sm:$0xf]
      %v898 = vld [vmem:[%s3 + $0x4] sm:$0xf]
      %v899 = vld [vmem:[%s3 + $0x8] sm:$0xf]
      %v900 = vld [vmem:[%s3 + $0xc] sm:$0xf]
      %v901 = vld [vmem:[%s3 + $0x10] sm:$0xf]
      %v902 = vld [vmem:[%s3 + $0x14] sm:$0xf]
      %v903 = vld [vmem:[%s3 + $0x18] sm:$0xf]
      %v904 = vld [vmem:[%s3 + $0x1c] sm:$0xf]
      %v905 = vld [vmem:[%s3 + $0x20] sm:$0xf]
      %v906 = vld [vmem:[%s3 + $0x24] sm:$0xf]
      %v907 = vld [vmem:[%s3 + $0x28] sm:$0xf]
      %v908 = vld [vmem:[%s3 + $0x2c] sm:$0xf]
      %v909 = vld [vmem:[%s3 + $0x30] sm:$0xf]
      %v910 = vld [vmem:[%s3 + $0x34] sm:$0xf]
      %v911 = vld [vmem:[%s3 + $0x38] sm:$0xf]
      %v912 = vld [vmem:[%s3 + $0x3c] sm:$0xf]
      %v913 = vld [vmem:[%s3 + $0x40] sm:$0xf]
      %v914 = vld [vmem:[%s3 + $0x44] sm:$0xf]
      %v915 = vld [vmem:[%s3 + $0x48] sm:$0xf]
      %v916 = vld [vmem:[%s3 + $0x4c] sm:$0xf]
      %v917 = vld [vmem:[%s3 + $0x50] sm:$0xf]
      %v918 = vld [vmem:[%s3 + $0x54] sm:$0xf]
      %v919 = vld [vmem:[%s3 + $0x58] sm:$0xf]
      %v920 = vld [vmem:[%s3 + $0x5c] sm:$0xf]
      %v921 = vld [vmem:[%s3 + $0x60] sm:$0xf]
      %v922 = vld [vmem:[%s3 + $0x64] sm:$0xf]
      %v923 = vld [vmem:[%s3 + $0x68] sm:$0xf]
      %v924 = vld [vmem:[%s3 + $0x6c] sm:$0xf]
      %v925 = vld [vmem:[%s3 + $0x70] sm:$0xf]
      %v926 = vld [vmem:[%s3 + $0x74] sm:$0xf]
      %v927 = vld [vmem:[%s3 + $0x78] sm:$0xf]
      %v928 = vld [vmem:[%s3 + $0x7c] sm:$0xf]
      %v929 = vld [vmem:[%s3 + $0x80] sm:$0xf]
      %v930 = vld [vmem:[%s3 + $0x84] sm:$0xf]
      %v931 = vld [vmem:[%s3 + $0x88] sm:$0xf]
      %v932 = vld [vmem:[%s3 + $0x8c] sm:$0xf]
      %v933 = vld [vmem:[%s3 + $0x90] sm:$0xf]
      %v934 = vld [vmem:[%s3 + $0x94] sm:$0xf]
      %v935 = vld [vmem:[%s3 + $0x98] sm:$0xf]
      %v936 = vld [vmem:[%s3 + $0x9c] sm:$0xf]
      %v937 = vld [vmem:[%s3 + $0xa0] sm:$0xf]
      %v938 = vld [vmem:[%s3 + $0xa4] sm:$0xf]
      %v939 = vld [vmem:[%s3 + $0xa8] sm:$0xf]
      %v940 = vld [vmem:[%s3 + $0xac] sm:$0xf]
      %v941 = vld [vmem:[%s3 + $0xb0] sm:$0xf]
      %v942 = vld [vmem:[%s3 + $0xb4] sm:$0xf]
      %v943 = vld [vmem:[%s3 + $0xb8] sm:$0xf]
      %v944 = vld [vmem:[%s3 + $0xbc] sm:$0xf]
      %v945 = vld [vmem:[%s3 + $0xc0] sm:$0xf]
      %v946 = vld [vmem:[%s3 + $0xc4] sm:$0xf]
      %v947 = vld [vmem:[%s3 + $0xc8] sm:$0xf]
      %v948 = vld [vmem:[%s3 + $0xcc] sm:$0xf]
      %v949 = vld [vmem:[%s3 + $0xd0] sm:$0xf]
      %v950 = vld [vmem:[%s3 + $0xd4] sm:$0xf]
      %v951 = vld [vmem:[%s3 + $0xd8] sm:$0xf]
      %v952 = vld [vmem:[%s3 + $0xdc] sm:$0xf]
      %v953 = vld [vmem:[%s3 + $0xe0] sm:$0xf]
      %v954 = vld [vmem:[%s3 + $0xe4] sm:$0xf]
      %v955 = vld [vmem:[%s3 + $0xe8] sm:$0xf]
      %v956 = vld [vmem:[%s3 + $0xec] sm:$0xf]
      %v957 = vld [vmem:[%s3 + $0xf0] sm:$0xf]
      %v958 = vld [vmem:[%s3 + $0xf4] sm:$0xf]
      %v959 = vld [vmem:[%s3 + $0xf8] sm:$0xf]
      %v960 = vld [vmem:[%s3 + $0xfc] sm:$0xf]
      %v961 = vld [vmem:[%s3 + $0x100] sm:$0xf]
      %v962 = vld [vmem:[%s3 + $0x104] sm:$0xf]
      %v963 = vld [vmem:[%s3 + $0x108] sm:$0xf]
      %v964 = vld [vmem:[%s3 + $0x10c] sm:$0xf]
      %v965 = vld [vmem:[%s3 + $0x110] sm:$0xf]
      %v966 = vld [vmem:[%s3 + $0x114] sm:$0xf]
      %v967 = vld [vmem:[%s3 + $0x118] sm:$0xf]
      %v968 = vld [vmem:[%s3 + $0x11c] sm:$0xf]
      %v969 = vld [vmem:[%s3 + $0x120] sm:$0xf]
      %v970 = vld [vmem:[%s3 + $0x124] sm:$0xf]
      %v971 = vld [vmem:[%s3 + $0x128] sm:$0xf]
      %v972 = vld [vmem:[%s3 + $0x12c] sm:$0xf]
      %v973 = vld [vmem:[%s3 + $0x130] sm:$0xf]
      %v974 = vld [vmem:[%s3 + $0x134] sm:$0xf]
      %v975 = vld [vmem:[%s3 + $0x138] sm:$0xf]
      %v976 = vld [vmem:[%s3 + $0x13c] sm:$0xf]
      %v977 = vld [vmem:[%s3 + $0x140] sm:$0xf]
      %v978 = vld [vmem:[%s3 + $0x144] sm:$0xf]
      %v979 = vld [vmem:[%s3 + $0x148] sm:$0xf]
      %v980 = vld [vmem:[%s3 + $0x14c] sm:$0xf]
      %v981 = vld [vmem:[%s3 + $0x150] sm:$0xf]
      %v982 = vld [vmem:[%s3 + $0x154] sm:$0xf]
      %v983 = vld [vmem:[%s3 + $0x158] sm:$0xf]
      %v984 = vld [vmem:[%s3 + $0x15c] sm:$0xf]
      %v985 = vld [vmem:[%s3 + $0x160] sm:$0xf]
      %v986 = vld [vmem:[%s3 + $0x164] sm:$0xf]
      %v987 = vld [vmem:[%s3 + $0x168] sm:$0xf]
      %v988 = vld [vmem:[%s3 + $0x16c] sm:$0xf]
      %v989 = vld [vmem:[%s3 + $0x170] sm:$0xf]
      %v990 = vld [vmem:[%s3 + $0x174] sm:$0xf]
      %v991 = vld [vmem:[%s3 + $0x178] sm:$0xf]
      %v992 = vld [vmem:[%s3 + $0x17c] sm:$0xf]
      %v1089 = vunpack.c.l.b16 %v897
      %v1090 = vunpack.c.l.b16 %v898
      %v1091 = vunpack.c.l.b16 %v899
      %v1092 = vunpack.c.l.b16 %v900
      %v1093 = vunpack.c.l.b16 %v901
      %v1094 = vunpack.c.l.b16 %v902
      %v1095 = vunpack.c.l.b16 %v903
      %v1096 = vunpack.c.l.b16 %v904
      %v1097 = vunpack.c.l.b16 %v905
      %v1098 = vunpack.c.l.b16 %v906
      %v1099 = vunpack.c.l.b16 %v907
      %v1100 = vunpack.c.l.b16 %v908
      %v1101 = vunpack.c.l.b16 %v909
      %v1102 = vunpack.c.l.b16 %v910
      %v1103 = vunpack.c.l.b16 %v911
      %v1104 = vunpack.c.l.b16 %v912
      %v1105 = vunpack.c.l.b16 %v913
      %v1106 = vunpack.c.l.b16 %v914
      %v1107 = vunpack.c.l.b16 %v915
      %v1108 = vunpack.c.l.b16 %v916
      %v1109 = vunpack.c.l.b16 %v917
      %v1110 = vunpack.c.l.b16 %v918
      %v1111 = vunpack.c.l.b16 %v919
      %v1112 = vunpack.c.l.b16 %v920
      %v1113 = vunpack.c.l.b16 %v921
      %v1114 = vunpack.c.l.b16 %v922
      %v1115 = vunpack.c.l.b16 %v923
      %v1116 = vunpack.c.l.b16 %v924
      %v1117 = vunpack.c.l.b16 %v925
      %v1118 = vunpack.c.l.b16 %v926
      %v1119 = vunpack.c.l.b16 %v927
      %v1120 = vunpack.c.l.b16 %v928
      %v1121 = vunpack.c.l.b16 %v929
      %v1122 = vunpack.c.l.b16 %v930
      %v1123 = vunpack.c.l.b16 %v931
      %v1124 = vunpack.c.l.b16 %v932
      %v1125 = vunpack.c.l.b16 %v933
      %v1126 = vunpack.c.l.b16 %v934
      %v1127 = vunpack.c.l.b16 %v935
      %v1128 = vunpack.c.l.b16 %v936
      %v1129 = vunpack.c.l.b16 %v937
      %v1130 = vunpack.c.l.b16 %v938
      %v1131 = vunpack.c.l.b16 %v939
      %v1132 = vunpack.c.l.b16 %v940
      %v1133 = vunpack.c.l.b16 %v941
      %v1134 = vunpack.c.l.b16 %v942
      %v1135 = vunpack.c.l.b16 %v943
      %v1136 = vunpack.c.l.b16 %v944
      %v1137 = vunpack.c.l.b16 %v945
      %v1138 = vunpack.c.l.b16 %v946
      %v1139 = vunpack.c.l.b16 %v947
      %v1140 = vunpack.c.l.b16 %v948
      %v1141 = vunpack.c.l.b16 %v949
      %v1142 = vunpack.c.l.b16 %v950
      %v1143 = vunpack.c.l.b16 %v951
      %v1144 = vunpack.c.l.b16 %v952
      %v1145 = vunpack.c.l.b16 %v953
      %v1146 = vunpack.c.l.b16 %v954
      %v1147 = vunpack.c.l.b16 %v955
      %v1148 = vunpack.c.l.b16 %v956
      %v1149 = vunpack.c.l.b16 %v957
      %v1150 = vunpack.c.l.b16 %v958
      %v1151 = vunpack.c.l.b16 %v959
      %v1152 = vunpack.c.l.b16 %v960
      %v1153 = vunpack.c.l.b16 %v961
      %v1154 = vunpack.c.l.b16 %v962
      %v1155 = vunpack.c.l.b16 %v963
      %v1156 = vunpack.c.l.b16 %v964
      %v1157 = vunpack.c.l.b16 %v965
      %v1158 = vunpack.c.l.b16 %v966
      %v1159 = vunpack.c.l.b16 %v967
      %v1160 = vunpack.c.l.b16 %v968
      %v1161 = vunpack.c.l.b16 %v969
      %v1162 = vunpack.c.l.b16 %v970
      %v1163 = vunpack.c.l.b16 %v971
      %v1164 = vunpack.c.l.b16 %v972
      %v1165 = vunpack.c.l.b16 %v973
      %v1166 = vunpack.c.l.b16 %v974
      %v1167 = vunpack.c.l.b16 %v975
      %v1168 = vunpack.c.l.b16 %v976
      %v1169 = vunpack.c.l.b16 %v977
      %v1170 = vunpack.c.l.b16 %v978
      %v1171 = vunpack.c.l.b16 %v979
      %v1172 = vunpack.c.l.b16 %v980
      %v1173 = vunpack.c.l.b16 %v981
      %v1174 = vunpack.c.l.b16 %v982
      %v1175 = vunpack.c.l.b16 %v983
      %v1176 = vunpack.c.l.b16 %v984
      %v1177 = vunpack.c.l.b16 %v985
      %v1178 = vunpack.c.l.b16 %v986
      %v1179 = vunpack.c.l.b16 %v987
      %v1180 = vunpack.c.l.b16 %v988
      %v1181 = vunpack.c.l.b16 %v989
      %v1182 = vunpack.c.l.b16 %v990
      %v1183 = vunpack.c.l.b16 %v991
      %v1184 = vunpack.c.l.b16 %v992
      %v1185 = vpack.c.b16 %v1090, %v1089
      %v1186 = vpack.c.b16 %v1092, %v1091
      %v1187 = vpack.c.b16 %v1094, %v1093
      %v1188 = vpack.c.b16 %v1096, %v1095
      %v1189 = vpack.c.b16 %v1098, %v1097
      %v1190 = vpack.c.b16 %v1100, %v1099
      %v1191 = vpack.c.b16 %v1102, %v1101
      %v1192 = vpack.c.b16 %v1104, %v1103
      %v1193 = vpack.c.b16 %v1106, %v1105
      %v1194 = vpack.c.b16 %v1108, %v1107
      %v1195 = vpack.c.b16 %v1110, %v1109
      %v1196 = vpack.c.b16 %v1112, %v1111
      %v1197 = vpack.c.b16 %v1114, %v1113
      %v1198 = vpack.c.b16 %v1116, %v1115
      %v1199 = vpack.c.b16 %v1118, %v1117
      %v1200 = vpack.c.b16 %v1120, %v1119
      %v1201 = vpack.c.b16 %v1122, %v1121
      %v1202 = vpack.c.b16 %v1124, %v1123
      %v1203 = vpack.c.b16 %v1126, %v1125
      %v1204 = vpack.c.b16 %v1128, %v1127
      %v1205 = vpack.c.b16 %v1130, %v1129
      %v1206 = vpack.c.b16 %v1132, %v1131
      %v1207 = vpack.c.b16 %v1134, %v1133
      %v1208 = vpack.c.b16 %v1136, %v1135
      %v1209 = vpack.c.b16 %v1138, %v1137
      %v1210 = vpack.c.b16 %v1140, %v1139
      %v1211 = vpack.c.b16 %v1142, %v1141
      %v1212 = vpack.c.b16 %v1144, %v1143
      %v1213 = vpack.c.b16 %v1146, %v1145
      %v1214 = vpack.c.b16 %v1148, %v1147
      %v1215 = vpack.c.b16 %v1150, %v1149
      %v1216 = vpack.c.b16 %v1152, %v1151
      %v1217 = vpack.c.b16 %v1154, %v1153
      %v1218 = vpack.c.b16 %v1156, %v1155
      %v1219 = vpack.c.b16 %v1158, %v1157
      %v1220 = vpack.c.b16 %v1160, %v1159
      %v1221 = vpack.c.b16 %v1162, %v1161
      %v1222 = vpack.c.b16 %v1164, %v1163
      %v1223 = vpack.c.b16 %v1166, %v1165
      %v1224 = vpack.c.b16 %v1168, %v1167
      %v1225 = vpack.c.b16 %v1170, %v1169
      %v1226 = vpack.c.b16 %v1172, %v1171
      %v1227 = vpack.c.b16 %v1174, %v1173
      %v1228 = vpack.c.b16 %v1176, %v1175
      %v1229 = vpack.c.b16 %v1178, %v1177
      %v1230 = vpack.c.b16 %v1180, %v1179
      %v1231 = vpack.c.b16 %v1182, %v1181
      %v1232 = vpack.c.b16 %v1184, %v1183
      %1281 = vmatprep.subr.bf16.mxu0 0
      %1282 = vmatpush1.bf16.msra.mxu0 %v1185
      %1283 = vmatprep.subr.bf16.mxu0 0
      %1284 = vmatpush1.bf16.msra.mxu0 %v1186
      %1285 = vmatprep.subr.bf16.mxu0 0
      %1286 = vmatpush1.bf16.msra.mxu0 %v1187
      %1287 = vmatprep.subr.bf16.mxu0 0
      %1288 = vmatpush1.bf16.msra.mxu0 %v1188
      %1289 = vmatprep.subr.bf16.mxu0 0
      %1290 = vmatpush1.bf16.msra.mxu0 %v1189
      %1291 = vmatprep.subr.bf16.mxu0 0
      %1292 = vmatpush1.bf16.msra.mxu0 %v1190
      %1293 = vmatprep.subr.bf16.mxu0 0
      %1294 = vmatpush1.bf16.msra.mxu0 %v1191
      %1295 = vmatprep.subr.bf16.mxu0 0
      %1296 = vmatpush1.bf16.msra.mxu0 %v1192
      %1297 = vmatprep.subr.bf16.mxu0 0
      %1298 = vmatpush1.bf16.msra.mxu0 %v1193
      %1299 = vmatprep.subr.bf16.mxu0 0
      %1300 = vmatpush1.bf16.msra.mxu0 %v1194
      %1301 = vmatprep.subr.bf16.mxu0 0
      %1302 = vmatpush1.bf16.msra.mxu0 %v1195
      %1303 = vmatprep.subr.bf16.mxu0 0
      %1304 = vmatpush1.bf16.msra.mxu0 %v1196
      %1305 = vmatprep.subr.bf16.mxu0 0
      %1306 = vmatpush1.bf16.msra.mxu0 %v1197
      %1307 = vmatprep.subr.bf16.mxu0 0
      %1308 = vmatpush1.bf16.msra.mxu0 %v1198
      %1309 = vmatprep.subr.bf16.mxu0 0
      %1310 = vmatpush1.bf16.msra.mxu0 %v1199
      %1311 = vmatprep.subr.bf16.mxu0 0
      %1312 = vmatpush1.bf16.msra.mxu0 %v1200
      %1313 = vmatprep.mubr.bf16.mxu0 %v892
      %1314 = vmatmul.mubr.bf16.gmra.mrb[0].mxu0 %v891
      %v1315 = vpop.f32.mrb[0].mxu0
      %v1316 = vadd.f32 0.0, %v1315
      %v1317 = vpop.f32.mrb[0].mxu0
      %v1318 = vpop.f32.mrb[0].mxu0
      %v1319 = vadd.f32 0.0, %v1318
      %v1320 = vpop.f32.mrb[0].mxu0
      %1321 = vdwg.mxu0
      %1322 = vmatprep.subr.bf16.mxu0 0
      %1323 = vmatpush1.bf16.msra.mxu0 %v1201
      %1324 = vmatprep.subr.bf16.mxu0 0
      %1325 = vmatpush1.bf16.msra.mxu0 %v1202
      %1326 = vmatprep.subr.bf16.mxu0 0
      %1327 = vmatpush1.bf16.msra.mxu0 %v1203
      %1328 = vmatprep.subr.bf16.mxu0 0
      %1329 = vmatpush1.bf16.msra.mxu0 %v1204
      %1330 = vmatprep.subr.bf16.mxu0 0
      %1331 = vmatpush1.bf16.msra.mxu0 %v1205
      %1332 = vmatprep.subr.bf16.mxu0 0
      %1333 = vmatpush1.bf16.msra.mxu0 %v1206
      %1334 = vmatprep.subr.bf16.mxu0 0
      %1335 = vmatpush1.bf16.msra.mxu0 %v1207
      %1336 = vmatprep.subr.bf16.mxu0 0
      %1337 = vmatpush1.bf16.msra.mxu0 %v1208
      %1338 = vmatprep.subr.bf16.mxu0 0
      %1339 = vmatpush1.bf16.msra.mxu0 %v1209
      %1340 = vmatprep.subr.bf16.mxu0 0
      %1341 = vmatpush1.bf16.msra.mxu0 %v1210
      %1342 = vmatprep.subr.bf16.mxu0 0
      %1343 = vmatpush1.bf16.msra.mxu0 %v1211
      %1344 = vmatprep.subr.bf16.mxu0 0
      %1345 = vmatpush1.bf16.msra.mxu0 %v1212
      %1346 = vmatprep.subr.bf16.mxu0 0
      %1347 = vmatpush1.bf16.msra.mxu0 %v1213
      %1348 = vmatprep.subr.bf16.mxu0 0
      %1349 = vmatpush1.bf16.msra.mxu0 %v1214
      %1350 = vmatprep.subr.bf16.mxu0 0
      %1351 = vmatpush1.bf16.msra.mxu0 %v1215
      %1352 = vmatprep.subr.bf16.mxu0 0
      %1353 = vmatpush1.bf16.msra.mxu0 %v1216
      %1354 = vmatprep.mubr.bf16.mxu0 %v894
      %1355 = vmatmul.mubr.bf16.gmra.mrb[0].mxu0 %v893
      %v1356 = vpop.f32.mrb[0].mxu0
      %v1357 = vadd.f32 %v1316, %v1356
      %v1358 = vpop.f32.mrb[0].mxu0
      %v1359 = vpop.f32.mrb[0].mxu0
      %v1360 = vadd.f32 %v1319, %v1359
      %v1361 = vpop.f32.mrb[0].mxu0
      %1362 = vdwg.mxu0
      %1363 = vmatprep.subr.bf16.mxu0 0
      %1364 = vmatpush1.bf16.msra.mxu0 %v1217
      %1365 = vmatprep.subr.bf16.mxu0 0
      %1366 = vmatpush1.bf16.msra.mxu0 %v1218
      %1367 = vmatprep.subr.bf16.mxu0 0
      %1368 = vmatpush1.bf16.msra.mxu0 %v1219
      %1369 = vmatprep.subr.bf16.mxu0 0
      %1370 = vmatpush1.bf16.msra.mxu0 %v1220
      %1371 = vmatprep.subr.bf16.mxu0 0
      %1372 = vmatpush1.bf16.msra.mxu0 %v1221
      %1373 = vmatprep.subr.bf16.mxu0 0
      %1374 = vmatpush1.bf16.msra.mxu0 %v1222
      %1375 = vmatprep.subr.bf16.mxu0 0
      %1376 = vmatpush1.bf16.msra.mxu0 %v1223
      %1377 = vmatprep.subr.bf16.mxu0 0
      %1378 = vmatpush1.bf16.msra.mxu0 %v1224
      %1379 = vmatprep.subr.bf16.mxu0 0
      %1380 = vmatpush1.bf16.msra.mxu0 %v1225
      %1381 = vmatprep.subr.bf16.mxu0 0
      %1382 = vmatpush1.bf16.msra.mxu0 %v1226
      %1383 = vmatprep.subr.bf16.mxu0 0
      %1384 = vmatpush1.bf16.msra.mxu0 %v1227
      %1385 = vmatprep.subr.bf16.mxu0 0
      %1386 = vmatpush1.bf16.msra.mxu0 %v1228
      %1387 = vmatprep.subr.bf16.mxu0 0
      %1388 = vmatpush1.bf16.msra.mxu0 %v1229
      %1389 = vmatprep.subr.bf16.mxu0 0
      %1390 = vmatpush1.bf16.msra.mxu0 %v1230
      %1391 = vmatprep.subr.bf16.mxu0 0
      %1392 = vmatpush1.bf16.msra.mxu0 %v1231
      %1393 = vmatprep.subr.bf16.mxu0 0
      %1394 = vmatpush1.bf16.msra.mxu0 %v1232
      %1395 = vmatprep.mubr.bf16.mxu0 %v896
      %1396 = vmatmul.mubr.bf16.gmra.mrb[0].mxu0 %v895
      %v1397 = vpop.f32.mrb[0].mxu0
      %v1398 = vadd.f32 %v1357, %v1397
      %v1399 = vpop.f32.mrb[0].mxu0
      %v1400 = vpop.f32.mrb[0].mxu0
      %v1401 = vadd.f32 %v1360, %v1400
      %v1402 = vpop.f32.mrb[0].mxu0
      %1403 = vdwg.mxu0
      %vm1406 = vcmask 1040384
      %v1407 = vrot.slane %v1398, 7
      %v1408 = vrot.slane %v1401, 7
      %v1409 = vsel %vm1406, %v1407, %v1408
      %v1413 = vsel %vm1406, 0.0, %v1407
      %v1414 = vld [vmem:[%s4] sm:$0xff]
      %v1415 = vld [vmem:[%s4 + $0x8] sm:$0xff]
      %v1416 = vld [vmem:[%s4 + $0x10] sm:$0x1]
      %v1417 = vadd.f32 %v1413, %v1414
      %v1418 = vadd.f32 %v1409, %v1415
      %v1419 = vadd.f32 %v1408, %v1416
      %v1420 = vld [vmem:[%s5] sm:$0x1]
      %v1421 = vld [vmem:[%s6] sm:$0x1]
      %1422 = vadd.xlane.f32.xlu0 %v1417
      %v1423 = vpop.xlane.xlu0 %1422
      %1424 = vadd.xlane.f32.xlu0 %v1418
      %v1425 = vpop.xlane.xlu0 %1424
      %v1426 = vsel %vm1406, %v1419, 0.0
      %1427 = vadd.xlane.f32.xlu0 %v1426
      %v1428 = vpop.xlane.xlu0 %1427
      %v1429 = vrcp.pop 128.0
      %v1430 = vmul.f32 %v1423, %v1429
      %v1431 = vmul.f32 %v1425, %v1429
      %v1432 = vmul.f32 %v1428, %v1429
      %v1433 = vsub.f32 %v1417, %v1430
      %v1434 = vsub.f32 %v1418, %v1431
      %v1435 = vsub.f32 %v1419, %v1432
      %v1436 = vmul.f32 %v1433, %v1433
      %v1437 = vmul.f32 %v1434, %v1434
      %v1438 = vmul.f32 %v1435, %v1435
      %1439 = vadd.xlane.f32.xlu0 %v1436
      %v1440 = vpop.xlane.xlu0 %1439
      %1441 = vadd.xlane.f32.xlu0 %v1437
      %v1442 = vpop.xlane.xlu0 %1441
      %v1443 = vsel %vm1406, %v1438, 0.0
      %1444 = vadd.xlane.f32.xlu0 %v1443
      %v1445 = vpop.xlane.xlu0 %1444
      %v1446 = vmul.f32 %v1440, %v1429
      %v1447 = vmul.f32 %v1442, %v1429
      %v1448 = vmul.f32 %v1445, %v1429
      %v1449 = vadd.f32 %v1446, 1e-06
      %v1450 = vadd.f32 %v1447, 1e-06
      %v1451 = vadd.f32 %v1448, 1e-06
      %v1452 = vrsqrt.pop %v1449
      %v1453 = vrsqrt.pop %v1450
      %v1454 = vrsqrt.pop %v1451
      %v1455 = vmul.f32 %v1433, %v1452
      %v1456 = vmul.f32 %v1434, %v1453
      %v1457 = vmul.f32 %v1435, %v1454
      %v1459 = vlaneseq
      %v1460 = vshrl.u32 %v1459, 7
      %v1461 = vsub.s32 0, %v1460
      %v1462 = vrot.slane %v1420, %v1461
      %v1464 = vmul.f32 %v1455, %v1462
      %v1465 = vmul.f32 %v1456, %v1462
      %v1466 = vmul.f32 %v1457, %v1462
      %v1468 = vlaneseq
      %v1469 = vshrl.u32 %v1468, 7
      %v1470 = vsub.s32 0, %v1469
      %v1471 = vrot.slane %v1421, %v1470
      %v1473 = vadd.f32 %v1464, %v1471
      %v1474 = vadd.f32 %v1465, %v1471
      %v1475 = vadd.f32 %v1466, %v1471
      %v1476 = vpack.c.bf16 %v1474, %v1473
      %v1477 = vpack.c.bf16 %v1475, %v1475
      %v1478 = vld [vmem:[%s7] sm:$0xff]
      %v1479 = vld [vmem:[%s7 + $0x8] sm:$0xf]
      %v1480 = vld [vmem:[%s7 + $0xc] sm:$0xff]
      %v1481 = vld [vmem:[%s7 + $0x14] sm:$0xf]
      %v1482 = vld [vmem:[%s7 + $0x18] sm:$0xff]
      %v1483 = vld [vmem:[%s7 + $0x20] sm:$0xf]
      %v1484 = vld [vmem:[%s7 + $0x24] sm:$0xff]
      %v1485 = vld [vmem:[%s7 + $0x2c] sm:$0xf]
      %v1486 = vld [vmem:[%s7 + $0x30] sm:$0xff]
      %v1487 = vld [vmem:[%s7 + $0x38] sm:$0xf]
      %v1488 = vld [vmem:[%s7 + $0x3c] sm:$0xff]
      %v1489 = vld [vmem:[%s7 + $0x44] sm:$0xf]
      %v1490 = vld [vmem:[%s7 + $0x48] sm:$0xff]
      %v1491 = vld [vmem:[%s7 + $0x50] sm:$0xf]
      %v1492 = vld [vmem:[%s7 + $0x54] sm:$0xff]
      %v1493 = vld [vmem:[%s7 + $0x5c] sm:$0xf]
      %v1494 = vld [vmem:[%s7 + $0x60] sm:$0xff]
      %v1495 = vld [vmem:[%s7 + $0x68] sm:$0xf]
      %v1496 = vld [vmem:[%s7 + $0x6c] sm:$0xff]
      %v1497 = vld [vmem:[%s7 + $0x74] sm:$0xf]
      %v1498 = vld [vmem:[%s7 + $0x78] sm:$0xff]
      %v1499 = vld [vmem:[%s7 + $0x80] sm:$0xf]
      %v1500 = vld [vmem:[%s7 + $0x84] sm:$0xff]
      %v1501 = vld [vmem:[%s7 + $0x8c] sm:$0xf]
      %v1502 = vld [vmem:[%s7 + $0x90] sm:$0xff]
      %v1503 = vld [vmem:[%s7 + $0x98] sm:$0xf]
      %v1504 = vld [vmem:[%s7 + $0x9c] sm:$0xff]
      %v1505 = vld [vmem:[%s7 + $0xa4] sm:$0xf]
      %v1506 = vld [vmem:[%s7 + $0xa8] sm:$0xff]
      %v1507 = vld [vmem:[%s7 + $0xb0] sm:$0xf]
      %v1508 = vld [vmem:[%s7 + $0xb4] sm:$0xff]
      %v1509 = vld [vmem:[%s7 + $0xbc] sm:$0xf]
      %v1510 = vld [vmem:[%s8] sm:$0x7]
      %v1512 = vlaneseq
      %v1513 = vshrl.u32 %v1512, 7
      %v1514 = vsub.s32 0, %v1513
      %v1515 = vrot.slane %v1510, %v1514
      %v1516 = vlaneseq
      %v1517 = vshrl.u32 %v1516, 7
      %v1518 = vsub.s32 1, %v1517
      %v1519 = vrot.slane %v1510, %v1518
      %v1520 = vlaneseq
      %v1521 = vshrl.u32 %v1520, 7
      %v1522 = vsub.s32 2, %v1521
      %v1523 = vrot.slane %v1510, %v1522
      %v1559 = vunpack.c.l.b16 %v1478
      %v1560 = vunpack.c.h.b16 %v1478
      %v1561 = vunpack.c.l.b16 %v1479
      %v1562 = vunpack.c.l.b16 %v1480
      %v1563 = vunpack.c.h.b16 %v1480
      %v1564 = vunpack.c.l.b16 %v1481
      %v1565 = vunpack.c.l.b16 %v1482
      %v1566 = vunpack.c.h.b16 %v1482
      %v1567 = vunpack.c.l.b16 %v1483
      %v1568 = vunpack.c.l.b16 %v1484
      %v1569 = vunpack.c.h.b16 %v1484
      %v1570 = vunpack.c.l.b16 %v1485
      %v1571 = vunpack.c.l.b16 %v1486
      %v1572 = vunpack.c.h.b16 %v1486
      %v1573 = vunpack.c.l.b16 %v1487
      %v1574 = vunpack.c.l.b16 %v1488
      %v1575 = vunpack.c.h.b16 %v1488
      %v1576 = vunpack.c.l.b16 %v1489
      %v1577 = vunpack.c.l.b16 %v1490
      %v1578 = vunpack.c.h.b16 %v1490
      %v1579 = vunpack.c.l.b16 %v1491
      %v1580 = vunpack.c.l.b16 %v1492
      %v1581 = vunpack.c.h.b16 %v1492
      %v1582 = vunpack.c.l.b16 %v1493
      %v1583 = vunpack.c.l.b16 %v1494
      %v1584 = vunpack.c.h.b16 %v1494
      %v1585 = vunpack.c.l.b16 %v1495
      %v1586 = vunpack.c.l.b16 %v1496
      %v1587 = vunpack.c.h.b16 %v1496
      %v1588 = vunpack.c.l.b16 %v1497
      %v1589 = vunpack.c.l.b16 %v1498
      %v1590 = vunpack.c.h.b16 %v1498
      %v1591 = vunpack.c.l.b16 %v1499
      %v1592 = vunpack.c.l.b16 %v1500
      %v1593 = vunpack.c.h.b16 %v1500
      %v1594 = vunpack.c.l.b16 %v1501
      %v1595 = vunpack.c.l.b16 %v1502
      %v1596 = vunpack.c.h.b16 %v1502
      %v1597 = vunpack.c.l.b16 %v1503
      %v1598 = vunpack.c.l.b16 %v1504
      %v1599 = vunpack.c.h.b16 %v1504
      %v1600 = vunpack.c.l.b16 %v1505
      %v1601 = vunpack.c.l.b16 %v1506
      %v1602 = vunpack.c.h.b16 %v1506
      %v1603 = vunpack.c.l.b16 %v1507
      %v1604 = vunpack.c.l.b16 %v1508
      %v1605 = vunpack.c.h.b16 %v1508
      %v1606 = vunpack.c.l.b16 %v1509
      %v1607 = vpack.c.b16 %v1562, %v1559
      %v1608 = vpack.c.b16 %v1563, %v1560
      %v1609 = vpack.c.b16 %v1564, %v1561
      %v1610 = vpack.c.b16 %v1568, %v1565
      %v1611 = vpack.c.b16 %v1569, %v1566
      %v1612 = vpack.c.b16 %v1570, %v1567
      %v1613 = vpack.c.b16 %v1574, %v1571
      %v1614 = vpack.c.b16 %v1575, %v1572
      %v1615 = vpack.c.b16 %v1576, %v1573
      %v1616 = vpack.c.b16 %v1580, %v1577
      %v1617 = vpack.c.b16 %v1581, %v1578
      %v1618 = vpack.c.b16 %v1582, %v1579
      %v1619 = vpack.c.b16 %v1586, %v1583
      %v1620 = vpack.c.b16 %v1587, %v1584
      %v1621 = vpack.c.b16 %v1588, %v1585
      %v1622 = vpack.c.b16 %v1592, %v1589
      %v1623 = vpack.c.b16 %v1593, %v1590
      %v1624 = vpack.c.b16 %v1594, %v1591
      %v1625 = vpack.c.b16 %v1598, %v1595
      %v1626 = vpack.c.b16 %v1599, %v1596
      %v1627 = vpack.c.b16 %v1600, %v1597
      %v1628 = vpack.c.b16 %v1604, %v1601
      %v1629 = vpack.c.b16 %v1605, %v1602
      %v1630 = vpack.c.b16 %v1606, %v1603
      %1655 = vmatprep.subr.bf16.mxu0 %v1608
      %1656 = vmatpush1.bf16.msra.mxu0 %v1607
      %1657 = vmatprep.subr.bf16.mxu0 %v1611
      %1658 = vmatpush1.bf16.msra.mxu0 %v1610
      %1659 = vmatprep.subr.bf16.mxu0 %v1614
      %1660 = vmatpush1.bf16.msra.mxu0 %v1613
      %1661 = vmatprep.subr.bf16.mxu0 %v1617
      %1662 = vmatpush1.bf16.msra.mxu0 %v1616
      %1663 = vmatprep.subr.bf16.mxu0 %v1620
      %1664 = vmatpush1.bf16.msra.mxu0 %v1619
      %1665 = vmatprep.subr.bf16.mxu0 %v1623
      %1666 = vmatpush1.bf16.msra.mxu0 %v1622
      %1667 = vmatprep.subr.bf16.mxu0 %v1626
      %1668 = vmatpush1.bf16.msra.mxu0 %v1625
      %1669 = vmatprep.subr.bf16.mxu0 %v1629
      %1670 = vmatpush1.bf16.msra.mxu0 %v1628
      %1671 = vmatprep.subr.bf16.mxu0 0
      %1672 = vmatpush1.bf16.msra.mxu0 0
      %1673 = vmatprep.subr.bf16.mxu0 0
      %1674 = vmatpush1.bf16.msra.mxu0 0
      %1675 = vmatprep.subr.bf16.mxu0 0
      %1676 = vmatpush1.bf16.msra.mxu0 0
      %1677 = vmatprep.subr.bf16.mxu0 0
      %1678 = vmatpush1.bf16.msra.mxu0 0
      %1679 = vmatprep.subr.bf16.mxu0 0
      %1680 = vmatpush1.bf16.msra.mxu0 0
      %1681 = vmatprep.subr.bf16.mxu0 0
      %1682 = vmatpush1.bf16.msra.mxu0 0
      %1683 = vmatprep.subr.bf16.mxu0 0
      %1684 = vmatpush1.bf16.msra.mxu0 0
      %1685 = vmatprep.subr.bf16.mxu0 0
      %1686 = vmatpush1.bf16.msra.mxu0 0
      %1687 = vmatprep.mubr.bf16.mxu0 0
      %1688 = vmatmul.mubr.bf16.gmra.mrb[0].mxu0 %v1476
      %v1689 = vpop.f32.mrb[0].mxu0
      %v1690 = vadd.f32 %v1515, %v1689
      %v1691 = vpop.f32.mrb[0].mxu0
      %v1692 = vadd.f32 %v1519, %v1691
      %v1693 = vpop.f32.mrb[0].mxu0
      %v1694 = vadd.f32 %v1515, %v1693
      %v1695 = vpop.f32.mrb[0].mxu0
      %v1696 = vadd.f32 %v1519, %v1695
      %1697 = vmatprep.mubr.bf16.mxu0 0
      %1698 = vmatmul.mubr.bf16.gmra.mrb[0].mxu0 %v1477
      %v1699 = vpop.f32.mrb[0].mxu0
      %v1700 = vadd.f32 %v1515, %v1699
      %v1701 = vpop.f32.mrb[0].mxu0
      %v1702 = vadd.f32 %v1519, %v1701
      %v1703 = vpop.f32.mrb[0].mxu0
      %v1704 = vpop.f32.mrb[0].mxu0
      %1705 = vdwg.mxu0
      %1706 = vmatprep.subr.bf16.mxu0 0
      %1707 = vmatpush1.bf16.msra.mxu0 %v1609
      %1708 = vmatprep.subr.bf16.mxu0 0
      %1709 = vmatpush1.bf16.msra.mxu0 %v1612
      %1710 = vmatprep.subr.bf16.mxu0 0
      %1711 = vmatpush1.bf16.msra.mxu0 %v1615
      %1712 = vmatprep.subr.bf16.mxu0 0
      %1713 = vmatpush1.bf16.msra.mxu0 %v1618
      %1714 = vmatprep.subr.bf16.mxu0 0
      %1715 = vmatpush1.bf16.msra.mxu0 %v1621
      %1716 = vmatprep.subr.bf16.mxu0 0
      %1717 = vmatpush1.bf16.msra.mxu0 %v1624
      %1718 = vmatprep.subr.bf16.mxu0 0
      %1719 = vmatpush1.bf16.msra.mxu0 %v1627
      %1720 = vmatprep.subr.bf16.mxu0 0
      %1721 = vmatpush1.bf16.msra.mxu0 %v1630
      %1722 = vmatprep.subr.bf16.mxu0 0
      %1723 = vmatpush1.bf16.msra.mxu0 0
      %1724 = vmatprep.subr.bf16.mxu0 0
      %1725 = vmatpush1.bf16.msra.mxu0 0
      %1726 = vmatprep.subr.bf16.mxu0 0
      %1727 = vmatpush1.bf16.msra.mxu0 0
      %1728 = vmatprep.subr.bf16.mxu0 0
      %1729 = vmatpush1.bf16.msra.mxu0 0
      %1730 = vmatprep.subr.bf16.mxu0 0
      %1731 = vmatpush1.bf16.msra.mxu0 0
      %1732 = vmatprep.subr.bf16.mxu0 0
      %1733 = vmatpush1.bf16.msra.mxu0 0
      %1734 = vmatprep.subr.bf16.mxu0 0
      %1735 = vmatpush1.bf16.msra.mxu0 0
      %1736 = vmatprep.subr.bf16.mxu0 0
      %1737 = vmatpush1.bf16.msra.mxu0 0
      %1738 = vmatprep.mubr.bf16.mxu0 0
      %1739 = vmatmul.mubr.bf16.gmra.mrb[0].mxu0 %v1476
      %v1740 = vpop.f32.mrb[0].mxu0
      %v1741 = vadd.f32 %v1523, %v1740
      %v1742 = vpop.f32.mrb[0].mxu0
      %v1743 = vpop.f32.mrb[0].mxu0
      %v1744 = vadd.f32 %v1523, %v1743
      %v1745 = vpop.f32.mrb[0].mxu0
      %1746 = vmatprep.mubr.bf16.mxu0 0
      %1747 = vmatmul.mubr.bf16.gmra.mrb[0].mxu0 %v1477
      %v1748 = vpop.f32.mrb[0].mxu0
      %v1749 = vadd.f32 %v1523, %v1748
      %v1750 = vpop.f32.mrb[0].mxu0
      %v1751 = vpop.f32.mrb[0].mxu0
      %v1752 = vpop.f32.mrb[0].mxu0
      %1753 = vdwg.mxu0
      %v1754 = vpack.c.bf16 %v1694, %v1690
      %v1755 = vpack.c.bf16 %v1700, %v1700
      %v1756 = vpack.c.bf16 %v1696, %v1692
      %v1757 = vpack.c.bf16 %v1702, %v1702
      %vm1758 = vcmask 261120
      %v1760 = vsel %vm1758, %v1754, 0
      %v1763 = vsel %vm1758, %v1755, 0
      %v1766 = vsel %vm1758, %v1756, 0
      %v1769 = vsel %vm1758, %v1757, 0
      %1771 = vmatprep.subr.bf16.mxu0 0
      %1772 = vmatpush1.bf16.xpose.msra.mxu0 %v1766
      %1773 = vmatprep.subr.bf16.mxu0 0
      %1774 = vmatpush1.bf16.xpose.msra.mxu0 %v1769
      %1775 = vmatprep.subr.bf16.mxu0 0
      %1776 = vmatpush1.bf16.xpose.msra.mxu0 0
      %1777 = vmatprep.subr.bf16.mxu0 0
      %1778 = vmatpush1.bf16.xpose.msra.mxu0 0
      %1779 = vmatprep.subr.bf16.mxu0 0
      %1780 = vmatpush1.bf16.xpose.msra.mxu0 0
      %1781 = vmatprep.subr.bf16.mxu0 0
      %1782 = vmatpush1.bf16.xpose.msra.mxu0 0
      %1783 = vmatprep.subr.bf16.mxu0 0
      %1784 = vmatpush1.bf16.xpose.msra.mxu0 0
      %1785 = vmatprep.subr.bf16.mxu0 0
      %1786 = vmatpush1.bf16.xpose.msra.mxu0 0
      %1787 = vmatprep.subr.bf16.mxu0 0
      %1788 = vmatpush1.bf16.xpose.msra.mxu0 0
      %1789 = vmatprep.subr.bf16.mxu0 0
      %1790 = vmatpush1.bf16.xpose.msra.mxu0 0
      %1791 = vmatprep.subr.bf16.mxu0 0
      %1792 = vmatpush1.bf16.xpose.msra.mxu0 0
      %1793 = vmatprep.subr.bf16.mxu0 0
      %1794 = vmatpush1.bf16.xpose.msra.mxu0 0
      %1795 = vmatprep.subr.bf16.mxu0 0
      %1796 = vmatpush1.bf16.xpose.msra.mxu0 0
      %1797 = vmatprep.subr.bf16.mxu0 0
      %1798 = vmatpush1.bf16.xpose.msra.mxu0 0
      %1799 = vmatprep.subr.bf16.mxu0 0
      %1800 = vmatpush1.bf16.xpose.msra.mxu0 0
      %1801 = vmatprep.subr.bf16.mxu0 0
      %1802 = vmatpush1.bf16.xpose.msra.mxu0 0
      %1803 = vmatprep.mubr.bf16.mxu0 0
      %1804 = vmatmul.mubr.bf16.gmra.mrb[0].mxu0 %v1760
      %v1805 = vpop.f32.mrb[0].mxu0
      %v1806 = vadd.f32 0.0, %v1805
      %v1807 = vpop.f32.mrb[0].mxu0
      %v1808 = vpop.f32.mrb[0].mxu0
      %v1809 = vadd.f32 0.0, %v1808
      %v1810 = vpop.f32.mrb[0].mxu0
      %1811 = vmatprep.mubr.bf16.mxu0 0
      %1812 = vmatmul.mubr.bf16.gmra.mrb[0].mxu0 %v1763
      %v1813 = vpop.f32.mrb[0].mxu0
      %v1814 = vadd.f32 0.0, %v1813
      %v1815 = vpop.f32.mrb[0].mxu0
      %v1816 = vpop.f32.mrb[0].mxu0
      %v1817 = vpop.f32.mrb[0].mxu0
      %1818 = vdwg.mxu0
      %vm1819 = vcmask 138240
      %v1820 = vsel %vm1819, %v1806, -inf
      %1821 = vmax.xlane.f32.xlu0 %v1820
      %v1822 = vpop.xlane.xlu0 %1821
      %v1823 = vsel %vm1819, %v1809, -inf
      %1824 = vmax.xlane.f32.xlu0 %v1823
      %v1825 = vpop.xlane.xlu0 %1824
      %vm1826 = vcmask 131072
      %v1827 = vsel %vm1826, %v1814, -inf
      %1828 = vmax.xlane.f32.xlu0 %v1827
      %v1829 = vpop.xlane.xlu0 %1828
      %v1830 = vsub.f32 %v1806, %v1822
      %v1831 = vsub.f32 %v1809, %v1825
      %v1832 = vsub.f32 %v1814, %v1829
      %v1833 = vmul.f32 %v1830, 1.442695
      %v1834 = vpow.pop %v1833
      %v1835 = vmul.f32 %v1831, 1.442695
      %v1836 = vpow.pop %v1835
      %v1837 = vmul.f32 %v1832, 1.442695
      %v1838 = vpow.pop %v1837
      %v1839 = vsel %vm1819, %v1834, 0.0
      %1840 = vadd.xlane.f32.xlu0 %v1839
      %v1841 = vpop.xlane.xlu0 %1840
      %v1842 = vsel %vm1819, %v1836, 0.0
      %1843 = vadd.xlane.f32.xlu0 %v1842
      %v1844 = vpop.xlane.xlu0 %1843
      %v1845 = vsel %vm1826, %v1838, 0.0
      %1846 = vadd.xlane.f32.xlu0 %v1845
      %v1847 = vpop.xlane.xlu0 %1846
      %v1848 = vrcp.pop %v1841
      %v1849 = vrcp.pop %v1844
      %v1850 = vrcp.pop %v1847
      %v1851 = vmul.f32 %v1834, %v1848
      %v1852 = vmul.f32 %v1836, %v1849
      %v1853 = vmul.f32 %v1838, %v1850
      %v1854 = vpack.c.bf16 %v1852, %v1851
      %v1855 = vpack.c.bf16 %v1853, %v1853
      %v1856 = vpack.c.bf16 %v1744, %v1741
      %v1857 = vpack.c.bf16 %v1749, %v1749
      %v1859 = vsel %vm1819, %v1854, 0
      %v1862 = vsel %vm1819, %v1855, 0
      %v1864 = vsel 0, 4294967295, 65535
      %v1865 = vsel %vm1406, %v1864, 0
      %v1867 = vand.u32 %v1857, %v1865
      %1869 = vmatprep.subr.bf16.mxu0 0
      %1870 = vmatpush1.bf16.msra.mxu0 %v1856
      %1871 = vmatprep.subr.bf16.mxu0 0
      %1872 = vmatpush1.bf16.msra.mxu0 %v1867
      %1873 = vmatprep.subr.bf16.mxu0 0
      %1874 = vmatpush1.bf16.msra.mxu0 0
      %1875 = vmatprep.subr.bf16.mxu0 0
      %1876 = vmatpush1.bf16.msra.mxu0 0
      %1877 = vmatprep.subr.bf16.mxu0 0
      %1878 = vmatpush1.bf16.msra.mxu0 0
      %1879 = vmatprep.subr.bf16.mxu0 0
      %1880 = vmatpush1.bf16.msra.mxu0 0
      %1881 = vmatprep.subr.bf16.mxu0 0
      %1882 = vmatpush1.bf16.msra.mxu0 0
      %1883 = vmatprep.subr.bf16.mxu0 0
      %1884 = vmatpush1.bf16.msra.mxu0 0
      %1885 = vmatprep.subr.bf16.mxu0 0
      %1886 = vmatpush1.bf16.msra.mxu0 0
      %1887 = vmatprep.subr.bf16.mxu0 0
      %1888 = vmatpush1.bf16.msra.mxu0 0
      %1889 = vmatprep.subr.bf16.mxu0 0
      %1890 = vmatpush1.bf16.msra.mxu0 0
      %1891 = vmatprep.subr.bf16.mxu0 0
      %1892 = vmatpush1.bf16.msra.mxu0 0
      %1893 = vmatprep.subr.bf16.mxu0 0
      %1894 = vmatpush1.bf16.msra.mxu0 0
      %1895 = vmatprep.subr.bf16.mxu0 0
      %1896 = vmatpush1.bf16.msra.mxu0 0
      %1897 = vmatprep.subr.bf16.mxu0 0
      %1898 = vmatpush1.bf16.msra.mxu0 0
      %1899 = vmatprep.subr.bf16.mxu0 0
      %1900 = vmatpush1.bf16.msra.mxu0 0
      %1901 = vmatprep.mubr.bf16.mxu0 0
      %1902 = vmatmul.mubr.bf16.gmra.mrb[0].mxu0 %v1859
      %v1903 = vpop.f32.mrb[0].mxu0
      %v1904 = vadd.f32 0.0, %v1903
      %v1905 = vpop.f32.mrb[0].mxu0
      %v1906 = vpop.f32.mrb[0].mxu0
      %v1907 = vadd.f32 0.0, %v1906
      %v1908 = vpop.f32.mrb[0].mxu0
      %1909 = vmatprep.mubr.bf16.mxu0 0
      %1910 = vmatmul.mubr.bf16.gmra.mrb[0].mxu0 %v1862
      %v1911 = vpop.f32.mrb[0].mxu0
      %v1912 = vadd.f32 0.0, %v1911
      %v1913 = vpop.f32.mrb[0].mxu0
      %v1914 = vpop.f32.mrb[0].mxu0
      %v1915 = vpop.f32.mrb[0].mxu0
      %1916 = vdwg.mxu0
      %1919 = vrot.lane.b32.xlu0 %v1754, 96
      %v1920 = vpop.permute.xlu0 %1919
      %1921 = vrot.lane.b32.xlu0 %v1755, 96
      %v1922 = vpop.permute.xlu0 %1921
      %1925 = vrot.lane.b32.xlu0 %v1756, 96
      %v1926 = vpop.permute.xlu0 %1925
      %1927 = vrot.lane.b32.xlu0 %v1757, 96
      %v1928 = vpop.permute.xlu0 %1927
      %v1930 = vsel %vm1758, %v1920, 0
      %v1933 = vsel %vm1758, %v1922, 0
      %v1936 = vsel %vm1758, %v1926, 0
      %v1939 = vsel %vm1758, %v1928, 0
      %1941 = vmatprep.subr.bf16.mxu0 0
      %1942 = vmatpush1.bf16.xpose.msra.mxu0 %v1936
      %1943 = vmatprep.subr.bf16.mxu0 0
      %1944 = vmatpush1.bf16.xpose.msra.mxu0 %v1939
      %1945 = vmatprep.subr.bf16.mxu0 0
      %1946 = vmatpush1.bf16.xpose.msra.mxu0 0
      %1947 = vmatprep.subr.bf16.mxu0 0
      %1948 = vmatpush1.bf16.xpose.msra.mxu0 0
      %1949 = vmatprep.subr.bf16.mxu0 0
      %1950 = vmatpush1.bf16.xpose.msra.mxu0 0
      %1951 = vmatprep.subr.bf16.mxu0 0
      %1952 = vmatpush1.bf16.xpose.msra.mxu0 0
      %1953 = vmatprep.subr.bf16.mxu0 0
      %1954 = vmatpush1.bf16.xpose.msra.mxu0 0
      %1955 = vmatprep.subr.bf16.mxu0 0
      %1956 = vmatpush1.bf16.xpose.msra.mxu0 0
      %1957 = vmatprep.subr.bf16.mxu0 0
      %1958 = vmatpush1.bf16.xpose.msra.mxu0 0
      %1959 = vmatprep.subr.bf16.mxu0 0
      %1960 = vmatpush1.bf16.xpose.msra.mxu0 0
      %1961 = vmatprep.subr.bf16.mxu0 0
      %1962 = vmatpush1.bf16.xpose.msra.mxu0 0
      %1963 = vmatprep.subr.bf16.mxu0 0
      %1964 = vmatpush1.bf16.xpose.msra.mxu0 0
      %1965 = vmatprep.subr.bf16.mxu0 0
      %1966 = vmatpush1.bf16.xpose.msra.mxu0 0
      %1967 = vmatprep.subr.bf16.mxu0 0
      %1968 = vmatpush1.bf16.xpose.msra.mxu0 0
      %1969 = vmatprep.subr.bf16.mxu0 0
      %1970 = vmatpush1.bf16.xpose.msra.mxu0 0
      %1971 = vmatprep.subr.bf16.mxu0 0
      %1972 = vmatpush1.bf16.xpose.msra.mxu0 0
      %1973 = vmatprep.mubr.bf16.mxu0 0
      %1974 = vmatmul.mubr.bf16.gmra.mrb[0].mxu0 %v1930
      %v1975 = vpop.f32.mrb[0].mxu0
      %v1976 = vadd.f32 0.0, %v1975
      %v1977 = vpop.f32.mrb[0].mxu0
      %v1978 = vpop.f32.mrb[0].mxu0
      %v1979 = vadd.f32 0.0, %v1978
      %v1980 = vpop.f32.mrb[0].mxu0
      %1981 = vmatprep.mubr.bf16.mxu0 0
      %1982 = vmatmul.mubr.bf16.gmra.mrb[0].mxu0 %v1933
      %v1983 = vpop.f32.mrb[0].mxu0
      %v1984 = vadd.f32 0.0, %v1983
      %v1985 = vpop.f32.mrb[0].mxu0
      %v1986 = vpop.f32.mrb[0].mxu0
      %v1987 = vpop.f32.mrb[0].mxu0
      %1988 = vdwg.mxu0
      %v1989 = vsel %vm1819, %v1976, -inf
      %1990 = vmax.xlane.f32.xlu0 %v1989
      %v1991 = vpop.xlane.xlu0 %1990
      %v1992 = vsel %vm1819, %v1979, -inf
      %1993 = vmax.xlane.f32.xlu0 %v1992
      %v1994 = vpop.xlane.xlu0 %1993
      %v1995 = vsel %vm1826, %v1984, -inf
      %1996 = vmax.xlane.f32.xlu0 %v1995
      %v1997 = vpop.xlane.xlu0 %1996
      %v1998 = vsub.f32 %v1976, %v1991
      %v1999 = vsub.f32 %v1979, %v1994
      %v2000 = vsub.f32 %v1984, %v1997
      %v2001 = vmul.f32 %v1998, 1.442695
      %v2002 = vpow.pop %v2001
      %v2003 = vmul.f32 %v1999, 1.442695
      %v2004 = vpow.pop %v2003
      %v2005 = vmul.f32 %v2000, 1.442695
      %v2006 = vpow.pop %v2005
      %v2007 = vsel %vm1819, %v2002, 0.0
      %2008 = vadd.xlane.f32.xlu0 %v2007
      %v2009 = vpop.xlane.xlu0 %2008
      %v2010 = vsel %vm1819, %v2004, 0.0
      %2011 = vadd.xlane.f32.xlu0 %v2010
      %v2012 = vpop.xlane.xlu0 %2011
      %v2013 = vsel %vm1826, %v2006, 0.0
      %2014 = vadd.xlane.f32.xlu0 %v2013
      %v2015 = vpop.xlane.xlu0 %2014
      %v2016 = vrcp.pop %v2009
      %v2017 = vrcp.pop %v2012
      %v2018 = vrcp.pop %v2015
      %v2019 = vmul.f32 %v2002, %v2016
      %v2020 = vmul.f32 %v2004, %v2017
      %v2021 = vmul.f32 %v2006, %v2018
      %v2022 = vpack.c.bf16 %v2020, %v2019
      %v2023 = vpack.c.bf16 %v2021, %v2021
      %2026 = vrot.lane.b32.xlu0 %v1856, 96
      %v2027 = vpop.permute.xlu0 %2026
      %2028 = vrot.lane.b32.xlu0 %v1857, 96
      %v2029 = vpop.permute.xlu0 %2028
      %v2032 = vsel %vm1819, %v2022, 0
      %v2035 = vsel %vm1819, %v2023, 0
      %v2038 = vand.u32 %v2029, %v1865
      %2040 = vmatprep.subr.bf16.mxu0 0
      %2041 = vmatpush1.bf16.msra.mxu0 %v2027
      %2042 = vmatprep.subr.bf16.mxu0 0
      %2043 = vmatpush1.bf16.msra.mxu0 %v2038
      %2044 = vmatprep.subr.bf16.mxu0 0
      %2045 = vmatpush1.bf16.msra.mxu0 0
      %2046 = vmatprep.subr.bf16.mxu0 0
      %2047 = vmatpush1.bf16.msra.mxu0 0
      %2048 = vmatprep.subr.bf16.mxu0 0
      %2049 = vmatpush1.bf16.msra.mxu0 0
      %2050 = vmatprep.subr.bf16.mxu0 0
      %2051 = vmatpush1.bf16.msra.mxu0 0
      %2052 = vmatprep.subr.bf16.mxu0 0
      %2053 = vmatpush1.bf16.msra.mxu0 0
      %2054 = vmatprep.subr.bf16.mxu0 0
      %2055 = vmatpush1.bf16.msra.mxu0 0
      %2056 = vmatprep.subr.bf16.mxu0 0
      %2057 = vmatpush1.bf16.msra.mxu0 0
      %2058 = vmatprep.subr.bf16.mxu0 0
      %2059 = vmatpush1.bf16.msra.mxu0 0
      %2060 = vmatprep.subr.bf16.mxu0 0
      %2061 = vmatpush1.bf16.msra.mxu0 0
      %2062 = vmatprep.subr.bf16.mxu0 0
      %2063 = vmatpush1.bf16.msra.mxu0 0
      %2064 = vmatprep.subr.bf16.mxu0 0
      %2065 = vmatpush1.bf16.msra.mxu0 0
      %2066 = vmatprep.subr.bf16.mxu0 0
      %2067 = vmatpush1.bf16.msra.mxu0 0
      %2068 = vmatprep.subr.bf16.mxu0 0
      %2069 = vmatpush1.bf16.msra.mxu0 0
      %2070 = vmatprep.subr.bf16.mxu0 0
      %2071 = vmatpush1.bf16.msra.mxu0 0
      %2072 = vmatprep.mubr.bf16.mxu0 0
      %2073 = vmatmul.mubr.bf16.gmra.mrb[0].mxu0 %v2032
      %v2074 = vpop.f32.mrb[0].mxu0
      %v2075 = vadd.f32 0.0, %v2074
      %v2076 = vpop.f32.mrb[0].mxu0
      %v2077 = vpop.f32.mrb[0].mxu0
      %v2078 = vadd.f32 0.0, %v2077
      %v2079 = vpop.f32.mrb[0].mxu0
      %2080 = vmatprep.mubr.bf16.mxu0 0
      %2081 = vmatmul.mubr.bf16.gmra.mrb[0].mxu0 %v2035
      %v2082 = vpop.f32.mrb[0].mxu0
      %v2083 = vadd.f32 0.0, %v2082
      %v2084 = vpop.f32.mrb[0].mxu0
      %v2085 = vpop.f32.mrb[0].mxu0
      %v2086 = vpop.f32.mrb[0].mxu0
      %2087 = vdwg.mxu0
      %2088 = vrot.lane.b32.xlu0 %v1754, 64
      %v2089 = vpop.permute.xlu0 %2088
      %2090 = vrot.lane.b32.xlu0 %v1755, 64
      %v2091 = vpop.permute.xlu0 %2090
      %2092 = vrot.lane.b32.xlu0 %v1756, 64
      %v2093 = vpop.permute.xlu0 %2092
      %2094 = vrot.lane.b32.xlu0 %v1757, 64
      %v2095 = vpop.permute.xlu0 %2094
      %v2097 = vsel %vm1758, %v2089, 0
      %v2100 = vsel %vm1758, %v2091, 0
      %v2103 = vsel %vm1758, %v2093, 0
      %v2106 = vsel %vm1758, %v2095, 0
      %2108 = vmatprep.subr.bf16.mxu0 0
      %2109 = vmatpush1.bf16.xpose.msra.mxu0 %v2103
      %2110 = vmatprep.subr.bf16.mxu0 0
      %2111 = vmatpush1.bf16.xpose.msra.mxu0 %v2106
      %2112 = vmatprep.subr.bf16.mxu0 0
      %2113 = vmatpush1.bf16.xpose.msra.mxu0 0
      %2114 = vmatprep.subr.bf16.mxu0 0
      %2115 = vmatpush1.bf16.xpose.msra.mxu0 0
      %2116 = vmatprep.subr.bf16.mxu0 0
      %2117 = vmatpush1.bf16.xpose.msra.mxu0 0
      %2118 = vmatprep.subr.bf16.mxu0 0
      %2119 = vmatpush1.bf16.xpose.msra.mxu0 0
      %2120 = vmatprep.subr.bf16.mxu0 0
      %2121 = vmatpush1.bf16.xpose.msra.mxu0 0
      %2122 = vmatprep.subr.bf16.mxu0 0
      %2123 = vmatpush1.bf16.xpose.msra.mxu0 0
      %2124 = vmatprep.subr.bf16.mxu0 0
      %2125 = vmatpush1.bf16.xpose.msra.mxu0 0
      %2126 = vmatprep.subr.bf16.mxu0 0
      %2127 = vmatpush1.bf16.xpose.msra.mxu0 0
      %2128 = vmatprep.subr.bf16.mxu0 0
      %2129 = vmatpush1.bf16.xpose.msra.mxu0 0
      %2130 = vmatprep.subr.bf16.mxu0 0
      %2131 = vmatpush1.bf16.xpose.msra.mxu0 0
      %2132 = vmatprep.subr.bf16.mxu0 0
      %2133 = vmatpush1.bf16.xpose.msra.mxu0 0
      %2134 = vmatprep.subr.bf16.mxu0 0
      %2135 = vmatpush1.bf16.xpose.msra.mxu0 0
      %2136 = vmatprep.subr.bf16.mxu0 0
      %2137 = vmatpush1.bf16.xpose.msra.mxu0 0
      %2138 = vmatprep.subr.bf16.mxu0 0
      %2139 = vmatpush1.bf16.xpose.msra.mxu0 0
      %2140 = vmatprep.mubr.bf16.mxu0 0
      %2141 = vmatmul.mubr.bf16.gmra.mrb[0].mxu0 %v2097
      %v2142 = vpop.f32.mrb[0].mxu0
      %v2143 = vadd.f32 0.0, %v2142
      %v2144 = vpop.f32.mrb[0].mxu0
      %v2145 = vpop.f32.mrb[0].mxu0
      %v2146 = vadd.f32 0.0, %v2145
      %v2147 = vpop.f32.mrb[0].mxu0
      %2148 = vmatprep.mubr.bf16.mxu0 0
      %2149 = vmatmul.mubr.bf16.gmra.mrb[0].mxu0 %v2100
      %v2150 = vpop.f32.mrb[0].mxu0
      %v2151 = vadd.f32 0.0, %v2150
      %v2152 = vpop.f32.mrb[0].mxu0
      %v2153 = vpop.f32.mrb[0].mxu0
      %v2154 = vpop.f32.mrb[0].mxu0
      %2155 = vdwg.mxu0
      %v2156 = vsel %vm1819, %v2143, -inf
      %2157 = vmax.xlane.f32.xlu0 %v2156
      %v2158 = vpop.xlane.xlu0 %2157
      %v2159 = vsel %vm1819, %v2146, -inf
      %2160 = vmax.xlane.f32.xlu0 %v2159
      %v2161 = vpop.xlane.xlu0 %2160
      %v2162 = vsel %vm1826, %v2151, -inf
      %2163 = vmax.xlane.f32.xlu0 %v2162
      %v2164 = vpop.xlane.xlu0 %2163
      %v2165 = vsub.f32 %v2143, %v2158
      %v2166 = vsub.f32 %v2146, %v2161
      %v2167 = vsub.f32 %v2151, %v2164
      %v2168 = vmul.f32 %v2165, 1.442695
      %v2169 = vpow.pop %v2168
      %v2170 = vmul.f32 %v2166, 1.442695
      %v2171 = vpow.pop %v2170
      %v2172 = vmul.f32 %v2167, 1.442695
      %v2173 = vpow.pop %v2172
      %v2174 = vsel %vm1819, %v2169, 0.0
      %2175 = vadd.xlane.f32.xlu0 %v2174
      %v2176 = vpop.xlane.xlu0 %2175
      %v2177 = vsel %vm1819, %v2171, 0.0
      %2178 = vadd.xlane.f32.xlu0 %v2177
      %v2179 = vpop.xlane.xlu0 %2178
      %v2180 = vsel %vm1826, %v2173, 0.0
      %2181 = vadd.xlane.f32.xlu0 %v2180
      %v2182 = vpop.xlane.xlu0 %2181
      %v2183 = vrcp.pop %v2176
      %v2184 = vrcp.pop %v2179
      %v2185 = vrcp.pop %v2182
      %v2186 = vmul.f32 %v2169, %v2183
      %v2187 = vmul.f32 %v2171, %v2184
      %v2188 = vmul.f32 %v2173, %v2185
      %v2189 = vpack.c.bf16 %v2187, %v2186
      %v2190 = vpack.c.bf16 %v2188, %v2188
      %2191 = vrot.lane.b32.xlu0 %v1856, 64
      %v2192 = vpop.permute.xlu0 %2191
      %2193 = vrot.lane.b32.xlu0 %v1857, 64
      %v2194 = vpop.permute.xlu0 %2193
      %v2197 = vsel %vm1819, %v2189, 0
      %v2200 = vsel %vm1819, %v2190, 0
      %v2203 = vand.u32 %v2194, %v1865
      %2205 = vmatprep.subr.bf16.mxu0 0
      %2206 = vmatpush1.bf16.msra.mxu0 %v2192
      %2207 = vmatprep.subr.bf16.mxu0 0
      %2208 = vmatpush1.bf16.msra.mxu0 %v2203
      %2209 = vmatprep.subr.bf16.mxu0 0
      %2210 = vmatpush1.bf16.msra.mxu0 0
      %2211 = vmatprep.subr.bf16.mxu0 0
      %2212 = vmatpush1.bf16.msra.mxu0 0
      %2213 = vmatprep.subr.bf16.mxu0 0
      %2214 = vmatpush1.bf16.msra.mxu0 0
      %2215 = vmatprep.subr.bf16.mxu0 0
      %2216 = vmatpush1.bf16.msra.mxu0 0
      %2217 = vmatprep.subr.bf16.mxu0 0
      %2218 = vmatpush1.bf16.msra.mxu0 0
      %2219 = vmatprep.subr.bf16.mxu0 0
      %2220 = vmatpush1.bf16.msra.mxu0 0
      %2221 = vmatprep.subr.bf16.mxu0 0
      %2222 = vmatpush1.bf16.msra.mxu0 0
      %2223 = vmatprep.subr.bf16.mxu0 0
      %2224 = vmatpush1.bf16.msra.mxu0 0
      %2225 = vmatprep.subr.bf16.mxu0 0
      %2226 = vmatpush1.bf16.msra.mxu0 0
      %2227 = vmatprep.subr.bf16.mxu0 0
      %2228 = vmatpush1.bf16.msra.mxu0 0
      %2229 = vmatprep.subr.bf16.mxu0 0
      %2230 = vmatpush1.bf16.msra.mxu0 0
      %2231 = vmatprep.subr.bf16.mxu0 0
      %2232 = vmatpush1.bf16.msra.mxu0 0
      %2233 = vmatprep.subr.bf16.mxu0 0
      %2234 = vmatpush1.bf16.msra.mxu0 0
      %2235 = vmatprep.subr.bf16.mxu0 0
      %2236 = vmatpush1.bf16.msra.mxu0 0
      %2237 = vmatprep.mubr.bf16.mxu0 0
      %2238 = vmatmul.mubr.bf16.gmra.mrb[0].mxu0 %v2197
      %v2239 = vpop.f32.mrb[0].mxu0
      %v2240 = vadd.f32 0.0, %v2239
      %v2241 = vpop.f32.mrb[0].mxu0
      %v2242 = vpop.f32.mrb[0].mxu0
      %v2243 = vadd.f32 0.0, %v2242
      %v2244 = vpop.f32.mrb[0].mxu0
      %2245 = vmatprep.mubr.bf16.mxu0 0
      %2246 = vmatmul.mubr.bf16.gmra.mrb[0].mxu0 %v2200
      %v2247 = vpop.f32.mrb[0].mxu0
      %v2248 = vadd.f32 0.0, %v2247
      %v2249 = vpop.f32.mrb[0].mxu0
      %v2250 = vpop.f32.mrb[0].mxu0
      %v2251 = vpop.f32.mrb[0].mxu0
      %2252 = vdwg.mxu0
      %2253 = vrot.lane.b32.xlu0 %v1754, 32
      %v2254 = vpop.permute.xlu0 %2253
      %2255 = vrot.lane.b32.xlu0 %v1755, 32
      %v2256 = vpop.permute.xlu0 %2255
      %2257 = vrot.lane.b32.xlu0 %v1756, 32
      %v2258 = vpop.permute.xlu0 %2257
      %2259 = vrot.lane.b32.xlu0 %v1757, 32
      %v2260 = vpop.permute.xlu0 %2259
      %v2262 = vsel %vm1758, %v2254, 0
      %v2265 = vsel %vm1758, %v2256, 0
      %v2268 = vsel %vm1758, %v2258, 0
      %v2271 = vsel %vm1758, %v2260, 0
      %2273 = vmatprep.subr.bf16.mxu0 0
      %2274 = vmatpush1.bf16.xpose.msra.mxu0 %v2268
      %2275 = vmatprep.subr.bf16.mxu0 0
      %2276 = vmatpush1.bf16.xpose.msra.mxu0 %v2271
      %2277 = vmatprep.subr.bf16.mxu0 0
      %2278 = vmatpush1.bf16.xpose.msra.mxu0 0
      %2279 = vmatprep.subr.bf16.mxu0 0
      %2280 = vmatpush1.bf16.xpose.msra.mxu0 0
      %2281 = vmatprep.subr.bf16.mxu0 0
      %2282 = vmatpush1.bf16.xpose.msra.mxu0 0
      %2283 = vmatprep.subr.bf16.mxu0 0
      %2284 = vmatpush1.bf16.xpose.msra.mxu0 0
      %2285 = vmatprep.subr.bf16.mxu0 0
      %2286 = vmatpush1.bf16.xpose.msra.mxu0 0
      %2287 = vmatprep.subr.bf16.mxu0 0
      %2288 = vmatpush1.bf16.xpose.msra.mxu0 0
      %2289 = vmatprep.subr.bf16.mxu0 0
      %2290 = vmatpush1.bf16.xpose.msra.mxu0 0
      %2291 = vmatprep.subr.bf16.mxu0 0
      %2292 = vmatpush1.bf16.xpose.msra.mxu0 0
      %2293 = vmatprep.subr.bf16.mxu0 0
      %2294 = vmatpush1.bf16.xpose.msra.mxu0 0
      %2295 = vmatprep.subr.bf16.mxu0 0
      %2296 = vmatpush1.bf16.xpose.msra.mxu0 0
      %2297 = vmatprep.subr.bf16.mxu0 0
      %2298 = vmatpush1.bf16.xpose.msra.mxu0 0
      %2299 = vmatprep.subr.bf16.mxu0 0
      %2300 = vmatpush1.bf16.xpose.msra.mxu0 0
      %2301 = vmatprep.subr.bf16.mxu0 0
      %2302 = vmatpush1.bf16.xpose.msra.mxu0 0
      %2303 = vmatprep.subr.bf16.mxu0 0
      %2304 = vmatpush1.bf16.xpose.msra.mxu0 0
      %2305 = vmatprep.mubr.bf16.mxu0 0
      %2306 = vmatmul.mubr.bf16.gmra.mrb[0].mxu0 %v2262
      %v2307 = vpop.f32.mrb[0].mxu0
      %v2308 = vadd.f32 0.0, %v2307
      %v2309 = vpop.f32.mrb[0].mxu0
      %v2310 = vpop.f32.mrb[0].mxu0
      %v2311 = vadd.f32 0.0, %v2310
      %v2312 = vpop.f32.mrb[0].mxu0
      %2313 = vmatprep.mubr.bf16.mxu0 0
      %2314 = vmatmul.mubr.bf16.gmra.mrb[0].mxu0 %v2265
      %v2315 = vpop.f32.mrb[0].mxu0
      %v2316 = vadd.f32 0.0, %v2315
      %v2317 = vpop.f32.mrb[0].mxu0
      %v2318 = vpop.f32.mrb[0].mxu0
      %v2319 = vpop.f32.mrb[0].mxu0
      %2320 = vdwg.mxu0
      %v2321 = vsel %vm1819, %v2308, -inf
      %2322 = vmax.xlane.f32.xlu0 %v2321
      %v2323 = vpop.xlane.xlu0 %2322
      %v2324 = vsel %vm1819, %v2311, -inf
      %2325 = vmax.xlane.f32.xlu0 %v2324
      %v2326 = vpop.xlane.xlu0 %2325
      %v2327 = vsel %vm1826, %v2316, -inf
      %2328 = vmax.xlane.f32.xlu0 %v2327
      %v2329 = vpop.xlane.xlu0 %2328
      %v2330 = vsub.f32 %v2308, %v2323
      %v2331 = vsub.f32 %v2311, %v2326
      %v2332 = vsub.f32 %v2316, %v2329
      %v2333 = vmul.f32 %v2330, 1.442695
      %v2334 = vpow.pop %v2333
      %v2335 = vmul.f32 %v2331, 1.442695
      %v2336 = vpow.pop %v2335
      %v2337 = vmul.f32 %v2332, 1.442695
      %v2338 = vpow.pop %v2337
      %v2339 = vsel %vm1819, %v2334, 0.0
      %2340 = vadd.xlane.f32.xlu0 %v2339
      %v2341 = vpop.xlane.xlu0 %2340
      %v2342 = vsel %vm1819, %v2336, 0.0
      %2343 = vadd.xlane.f32.xlu0 %v2342
      %v2344 = vpop.xlane.xlu0 %2343
      %v2345 = vsel %vm1826, %v2338, 0.0
      %2346 = vadd.xlane.f32.xlu0 %v2345
      %v2347 = vpop.xlane.xlu0 %2346
      %v2348 = vrcp.pop %v2341
      %v2349 = vrcp.pop %v2344
      %v2350 = vrcp.pop %v2347
      %v2351 = vmul.f32 %v2334, %v2348
      %v2352 = vmul.f32 %v2336, %v2349
      %v2353 = vmul.f32 %v2338, %v2350
      %v2354 = vpack.c.bf16 %v2352, %v2351
      %v2355 = vpack.c.bf16 %v2353, %v2353
      %2356 = vrot.lane.b32.xlu0 %v1856, 32
      %v2357 = vpop.permute.xlu0 %2356
      %2358 = vrot.lane.b32.xlu0 %v1857, 32
      %v2359 = vpop.permute.xlu0 %2358
      %v2362 = vsel %vm1819, %v2354, 0
      %v2365 = vsel %vm1819, %v2355, 0
      %v2368 = vand.u32 %v2359, %v1865
      %2370 = vmatprep.subr.bf16.mxu0 0
      %2371 = vmatpush1.bf16.msra.mxu0 %v2357
      %2372 = vmatprep.subr.bf16.mxu0 0
      %2373 = vmatpush1.bf16.msra.mxu0 %v2368
      %2374 = vmatprep.subr.bf16.mxu0 0
      %2375 = vmatpush1.bf16.msra.mxu0 0
      %2376 = vmatprep.subr.bf16.mxu0 0
      %2377 = vmatpush1.bf16.msra.mxu0 0
      %2378 = vmatprep.subr.bf16.mxu0 0
      %2379 = vmatpush1.bf16.msra.mxu0 0
      %2380 = vmatprep.subr.bf16.mxu0 0
      %2381 = vmatpush1.bf16.msra.mxu0 0
      %2382 = vmatprep.subr.bf16.mxu0 0
      %2383 = vmatpush1.bf16.msra.mxu0 0
      %2384 = vmatprep.subr.bf16.mxu0 0
      %2385 = vmatpush1.bf16.msra.mxu0 0
      %2386 = vmatprep.subr.bf16.mxu0 0
      %2387 = vmatpush1.bf16.msra.mxu0 0
      %2388 = vmatprep.subr.bf16.mxu0 0
      %2389 = vmatpush1.bf16.msra.mxu0 0
      %2390 = vmatprep.subr.bf16.mxu0 0
      %2391 = vmatpush1.bf16.msra.mxu0 0
      %2392 = vmatprep.subr.bf16.mxu0 0
      %2393 = vmatpush1.bf16.msra.mxu0 0
      %2394 = vmatprep.subr.bf16.mxu0 0
      %2395 = vmatpush1.bf16.msra.mxu0 0
      %2396 = vmatprep.subr.bf16.mxu0 0
      %2397 = vmatpush1.bf16.msra.mxu0 0
      %2398 = vmatprep.subr.bf16.mxu0 0
      %2399 = vmatpush1.bf16.msra.mxu0 0
      %2400 = vmatprep.subr.bf16.mxu0 0
      %2401 = vmatpush1.bf16.msra.mxu0 0
      %2402 = vmatprep.mubr.bf16.mxu0 0
      %2403 = vmatmul.mubr.bf16.gmra.mrb[0].mxu0 %v2362
      %v2404 = vpop.f32.mrb[0].mxu0
      %v2405 = vadd.f32 0.0, %v2404
      %v2406 = vpop.f32.mrb[0].mxu0
      %v2407 = vpop.f32.mrb[0].mxu0
      %v2408 = vadd.f32 0.0, %v2407
      %v2409 = vpop.f32.mrb[0].mxu0
      %2410 = vmatprep.mubr.bf16.mxu0 0
      %2411 = vmatmul.mubr.bf16.gmra.mrb[0].mxu0 %v2365
      %v2412 = vpop.f32.mrb[0].mxu0
      %v2413 = vadd.f32 0.0, %v2412
      %v2414 = vpop.f32.mrb[0].mxu0
      %v2415 = vpop.f32.mrb[0].mxu0
      %v2416 = vpop.f32.mrb[0].mxu0
      %2417 = vdwg.mxu0
      %2421 = vrot.lane.b32.xlu0 %v2075, 32
      %v2422 = vpop.permute.xlu0 %2421
      %2423 = vrot.lane.b32.xlu0 %v2078, 32
      %v2424 = vpop.permute.xlu0 %2423
      %2425 = vrot.lane.b32.xlu0 %v2083, 32
      %v2426 = vpop.permute.xlu0 %2425
      %2433 = vrot.lane.b32.xlu0 %v2240, 64
      %v2434 = vpop.permute.xlu0 %2433
      %2435 = vrot.lane.b32.xlu0 %v2243, 64
      %v2436 = vpop.permute.xlu0 %2435
      %2437 = vrot.lane.b32.xlu0 %v2248, 64
      %v2438 = vpop.permute.xlu0 %2437
      %2445 = vrot.lane.b32.xlu0 %v2405, 96
      %v2446 = vpop.permute.xlu0 %2445
      %2447 = vrot.lane.b32.xlu0 %v2408, 96
      %v2448 = vpop.permute.xlu0 %2447
      %2449 = vrot.lane.b32.xlu0 %v2413, 96
      %v2450 = vpop.permute.xlu0 %2449
      %v2454 = vsel %vm1758, %v1904, %v2422
      %v2455 = vsel %vm1758, %v1907, %v2424
      %v2456 = vsel %vm1758, %v1912, %v2426
      %vm2457 = vcmask 523264
      %v2458 = vsel %vm2457, %v2454, %v2434
      %v2459 = vsel %vm2457, %v2455, %v2436
      %v2460 = vsel %vm2457, %v2456, %v2438
      %vm2461 = vcmask 785408
      %v2462 = vsel %vm2461, %v2458, %v2446
      %v2463 = vsel %vm2461, %v2459, %v2448
      %v2464 = vsel %vm2461, %v2460, %v2450
      %v2465 = vpack.c.bf16 %v2463, %v2462
      %v2466 = vpack.c.bf16 %v2464, %v2464
      %v2467 = vld [vmem:[%s9] sm:$0xf]
      %v2468 = vld [vmem:[%s9 + $0x4] sm:$0xf]
      %v2469 = vld [vmem:[%s9 + $0x8] sm:$0xf]
      %v2470 = vld [vmem:[%s9 + $0xc] sm:$0xf]
      %v2471 = vld [vmem:[%s9 + $0x10] sm:$0xf]
      %v2472 = vld [vmem:[%s9 + $0x14] sm:$0xf]
      %v2473 = vld [vmem:[%s9 + $0x18] sm:$0xf]
      %v2474 = vld [vmem:[%s9 + $0x1c] sm:$0xf]
      %v2475 = vld [vmem:[%s9 + $0x20] sm:$0xf]
      %v2476 = vld [vmem:[%s9 + $0x24] sm:$0xf]
      %v2477 = vld [vmem:[%s9 + $0x28] sm:$0xf]
      %v2478 = vld [vmem:[%s9 + $0x2c] sm:$0xf]
      %v2479 = vld [vmem:[%s9 + $0x30] sm:$0xf]
      %v2480 = vld [vmem:[%s9 + $0x34] sm:$0xf]
      %v2481 = vld [vmem:[%s9 + $0x38] sm:$0xf]
      %v2482 = vld [vmem:[%s9 + $0x3c] sm:$0xf]
      %v2499 = vunpack.c.l.b16 %v2467
      %v2500 = vunpack.c.l.b16 %v2468
      %v2501 = vunpack.c.l.b16 %v2469
      %v2502 = vunpack.c.l.b16 %v2470
      %v2503 = vunpack.c.l.b16 %v2471
      %v2504 = vunpack.c.l.b16 %v2472
      %v2505 = vunpack.c.l.b16 %v2473
      %v2506 = vunpack.c.l.b16 %v2474
      %v2507 = vunpack.c.l.b16 %v2475
      %v2508 = vunpack.c.l.b16 %v2476
      %v2509 = vunpack.c.l.b16 %v2477
      %v2510 = vunpack.c.l.b16 %v2478
      %v2511 = vunpack.c.l.b16 %v2479
      %v2512 = vunpack.c.l.b16 %v2480
      %v2513 = vunpack.c.l.b16 %v2481
      %v2514 = vunpack.c.l.b16 %v2482
      %v2515 = vpack.c.b16 %v2500, %v2499
      %v2516 = vpack.c.b16 %v2502, %v2501
      %v2517 = vpack.c.b16 %v2504, %v2503
      %v2518 = vpack.c.b16 %v2506, %v2505
      %v2519 = vpack.c.b16 %v2508, %v2507
      %v2520 = vpack.c.b16 %v2510, %v2509
      %v2521 = vpack.c.b16 %v2512, %v2511
      %v2522 = vpack.c.b16 %v2514, %v2513
      %2531 = vmatprep.subr.bf16.mxu0 0
      %2532 = vmatpush1.bf16.msra.mxu0 %v2515
      %2533 = vmatprep.subr.bf16.mxu0 0
      %2534 = vmatpush1.bf16.msra.mxu0 %v2516
      %2535 = vmatprep.subr.bf16.mxu0 0
      %2536 = vmatpush1.bf16.msra.mxu0 %v2517
      %2537 = vmatprep.subr.bf16.mxu0 0
      %2538 = vmatpush1.bf16.msra.mxu0 %v2518
      %2539 = vmatprep.subr.bf16.mxu0 0
      %2540 = vmatpush1.bf16.msra.mxu0 %v2519
      %2541 = vmatprep.subr.bf16.mxu0 0
      %2542 = vmatpush1.bf16.msra.mxu0 %v2520
      %2543 = vmatprep.subr.bf16.mxu0 0
      %2544 = vmatpush1.bf16.msra.mxu0 %v2521
      %2545 = vmatprep.subr.bf16.mxu0 0
      %2546 = vmatpush1.bf16.msra.mxu0 %v2522
      %2547 = vmatprep.subr.bf16.mxu0 0
      %2548 = vmatpush1.bf16.msra.mxu0 0
      %2549 = vmatprep.subr.bf16.mxu0 0
      %2550 = vmatpush1.bf16.msra.mxu0 0
      %2551 = vmatprep.subr.bf16.mxu0 0
      %2552 = vmatpush1.bf16.msra.mxu0 0
      %2553 = vmatprep.subr.bf16.mxu0 0
      %2554 = vmatpush1.bf16.msra.mxu0 0
      %2555 = vmatprep.subr.bf16.mxu0 0
      %2556 = vmatpush1.bf16.msra.mxu0 0
      %2557 = vmatprep.subr.bf16.mxu0 0
      %2558 = vmatpush1.bf16.msra.mxu0 0
      %2559 = vmatprep.subr.bf16.mxu0 0
      %2560 = vmatpush1.bf16.msra.mxu0 0
      %2561 = vmatprep.subr.bf16.mxu0 0
      %2562 = vmatpush1.bf16.msra.mxu0 0
      %2563 = vmatprep.mubr.bf16.mxu0 0
      %2564 = vmatmul.mubr.bf16.gmra.mrb[0].mxu0 %v2465
      %v2565 = vpop.f32.mrb[0].mxu0
      %v2566 = vadd.f32 0.0, %v2565
      %v2567 = vpop.f32.mrb[0].mxu0
      %v2568 = vpop.f32.mrb[0].mxu0
      %v2569 = vadd.f32 0.0, %v2568
      %v2570 = vpop.f32.mrb[0].mxu0
      %2571 = vmatprep.mubr.bf16.mxu0 0
      %2572 = vmatmul.mubr.bf16.gmra.mrb[0].mxu0 %v2466
      %v2573 = vpop.f32.mrb[0].mxu0
      %v2574 = vadd.f32 0.0, %v2573
      %v2575 = vpop.f32.mrb[0].mxu0
      %v2576 = vpop.f32.mrb[0].mxu0
      %v2577 = vpop.f32.mrb[0].mxu0
      %2578 = vdwg.mxu0
      %v2579 = vadd.f32 %v1417, %v2566
      %v2580 = vadd.f32 %v1418, %v2569
      %v2581 = vadd.f32 %v1419, %v2574
      %v2582 = vld [vmem:[%s10] sm:$0x1]
      %v2584 = vlaneseq
      %v2585 = vshrl.u32 %v2584, 7
      %v2586 = vsub.s32 0, %v2585
      %v2587 = vrot.slane %v2582, %v2586
      %v2589 = vadd.f32 %v2579, %v2587
      %v2590 = vadd.f32 %v2580, %v2587
      %v2591 = vadd.f32 %v2581, %v2587
      %v2592 = vld [vmem:[%s11] sm:$0x1]
      %v2593 = vld [vmem:[%s12] sm:$0x1]
      %2594 = vadd.xlane.f32.xlu0 %v2589
      %v2595 = vpop.xlane.xlu0 %2594
      %2596 = vadd.xlane.f32.xlu0 %v2590
      %v2597 = vpop.xlane.xlu0 %2596
      %v2598 = vsel %vm1406, %v2591, 0.0
      %2599 = vadd.xlane.f32.xlu0 %v2598
      %v2600 = vpop.xlane.xlu0 %2599
      %v2601 = vmul.f32 %v2595, %v1429
      %v2602 = vmul.f32 %v2597, %v1429
      %v2603 = vmul.f32 %v2600, %v1429
      %v2604 = vsub.f32 %v2589, %v2601
      %v2605 = vsub.f32 %v2590, %v2602
      %v2606 = vsub.f32 %v2591, %v2603
      %v2607 = vmul.f32 %v2604, %v2604
      %v2608 = vmul.f32 %v2605, %v2605
      %v2609 = vmul.f32 %v2606, %v2606
      %2610 = vadd.xlane.f32.xlu0 %v2607
      %v2611 = vpop.xlane.xlu0 %2610
      %2612 = vadd.xlane.f32.xlu0 %v2608
      %v2613 = vpop.xlane.xlu0 %2612
      %v2614 = vsel %vm1406, %v2609, 0.0
      %2615 = vadd.xlane.f32.xlu0 %v2614
      %v2616 = vpop.xlane.xlu0 %2615
      %v2617 = vmul.f32 %v2611, %v1429
      %v2618 = vmul.f32 %v2613, %v1429
      %v2619 = vmul.f32 %v2616, %v1429
      %v2620 = vadd.f32 %v2617, 1e-06
      %v2621 = vadd.f32 %v2618, 1e-06
      %v2622 = vadd.f32 %v2619, 1e-06
      %v2623 = vrsqrt.pop %v2620
      %v2624 = vrsqrt.pop %v2621
      %v2625 = vrsqrt.pop %v2622
      %v2626 = vmul.f32 %v2604, %v2623
      %v2627 = vmul.f32 %v2605, %v2624
      %v2628 = vmul.f32 %v2606, %v2625
      %v2630 = vlaneseq
      %v2631 = vshrl.u32 %v2630, 7
      %v2632 = vsub.s32 0, %v2631
      %v2633 = vrot.slane %v2592, %v2632
      %v2635 = vmul.f32 %v2626, %v2633
      %v2636 = vmul.f32 %v2627, %v2633
      %v2637 = vmul.f32 %v2628, %v2633
      %v2639 = vlaneseq
      %v2640 = vshrl.u32 %v2639, 7
      %v2641 = vsub.s32 0, %v2640
      %v2642 = vrot.slane %v2593, %v2641
      %v2644 = vadd.f32 %v2635, %v2642
      %v2645 = vadd.f32 %v2636, %v2642
      %v2646 = vadd.f32 %v2637, %v2642
      %v2647 = vpack.c.bf16 %v2645, %v2644
      %v2648 = vpack.c.bf16 %v2646, %v2646
      %v2649 = vld [vmem:[%s13] sm:$0xff]
      %v2650 = vld [vmem:[%s13 + $0x8] sm:$0xff]
      %v2651 = vld [vmem:[%s13 + $0x10] sm:$0xff]
      %v2652 = vld [vmem:[%s13 + $0x18] sm:$0xff]
      %v2653 = vld [vmem:[%s13 + $0x20] sm:$0xff]
      %v2654 = vld [vmem:[%s13 + $0x28] sm:$0xff]
      %v2655 = vld [vmem:[%s13 + $0x30] sm:$0xff]
      %v2656 = vld [vmem:[%s13 + $0x38] sm:$0xff]
      %v2657 = vld [vmem:[%s13 + $0x40] sm:$0xff]
      %v2658 = vld [vmem:[%s13 + $0x48] sm:$0xff]
      %v2659 = vld [vmem:[%s13 + $0x50] sm:$0xff]
      %v2660 = vld [vmem:[%s13 + $0x58] sm:$0xff]
      %v2661 = vld [vmem:[%s13 + $0x60] sm:$0xff]
      %v2662 = vld [vmem:[%s13 + $0x68] sm:$0xff]
      %v2663 = vld [vmem:[%s13 + $0x70] sm:$0xff]
      %v2664 = vld [vmem:[%s13 + $0x78] sm:$0xff]
      %v2665 = vld [vmem:[%s14] sm:$0x3]
      %v2667 = vlaneseq
      %v2668 = vshrl.u32 %v2667, 7
      %v2669 = vsub.s32 0, %v2668
      %v2670 = vrot.slane %v2665, %v2669
      %v2671 = vlaneseq
      %v2672 = vshrl.u32 %v2671, 7
      %v2673 = vsub.s32 1, %v2672
      %v2674 = vrot.slane %v2665, %v2673
      %v2693 = vunpack.c.l.b16 %v2649
      %v2694 = vunpack.c.h.b16 %v2649
      %v2695 = vunpack.c.l.b16 %v2650
      %v2696 = vunpack.c.h.b16 %v2650
      %v2697 = vunpack.c.l.b16 %v2651
      %v2698 = vunpack.c.h.b16 %v2651
      %v2699 = vunpack.c.l.b16 %v2652
      %v2700 = vunpack.c.h.b16 %v2652
      %v2701 = vunpack.c.l.b16 %v2653
      %v2702 = vunpack.c.h.b16 %v2653
      %v2703 = vunpack.c.l.b16 %v2654
      %v2704 = vunpack.c.h.b16 %v2654
      %v2705 = vunpack.c.l.b16 %v2655
      %v2706 = vunpack.c.h.b16 %v2655
      %v2707 = vunpack.c.l.b16 %v2656
      %v2708 = vunpack.c.h.b16 %v2656
      %v2709 = vunpack.c.l.b16 %v2657
      %v2710 = vunpack.c.h.b16 %v2657
      %v2711 = vunpack.c.l.b16 %v2658
      %v2712 = vunpack.c.h.b16 %v2658
      %v2713 = vunpack.c.l.b16 %v2659
      %v2714 = vunpack.c.h.b16 %v2659
      %v2715 = vunpack.c.l.b16 %v2660
      %v2716 = vunpack.c.h.b16 %v2660
      %v2717 = vunpack.c.l.b16 %v2661
      %v2718 = vunpack.c.h.b16 %v2661
      %v2719 = vunpack.c.l.b16 %v2662
      %v2720 = vunpack.c.h.b16 %v2662
      %v2721 = vunpack.c.l.b16 %v2663
      %v2722 = vunpack.c.h.b16 %v2663
      %v2723 = vunpack.c.l.b16 %v2664
      %v2724 = vunpack.c.h.b16 %v2664
      %v2725 = vpack.c.b16 %v2695, %v2693
      %v2726 = vpack.c.b16 %v2696, %v2694
      %v2727 = vpack.c.b16 %v2699, %v2697
      %v2728 = vpack.c.b16 %v2700, %v2698
      %v2729 = vpack.c.b16 %v2703, %v2701
      %v2730 = vpack.c.b16 %v2704, %v2702
      %v2731 = vpack.c.b16 %v2707, %v2705
      %v2732 = vpack.c.b16 %v2708, %v2706
      %v2733 = vpack.c.b16 %v2711, %v2709
      %v2734 = vpack.c.b16 %v2712, %v2710
      %v2735 = vpack.c.b16 %v2715, %v2713
      %v2736 = vpack.c.b16 %v2716, %v2714
      %v2737 = vpack.c.b16 %v2719, %v2717
      %v2738 = vpack.c.b16 %v2720, %v2718
      %v2739 = vpack.c.b16 %v2723, %v2721
      %v2740 = vpack.c.b16 %v2724, %v2722
      %2757 = vmatprep.subr.bf16.mxu0 %v2726
      %2758 = vmatpush1.bf16.msra.mxu0 %v2725
      %2759 = vmatprep.subr.bf16.mxu0 %v2728
      %2760 = vmatpush1.bf16.msra.mxu0 %v2727
      %2761 = vmatprep.subr.bf16.mxu0 %v2730
      %2762 = vmatpush1.bf16.msra.mxu0 %v2729
      %2763 = vmatprep.subr.bf16.mxu0 %v2732
      %2764 = vmatpush1.bf16.msra.mxu0 %v2731
      %2765 = vmatprep.subr.bf16.mxu0 %v2734
      %2766 = vmatpush1.bf16.msra.mxu0 %v2733
      %2767 = vmatprep.subr.bf16.mxu0 %v2736
      %2768 = vmatpush1.bf16.msra.mxu0 %v2735
      %2769 = vmatprep.subr.bf16.mxu0 %v2738
      %2770 = vmatpush1.bf16.msra.mxu0 %v2737
      %2771 = vmatprep.subr.bf16.mxu0 %v2740
      %2772 = vmatpush1.bf16.msra.mxu0 %v2739
      %2773 = vmatprep.subr.bf16.mxu0 0
      %2774 = vmatpush1.bf16.msra.mxu0 0
      %2775 = vmatprep.subr.bf16.mxu0 0
      %2776 = vmatpush1.bf16.msra.mxu0 0
      %2777 = vmatprep.subr.bf16.mxu0 0
      %2778 = vmatpush1.bf16.msra.mxu0 0
      %2779 = vmatprep.subr.bf16.mxu0 0
      %2780 = vmatpush1.bf16.msra.mxu0 0
      %2781 = vmatprep.subr.bf16.mxu0 0
      %2782 = vmatpush1.bf16.msra.mxu0 0
      %2783 = vmatprep.subr.bf16.mxu0 0
      %2784 = vmatpush1.bf16.msra.mxu0 0
      %2785 = vmatprep.subr.bf16.mxu0 0
      %2786 = vmatpush1.bf16.msra.mxu0 0
      %2787 = vmatprep.subr.bf16.mxu0 0
      %2788 = vmatpush1.bf16.msra.mxu0 0
      %2789 = vmatprep.mubr.bf16.mxu0 0
      %2790 = vmatmul.mubr.bf16.gmra.mrb[0].mxu0 %v2647
      %v2791 = vpop.f32.mrb[0].mxu0
      %v2792 = vadd.f32 %v2670, %v2791
      %v2793 = vpop.f32.mrb[0].mxu0
      %v2794 = vadd.f32 %v2674, %v2793
      %v2795 = vpop.f32.mrb[0].mxu0
      %v2796 = vadd.f32 %v2670, %v2795
      %v2797 = vpop.f32.mrb[0].mxu0
      %v2798 = vadd.f32 %v2674, %v2797
      %2799 = vmatprep.mubr.bf16.mxu0 0
      %2800 = vmatmul.mubr.bf16.gmra.mrb[0].mxu0 %v2648
      %v2801 = vpop.f32.mrb[0].mxu0
      %v2802 = vadd.f32 %v2670, %v2801
      %v2803 = vpop.f32.mrb[0].mxu0
      %v2804 = vadd.f32 %v2674, %v2803
      %v2805 = vpop.f32.mrb[0].mxu0
      %v2806 = vpop.f32.mrb[0].mxu0
      %2807 = vdwg.mxu0
      %v2808 = vmul.f32 %v2792, %v2792
      %v2809 = vmul.f32 %v2794, %v2794
      %v2810 = vmul.f32 %v2796, %v2796
      %v2811 = vmul.f32 %v2798, %v2798
      %v2812 = vmul.f32 %v2802, %v2802
      %v2813 = vmul.f32 %v2804, %v2804
      %v2814 = vmul.f32 %v2792, %v2808
      %v2815 = vmul.f32 %v2794, %v2809
      %v2816 = vmul.f32 %v2796, %v2810
      %v2817 = vmul.f32 %v2798, %v2811
      %v2818 = vmul.f32 %v2802, %v2812
      %v2819 = vmul.f32 %v2804, %v2813
      %v2820 = vmul.f32 %v2814, 0.044715
      %v2821 = vmul.f32 %v2815, 0.044715
      %v2822 = vmul.f32 %v2816, 0.044715
      %v2823 = vmul.f32 %v2817, 0.044715
      %v2824 = vmul.f32 %v2818, 0.044715
      %v2825 = vmul.f32 %v2819, 0.044715
      %v2826 = vadd.f32 %v2792, %v2820
      %v2827 = vadd.f32 %v2794, %v2821
      %v2828 = vadd.f32 %v2796, %v2822
      %v2829 = vadd.f32 %v2798, %v2823
      %v2830 = vadd.f32 %v2802, %v2824
      %v2831 = vadd.f32 %v2804, %v2825
      %v2832 = vmul.f32 %v2826, 0.7978846
      %v2833 = vmul.f32 %v2827, 0.7978846
      %v2834 = vmul.f32 %v2828, 0.7978846
      %v2835 = vmul.f32 %v2829, 0.7978846
      %v2836 = vmul.f32 %v2830, 0.7978846
      %v2837 = vmul.f32 %v2831, 0.7978846
      %v2838 = vtanh.pop %v2832
      %v2839 = vtanh.pop %v2833
      %v2840 = vtanh.pop %v2834
      %v2841 = vtanh.pop %v2835
      %v2842 = vtanh.pop %v2836
      %v2843 = vtanh.pop %v2837
      %v2844 = vadd.f32 %v2838, 1.0
      %v2845 = vadd.f32 %v2839, 1.0
      %v2846 = vadd.f32 %v2840, 1.0
      %v2847 = vadd.f32 %v2841, 1.0
      %v2848 = vadd.f32 %v2842, 1.0
      %v2849 = vadd.f32 %v2843, 1.0
      %v2850 = vmul.f32 %v2844, 0.5
      %v2851 = vmul.f32 %v2845, 0.5
      %v2852 = vmul.f32 %v2846, 0.5
      %v2853 = vmul.f32 %v2847, 0.5
      %v2854 = vmul.f32 %v2848, 0.5
      %v2855 = vmul.f32 %v2849, 0.5
      %v2856 = vmul.f32 %v2792, %v2850
      %v2857 = vmul.f32 %v2794, %v2851
      %v2858 = vmul.f32 %v2796, %v2852
      %v2859 = vmul.f32 %v2798, %v2853
      %v2860 = vmul.f32 %v2802, %v2854
      %v2861 = vmul.f32 %v2804, %v2855
      %v2862 = vpack.c.bf16 %v2858, %v2856
      %v2863 = vpack.c.bf16 %v2859, %v2857
      %v2864 = vpack.c.bf16 %v2860, %v2860
      %v2865 = vpack.c.bf16 %v2861, %v2861
      %v2866 = vld [vmem:[%s15] sm:$0xf]
      %v2867 = vld [vmem:[%s15 + $0x4] sm:$0xf]
      %v2868 = vld [vmem:[%s15 + $0x8] sm:$0xf]
      %v2869 = vld [vmem:[%s15 + $0xc] sm:$0xf]
      %v2870 = vld [vmem:[%s15 + $0x10] sm:$0xf]
      %v2871 = vld [vmem:[%s15 + $0x14] sm:$0xf]
      %v2872 = vld [vmem:[%s15 + $0x18] sm:$0xf]
      %v2873 = vld [vmem:[%s15 + $0x1c] sm:$0xf]
      %v2874 = vld [vmem:[%s15 + $0x20] sm:$0xf]
      %v2875 = vld [vmem:[%s15 + $0x24] sm:$0xf]
      %v2876 = vld [vmem:[%s15 + $0x28] sm:$0xf]
      %v2877 = vld [vmem:[%s15 + $0x2c] sm:$0xf]
      %v2878 = vld [vmem:[%s15 + $0x30] sm:$0xf]
      %v2879 = vld [vmem:[%s15 + $0x34] sm:$0xf]
      %v2880 = vld [vmem:[%s15 + $0x38] sm:$0xf]
      %v2881 = vld [vmem:[%s15 + $0x3c] sm:$0xf]
      %v2882 = vld [vmem:[%s15 + $0x40] sm:$0xf]
      %v2883 = vld [vmem:[%s15 + $0x44] sm:$0xf]
      %v2884 = vld [vmem:[%s15 + $0x48] sm:$0xf]
      %v2885 = vld [vmem:[%s15 + $0x4c] sm:$0xf]
      %v2886 = vld [vmem:[%s15 + $0x50] sm:$0xf]
      %v2887 = vld [vmem:[%s15 + $0x54] sm:$0xf]
      %v2888 = vld [vmem:[%s15 + $0x58] sm:$0xf]
      %v2889 = vld [vmem:[%s15 + $0x5c] sm:$0xf]
      %v2890 = vld [vmem:[%s15 + $0x60] sm:$0xf]
      %v2891 = vld [vmem:[%s15 + $0x64] sm:$0xf]
      %v2892 = vld [vmem:[%s15 + $0x68] sm:$0xf]
      %v2893 = vld [vmem:[%s15 + $0x6c] sm:$0xf]
      %v2894 = vld [vmem:[%s15 + $0x70] sm:$0xf]
      %v2895 = vld [vmem:[%s15 + $0x74] sm:$0xf]
      %v2896 = vld [vmem:[%s15 + $0x78] sm:$0xf]
      %v2897 = vld [vmem:[%s15 + $0x7c] sm:$0xf]
      %v2930 = vunpack.c.l.b16 %v2866
      %v2931 = vunpack.c.l.b16 %v2867
      %v2932 = vunpack.c.l.b16 %v2868
      %v2933 = vunpack.c.l.b16 %v2869
      %v2934 = vunpack.c.l.b16 %v2870
      %v2935 = vunpack.c.l.b16 %v2871
      %v2936 = vunpack.c.l.b16 %v2872
      %v2937 = vunpack.c.l.b16 %v2873
      %v2938 = vunpack.c.l.b16 %v2874
      %v2939 = vunpack.c.l.b16 %v2875
      %v2940 = vunpack.c.l.b16 %v2876
      %v2941 = vunpack.c.l.b16 %v2877
      %v2942 = vunpack.c.l.b16 %v2878
      %v2943 = vunpack.c.l.b16 %v2879
      %v2944 = vunpack.c.l.b16 %v2880
      %v2945 = vunpack.c.l.b16 %v2881
      %v2946 = vunpack.c.l.b16 %v2882
      %v2947 = vunpack.c.l.b16 %v2883
      %v2948 = vunpack.c.l.b16 %v2884
      %v2949 = vunpack.c.l.b16 %v2885
      %v2950 = vunpack.c.l.b16 %v2886
      %v2951 = vunpack.c.l.b16 %v2887
      %v2952 = vunpack.c.l.b16 %v2888
      %v2953 = vunpack.c.l.b16 %v2889
      %v2954 = vunpack.c.l.b16 %v2890
      %v2955 = vunpack.c.l.b16 %v2891
      %v2956 = vunpack.c.l.b16 %v2892
      %v2957 = vunpack.c.l.b16 %v2893
      %v2958 = vunpack.c.l.b16 %v2894
      %v2959 = vunpack.c.l.b16 %v2895
      %v2960 = vunpack.c.l.b16 %v2896
      %v2961 = vunpack.c.l.b16 %v2897
      %v2962 = vpack.c.b16 %v2931, %v2930
      %v2963 = vpack.c.b16 %v2933, %v2932
      %v2964 = vpack.c.b16 %v2935, %v2934
      %v2965 = vpack.c.b16 %v2937, %v2936
      %v2966 = vpack.c.b16 %v2939, %v2938
      %v2967 = vpack.c.b16 %v2941, %v2940
      %v2968 = vpack.c.b16 %v2943, %v2942
      %v2969 = vpack.c.b16 %v2945, %v2944
      %v2970 = vpack.c.b16 %v2947, %v2946
      %v2971 = vpack.c.b16 %v2949, %v2948
      %v2972 = vpack.c.b16 %v2951, %v2950
      %v2973 = vpack.c.b16 %v2953, %v2952
      %v2974 = vpack.c.b16 %v2955, %v2954
      %v2975 = vpack.c.b16 %v2957, %v2956
      %v2976 = vpack.c.b16 %v2959, %v2958
      %v2977 = vpack.c.b16 %v2961, %v2960
      %2994 = vmatprep.subr.bf16.mxu0 0
      %2995 = vmatpush1.bf16.msra.mxu0 %v2962
      %2996 = vmatprep.subr.bf16.mxu0 0
      %2997 = vmatpush1.bf16.msra.mxu0 %v2963
      %2998 = vmatprep.subr.bf16.mxu0 0
      %2999 = vmatpush1.bf16.msra.mxu0 %v2964
      %3000 = vmatprep.subr.bf16.mxu0 0
      %3001 = vmatpush1.bf16.msra.mxu0 %v2965
      %3002 = vmatprep.subr.bf16.mxu0 0
      %3003 = vmatpush1.bf16.msra.mxu0 %v2966
      %3004 = vmatprep.subr.bf16.mxu0 0
      %3005 = vmatpush1.bf16.msra.mxu0 %v2967
      %3006 = vmatprep.subr.bf16.mxu0 0
      %3007 = vmatpush1.bf16.msra.mxu0 %v2968
      %3008 = vmatprep.subr.bf16.mxu0 0
      %3009 = vmatpush1.bf16.msra.mxu0 %v2969
      %3010 = vmatprep.subr.bf16.mxu0 0
      %3011 = vmatpush1.bf16.msra.mxu0 %v2970
      %3012 = vmatprep.subr.bf16.mxu0 0
      %3013 = vmatpush1.bf16.msra.mxu0 %v2971
      %3014 = vmatprep.subr.bf16.mxu0 0
      %3015 = vmatpush1.bf16.msra.mxu0 %v2972
      %3016 = vmatprep.subr.bf16.mxu0 0
      %3017 = vmatpush1.bf16.msra.mxu0 %v2973
      %3018 = vmatprep.subr.bf16.mxu0 0
      %3019 = vmatpush1.bf16.msra.mxu0 %v2974
      %3020 = vmatprep.subr.bf16.mxu0 0
      %3021 = vmatpush1.bf16.msra.mxu0 %v2975
      %3022 = vmatprep.subr.bf16.mxu0 0
      %3023 = vmatpush1.bf16.msra.mxu0 %v2976
      %3024 = vmatprep.subr.bf16.mxu0 0
      %3025 = vmatpush1.bf16.msra.mxu0 %v2977
      %3026 = vmatprep.mubr.bf16.mxu0 %v2863
      %3027 = vmatmul.mubr.bf16.gmra.mrb[0].mxu0 %v2862
      %v3028 = vpop.f32.mrb[0].mxu0
      %v3029 = vadd.f32 0.0, %v3028
      %v3030 = vpop.f32.mrb[0].mxu0
      %v3031 = vpop.f32.mrb[0].mxu0
      %v3032 = vadd.f32 0.0, %v3031
      %v3033 = vpop.f32.mrb[0].mxu0
      %3034 = vmatprep.mubr.bf16.mxu0 %v2865
      %3035 = vmatmul.mubr.bf16.gmra.mrb[0].mxu0 %v2864
      %v3036 = vpop.f32.mrb[0].mxu0
      %v3037 = vadd.f32 0.0, %v3036
      %v3038 = vpop.f32.mrb[0].mxu0
      %v3039 = vpop.f32.mrb[0].mxu0
      %v3040 = vpop.f32.mrb[0].mxu0
      %3041 = vdwg.mxu0
      %v3042 = vadd.f32 %v2589, %v3029
      %v3043 = vadd.f32 %v2590, %v3032
      %v3044 = vadd.f32 %v2591, %v3037
      %v3045 = vld [vmem:[%s16] sm:$0x1]
      %v3047 = vlaneseq
      %v3048 = vshrl.u32 %v3047, 7
      %v3049 = vsub.s32 0, %v3048
      %v3050 = vrot.slane %v3045, %v3049
      %v3052 = vadd.f32 %v3042, %v3050
      %v3053 = vadd.f32 %v3043, %v3050
      %v3054 = vadd.f32 %v3044, %v3050
      %s3055 = scalar_lea.vmem %s5, 1
      %v3056 = vld [vmem:[%s3055] sm:$0x1]
      %s3057 = scalar_lea.vmem %s6, 1
      %v3058 = vld [vmem:[%s3057] sm:$0x1]
      %3059 = vadd.xlane.f32.xlu0 %v3052
      %v3060 = vpop.xlane.xlu0 %3059
      %3061 = vadd.xlane.f32.xlu0 %v3053
      %v3062 = vpop.xlane.xlu0 %3061
      %v3063 = vsel %vm1406, %v3054, 0.0
      %3064 = vadd.xlane.f32.xlu0 %v3063
      %v3065 = vpop.xlane.xlu0 %3064
      %v3066 = vmul.f32 %v3060, %v1429
      %v3067 = vmul.f32 %v3062, %v1429
      %v3068 = vmul.f32 %v3065, %v1429
      %v3069 = vsub.f32 %v3052, %v3066
      %v3070 = vsub.f32 %v3053, %v3067
      %v3071 = vsub.f32 %v3054, %v3068
      %v3072 = vmul.f32 %v3069, %v3069
      %v3073 = vmul.f32 %v3070, %v3070
      %v3074 = vmul.f32 %v3071, %v3071
      %3075 = vadd.xlane.f32.xlu0 %v3072
      %v3076 = vpop.xlane.xlu0 %3075
      %3077 = vadd.xlane.f32.xlu0 %v3073
      %v3078 = vpop.xlane.xlu0 %3077
      %v3079 = vsel %vm1406, %v3074, 0.0
      %3080 = vadd.xlane.f32.xlu0 %v3079
      %v3081 = vpop.xlane.xlu0 %3080
      %v3082 = vmul.f32 %v3076, %v1429
      %v3083 = vmul.f32 %v3078, %v1429
      %v3084 = vmul.f32 %v3081, %v1429
      %v3085 = vadd.f32 %v3082, 1e-06
      %v3086 = vadd.f32 %v3083, 1e-06
      %v3087 = vadd.f32 %v3084, 1e-06
      %v3088 = vrsqrt.pop %v3085
      %v3089 = vrsqrt.pop %v3086
      %v3090 = vrsqrt.pop %v3087
      %v3091 = vmul.f32 %v3069, %v3088
      %v3092 = vmul.f32 %v3070, %v3089
      %v3093 = vmul.f32 %v3071, %v3090
      %v3095 = vlaneseq
      %v3096 = vshrl.u32 %v3095, 7
      %v3097 = vsub.s32 0, %v3096
      %v3098 = vrot.slane %v3056, %v3097
      %v3100 = vmul.f32 %v3091, %v3098
      %v3101 = vmul.f32 %v3092, %v3098
      %v3102 = vmul.f32 %v3093, %v3098
      %v3104 = vlaneseq
      %v3105 = vshrl.u32 %v3104, 7
      %v3106 = vsub.s32 0, %v3105
      %v3107 = vrot.slane %v3058, %v3106
      %v3109 = vadd.f32 %v3100, %v3107
      %v3110 = vadd.f32 %v3101, %v3107
      %v3111 = vadd.f32 %v3102, %v3107
      %v3112 = vpack.c.bf16 %v3110, %v3109
      %v3113 = vpack.c.bf16 %v3111, %v3111
      %s3114 = scalar_lea.vmem %s7, 192
      %v3115 = vld [vmem:[%s3114] sm:$0xff]
      %v3116 = vld [vmem:[%s3114 + $0x8] sm:$0xf]
      %v3117 = vld [vmem:[%s3114 + $0xc] sm:$0xff]
      %v3118 = vld [vmem:[%s3114 + $0x14] sm:$0xf]
      %v3119 = vld [vmem:[%s3114 + $0x18] sm:$0xff]
      %v3120 = vld [vmem:[%s3114 + $0x20] sm:$0xf]
      %v3121 = vld [vmem:[%s3114 + $0x24] sm:$0xff]
      %v3122 = vld [vmem:[%s3114 + $0x2c] sm:$0xf]
      %v3123 = vld [vmem:[%s3114 + $0x30] sm:$0xff]
      %v3124 = vld [vmem:[%s3114 + $0x38] sm:$0xf]
      %v3125 = vld [vmem:[%s3114 + $0x3c] sm:$0xff]
      %v3126 = vld [vmem:[%s3114 + $0x44] sm:$0xf]
      %v3127 = vld [vmem:[%s3114 + $0x48] sm:$0xff]
      %v3128 = vld [vmem:[%s3114 + $0x50] sm:$0xf]
      %v3129 = vld [vmem:[%s3114 + $0x54] sm:$0xff]
      %v3130 = vld [vmem:[%s3114 + $0x5c] sm:$0xf]
      %v3131 = vld [vmem:[%s3114 + $0x60] sm:$0xff]
      %v3132 = vld [vmem:[%s3114 + $0x68] sm:$0xf]
      %v3133 = vld [vmem:[%s3114 + $0x6c] sm:$0xff]
      %v3134 = vld [vmem:[%s3114 + $0x74] sm:$0xf]
      %v3135 = vld [vmem:[%s3114 + $0x78] sm:$0xff]
      %v3136 = vld [vmem:[%s3114 + $0x80] sm:$0xf]
      %v3137 = vld [vmem:[%s3114 + $0x84] sm:$0xff]
      %v3138 = vld [vmem:[%s3114 + $0x8c] sm:$0xf]
      %v3139 = vld [vmem:[%s3114 + $0x90] sm:$0xff]
      %v3140 = vld [vmem:[%s3114 + $0x98] sm:$0xf]
      %v3141 = vld [vmem:[%s3114 + $0x9c] sm:$0xff]
      %v3142 = vld [vmem:[%s3114 + $0xa4] sm:$0xf]
      %v3143 = vld [vmem:[%s3114 + $0xa8] sm:$0xff]
      %v3144 = vld [vmem:[%s3114 + $0xb0] sm:$0xf]
      %v3145 = vld [vmem:[%s3114 + $0xb4] sm:$0xff]
      %v3146 = vld [vmem:[%s3114 + $0xbc] sm:$0xf]
      %s3147 = scalar_lea.vmem %s8, 3
      %v3148 = vld [vmem:[%s3147] sm:$0x7]
      %v3150 = vlaneseq
      %v3151 = vshrl.u32 %v3150, 7
      %v3152 = vsub.s32 0, %v3151
      %v3153 = vrot.slane %v3148, %v3152
      %v3154 = vlaneseq
      %v3155 = vshrl.u32 %v3154, 7
      %v3156 = vsub.s32 1, %v3155
      %v3157 = vrot.slane %v3148, %v3156
      %v3158 = vlaneseq
      %v3159 = vshrl.u32 %v3158, 7
      %v3160 = vsub.s32 2, %v3159
      %v3161 = vrot.slane %v3148, %v3160
      %v3197 = vunpack.c.l.b16 %v3115
      %v3198 = vunpack.c.h.b16 %v3115
      %v3199 = vunpack.c.l.b16 %v3116
      %v3200 = vunpack.c.l.b16 %v3117
      %v3201 = vunpack.c.h.b16 %v3117
      %v3202 = vunpack.c.l.b16 %v3118
      %v3203 = vunpack.c.l.b16 %v3119
      %v3204 = vunpack.c.h.b16 %v3119
      %v3205 = vunpack.c.l.b16 %v3120
      %v3206 = vunpack.c.l.b16 %v3121
      %v3207 = vunpack.c.h.b16 %v3121
      %v3208 = vunpack.c.l.b16 %v3122
      %v3209 = vunpack.c.l.b16 %v3123
      %v3210 = vunpack.c.h.b16 %v3123
      %v3211 = vunpack.c.l.b16 %v3124
      %v3212 = vunpack.c.l.b16 %v3125
      %v3213 = vunpack.c.h.b16 %v3125
      %v3214 = vunpack.c.l.b16 %v3126
      %v3215 = vunpack.c.l.b16 %v3127
      %v3216 = vunpack.c.h.b16 %v3127
      %v3217 = vunpack.c.l.b16 %v3128
      %v3218 = vunpack.c.l.b16 %v3129
      %v3219 = vunpack.c.h.b16 %v3129
      %v3220 = vunpack.c.l.b16 %v3130
      %v3221 = vunpack.c.l.b16 %v3131
      %v3222 = vunpack.c.h.b16 %v3131
      %v3223 = vunpack.c.l.b16 %v3132
      %v3224 = vunpack.c.l.b16 %v3133
      %v3225 = vunpack.c.h.b16 %v3133
      %v3226 = vunpack.c.l.b16 %v3134
      %v3227 = vunpack.c.l.b16 %v3135
      %v3228 = vunpack.c.h.b16 %v3135
      %v3229 = vunpack.c.l.b16 %v3136
      %v3230 = vunpack.c.l.b16 %v3137
      %v3231 = vunpack.c.h.b16 %v3137
      %v3232 = vunpack.c.l.b16 %v3138
      %v3233 = vunpack.c.l.b16 %v3139
      %v3234 = vunpack.c.h.b16 %v3139
      %v3235 = vunpack.c.l.b16 %v3140
      %v3236 = vunpack.c.l.b16 %v3141
      %v3237 = vunpack.c.h.b16 %v3141
      %v3238 = vunpack.c.l.b16 %v3142
      %v3239 = vunpack.c.l.b16 %v3143
      %v3240 = vunpack.c.h.b16 %v3143
      %v3241 = vunpack.c.l.b16 %v3144
      %v3242 = vunpack.c.l.b16 %v3145
      %v3243 = vunpack.c.h.b16 %v3145
      %v3244 = vunpack.c.l.b16 %v3146
      %v3245 = vpack.c.b16 %v3200, %v3197
      %v3246 = vpack.c.b16 %v3201, %v3198
      %v3247 = vpack.c.b16 %v3202, %v3199
      %v3248 = vpack.c.b16 %v3206, %v3203
      %v3249 = vpack.c.b16 %v3207, %v3204
      %v3250 = vpack.c.b16 %v3208, %v3205
      %v3251 = vpack.c.b16 %v3212, %v3209
      %v3252 = vpack.c.b16 %v3213, %v3210
      %v3253 = vpack.c.b16 %v3214, %v3211
      %v3254 = vpack.c.b16 %v3218, %v3215
      %v3255 = vpack.c.b16 %v3219, %v3216
      %v3256 = vpack.c.b16 %v3220, %v3217
      %v3257 = vpack.c.b16 %v3224, %v3221
      %v3258 = vpack.c.b16 %v3225, %v3222
      %v3259 = vpack.c.b16 %v3226, %v3223
      %v3260 = vpack.c.b16 %v3230, %v3227
      %v3261 = vpack.c.b16 %v3231, %v3228
      %v3262 = vpack.c.b16 %v3232, %v3229
      %v3263 = vpack.c.b16 %v3236, %v3233
      %v3264 = vpack.c.b16 %v3237, %v3234
      %v3265 = vpack.c.b16 %v3238, %v3235
      %v3266 = vpack.c.b16 %v3242, %v3239
      %v3267 = vpack.c.b16 %v3243, %v3240
      %v3268 = vpack.c.b16 %v3244, %v3241
      %3293 = vmatprep.subr.bf16.mxu0 %v3246
      %3294 = vmatpush1.bf16.msra.mxu0 %v3245
      %3295 = vmatprep.subr.bf16.mxu0 %v3249
      %3296 = vmatpush1.bf16.msra.mxu0 %v3248
      %3297 = vmatprep.subr.bf16.mxu0 %v3252
      %3298 = vmatpush1.bf16.msra.mxu0 %v3251
      %3299 = vmatprep.subr.bf16.mxu0 %v3255
      %3300 = vmatpush1.bf16.msra.mxu0 %v3254
      %3301 = vmatprep.subr.bf16.mxu0 %v3258
      %3302 = vmatpush1.bf16.msra.mxu0 %v3257
      %3303 = vmatprep.subr.bf16.mxu0 %v3261
      %3304 = vmatpush1.bf16.msra.mxu0 %v3260
      %3305 = vmatprep.subr.bf16.mxu0 %v3264
      %3306 = vmatpush1.bf16.msra.mxu0 %v3263
      %3307 = vmatprep.subr.bf16.mxu0 %v3267
      %3308 = vmatpush1.bf16.msra.mxu0 %v3266
      %3309 = vmatprep.subr.bf16.mxu0 0
      %3310 = vmatpush1.bf16.msra.mxu0 0
      %3311 = vmatprep.subr.bf16.mxu0 0
      %3312 = vmatpush1.bf16.msra.mxu0 0
      %3313 = vmatprep.subr.bf16.mxu0 0
      %3314 = vmatpush1.bf16.msra.mxu0 0
      %3315 = vmatprep.subr.bf16.mxu0 0
      %3316 = vmatpush1.bf16.msra.mxu0 0
      %3317 = vmatprep.subr.bf16.mxu0 0
      %3318 = vmatpush1.bf16.msra.mxu0 0
      %3319 = vmatprep.subr.bf16.mxu0 0
      %3320 = vmatpush1.bf16.msra.mxu0 0
      %3321 = vmatprep.subr.bf16.mxu0 0
      %3322 = vmatpush1.bf16.msra.mxu0 0
      %3323 = vmatprep.subr.bf16.mxu0 0
      %3324 = vmatpush1.bf16.msra.mxu0 0
      %3325 = vmatprep.mubr.bf16.mxu0 0
      %3326 = vmatmul.mubr.bf16.gmra.mrb[0].mxu0 %v3112
      %v3327 = vpop.f32.mrb[0].mxu0
      %v3328 = vadd.f32 %v3153, %v3327
      %v3329 = vpop.f32.mrb[0].mxu0
      %v3330 = vadd.f32 %v3157, %v3329
      %v3331 = vpop.f32.mrb[0].mxu0
      %v3332 = vadd.f32 %v3153, %v3331
      %v3333 = vpop.f32.mrb[0].mxu0
      %v3334 = vadd.f32 %v3157, %v3333
      %3335 = vmatprep.mubr.bf16.mxu0 0
      %3336 = vmatmul.mubr.bf16.gmra.mrb[0].mxu0 %v3113
      %v3337 = vpop.f32.mrb[0].mxu0
      %v3338 = vadd.f32 %v3153, %v3337
      %v3339 = vpop.f32.mrb[0].mxu0
      %v3340 = vadd.f32 %v3157, %v3339
      %v3341 = vpop.f32.mrb[0].mxu0
      %v3342 = vpop.f32.mrb[0].mxu0
      %3343 = vdwg.mxu0
      %3344 = vmatprep.subr.bf16.mxu0 0
      %3345 = vmatpush1.bf16.msra.mxu0 %v3247
      %3346 = vmatprep.subr.bf16.mxu0 0
      %3347 = vmatpush1.bf16.msra.mxu0 %v3250
      %3348 = vmatprep.subr.bf16.mxu0 0
      %3349 = vmatpush1.bf16.msra.mxu0 %v3253
      %3350 = vmatprep.subr.bf16.mxu0 0
      %3351 = vmatpush1.bf16.msra.mxu0 %v3256
      %3352 = vmatprep.subr.bf16.mxu0 0
      %3353 = vmatpush1.bf16.msra.mxu0 %v3259
      %3354 = vmatprep.subr.bf16.mxu0 0
      %3355 = vmatpush1.bf16.msra.mxu0 %v3262
      %3356 = vmatprep.subr.bf16.mxu0 0
      %3357 = vmatpush1.bf16.msra.mxu0 %v3265
      %3358 = vmatprep.subr.bf16.mxu0 0
      %3359 = vmatpush1.bf16.msra.mxu0 %v3268
      %3360 = vmatprep.subr.bf16.mxu0 0
      %3361 = vmatpush1.bf16.msra.mxu0 0
      %3362 = vmatprep.subr.bf16.mxu0 0
      %3363 = vmatpush1.bf16.msra.mxu0 0
      %3364 = vmatprep.subr.bf16.mxu0 0
      %3365 = vmatpush1.bf16.msra.mxu0 0
      %3366 = vmatprep.subr.bf16.mxu0 0
      %3367 = vmatpush1.bf16.msra.mxu0 0
      %3368 = vmatprep.subr.bf16.mxu0 0
      %3369 = vmatpush1.bf16.msra.mxu0 0
      %3370 = vmatprep.subr.bf16.mxu0 0
      %3371 = vmatpush1.bf16.msra.mxu0 0
      %3372 = vmatprep.subr.bf16.mxu0 0
      %3373 = vmatpush1.bf16.msra.mxu0 0
      %3374 = vmatprep.subr.bf16.mxu0 0
      %3375 = vmatpush1.bf16.msra.mxu0 0
      %3376 = vmatprep.mubr.bf16.mxu0 0
      %3377 = vmatmul.mubr.bf16.gmra.mrb[0].mxu0 %v3112
      %v3378 = vpop.f32.mrb[0].mxu0
      %v3379 = vadd.f32 %v3161, %v3378
      %v3380 = vpop.f32.mrb[0].mxu0
      %v3381 = vpop.f32.mrb[0].mxu0
      %v3382 = vadd.f32 %v3161, %v3381
      %v3383 = vpop.f32.mrb[0].mxu0
      %3384 = vmatprep.mubr.bf16.mxu0 0
      %3385 = vmatmul.mubr.bf16.gmra.mrb[0].mxu0 %v3113
      %v3386 = vpop.f32.mrb[0].mxu0
      %v3387 = vadd.f32 %v3161, %v3386
      %v3388 = vpop.f32.mrb[0].mxu0
      %v3389 = vpop.f32.mrb[0].mxu0
      %v3390 = vpop.f32.mrb[0].mxu0
      %3391 = vdwg.mxu0
      %v3392 = vpack.c.bf16 %v3332, %v3328
      %v3393 = vpack.c.bf16 %v3338, %v3338
      %v3394 = vpack.c.bf16 %v3334, %v3330
      %v3395 = vpack.c.bf16 %v3340, %v3340
      %v3397 = vsel %vm1758, %v3392, 0
      %v3400 = vsel %vm1758, %v3393, 0
      %v3403 = vsel %vm1758, %v3394, 0
      %v3406 = vsel %vm1758, %v3395, 0
      %3408 = vmatprep.subr.bf16.mxu0 0
      %3409 = vmatpush1.bf16.xpose.msra.mxu0 %v3403
      %3410 = vmatprep.subr.bf16.mxu0 0
      %3411 = vmatpush1.bf16.xpose.msra.mxu0 %v3406
      %3412 = vmatprep.subr.bf16.mxu0 0
      %3413 = vmatpush1.bf16.xpose.msra.mxu0 0
      %3414 = vmatprep.subr.bf16.mxu0 0
      %3415 = vmatpush1.bf16.xpose.msra.mxu0 0
      %3416 = vmatprep.subr.bf16.mxu0 0
      %3417 = vmatpush1.bf16.xpose.msra.mxu0 0
      %3418 = vmatprep.subr.bf16.mxu0 0
      %3419 = vmatpush1.bf16.xpose.msra.mxu0 0
      %3420 = vmatprep.subr.bf16.mxu0 0
      %3421 = vmatpush1.bf16.xpose.msra.mxu0 0
      %3422 = vmatprep.subr.bf16.mxu0 0
      %3423 = vmatpush1.bf16.xpose.msra.mxu0 0
      %3424 = vmatprep.subr.bf16.mxu0 0
      %3425 = vmatpush1.bf16.xpose.msra.mxu0 0
      %3426 = vmatprep.subr.bf16.mxu0 0
      %3427 = vmatpush1.bf16.xpose.msra.mxu0 0
      %3428 = vmatprep.subr.bf16.mxu0 0
      %3429 = vmatpush1.bf16.xpose.msra.mxu0 0
      %3430 = vmatprep.subr.bf16.mxu0 0
      %3431 = vmatpush1.bf16.xpose.msra.mxu0 0
      %3432 = vmatprep.subr.bf16.mxu0 0
      %3433 = vmatpush1.bf16.xpose.msra.mxu0 0
      %3434 = vmatprep.subr.bf16.mxu0 0
      %3435 = vmatpush1.bf16.xpose.msra.mxu0 0
      %3436 = vmatprep.subr.bf16.mxu0 0
      %3437 = vmatpush1.bf16.xpose.msra.mxu0 0
      %3438 = vmatprep.subr.bf16.mxu0 0
      %3439 = vmatpush1.bf16.xpose.msra.mxu0 0
      %3440 = vmatprep.mubr.bf16.mxu0 0
      %3441 = vmatmul.mubr.bf16.gmra.mrb[0].mxu0 %v3397
      %v3442 = vpop.f32.mrb[0].mxu0
      %v3443 = vadd.f32 0.0, %v3442
      %v3444 = vpop.f32.mrb[0].mxu0
      %v3445 = vpop.f32.mrb[0].mxu0
      %v3446 = vadd.f32 0.0, %v3445
      %v3447 = vpop.f32.mrb[0].mxu0
      %3448 = vmatprep.mubr.bf16.mxu0 0
      %3449 = vmatmul.mubr.bf16.gmra.mrb[0].mxu0 %v3400
      %v3450 = vpop.f32.mrb[0].mxu0
      %v3451 = vadd.f32 0.0, %v3450
      %v3452 = vpop.f32.mrb[0].mxu0
      %v3453 = vpop.f32.mrb[0].mxu0
      %v3454 = vpop.f32.mrb[0].mxu0
      %3455 = vdwg.mxu0
      %v3456 = vsel %vm1819, %v3443, -inf
      %3457 = vmax.xlane.f32.xlu0 %v3456
      %v3458 = vpop.xlane.xlu0 %3457
      %v3459 = vsel %vm1819, %v3446, -inf
      %3460 = vmax.xlane.f32.xlu0 %v3459
      %v3461 = vpop.xlane.xlu0 %3460
      %v3462 = vsel %vm1826, %v3451, -inf
      %3463 = vmax.xlane.f32.xlu0 %v3462
      %v3464 = vpop.xlane.xlu0 %3463
      %v3465 = vsub.f32 %v3443, %v3458
      %v3466 = vsub.f32 %v3446, %v3461
      %v3467 = vsub.f32 %v3451, %v3464
      %v3468 = vmul.f32 %v3465, 1.442695
      %v3469 = vpow.pop %v3468
      %v3470 = vmul.f32 %v3466, 1.442695
      %v3471 = vpow.pop %v3470
      %v3472 = vmul.f32 %v3467, 1.442695
      %v3473 = vpow.pop %v3472
      %v3474 = vsel %vm1819, %v3469, 0.0
      %3475 = vadd.xlane.f32.xlu0 %v3474
      %v3476 = vpop.xlane.xlu0 %3475
      %v3477 = vsel %vm1819, %v3471, 0.0
      %3478 = vadd.xlane.f32.xlu0 %v3477
      %v3479 = vpop.xlane.xlu0 %3478
      %v3480 = vsel %vm1826, %v3473, 0.0
      %3481 = vadd.xlane.f32.xlu0 %v3480
      %v3482 = vpop.xlane.xlu0 %3481
      %v3483 = vrcp.pop %v3476
      %v3484 = vrcp.pop %v3479
      %v3485 = vrcp.pop %v3482
      %v3486 = vmul.f32 %v3469, %v3483
      %v3487 = vmul.f32 %v3471, %v3484
      %v3488 = vmul.f32 %v3473, %v3485
      %v3489 = vpack.c.bf16 %v3487, %v3486
      %v3490 = vpack.c.bf16 %v3488, %v3488
      %v3491 = vpack.c.bf16 %v3382, %v3379
      %v3492 = vpack.c.bf16 %v3387, %v3387
      %v3494 = vsel %vm1819, %v3489, 0
      %v3497 = vsel %vm1819, %v3490, 0
      %v3500 = vand.u32 %v3492, %v1865
      %3502 = vmatprep.subr.bf16.mxu0 0
      %3503 = vmatpush1.bf16.msra.mxu0 %v3491
      %3504 = vmatprep.subr.bf16.mxu0 0
      %3505 = vmatpush1.bf16.msra.mxu0 %v3500
      %3506 = vmatprep.subr.bf16.mxu0 0
      %3507 = vmatpush1.bf16.msra.mxu0 0
      %3508 = vmatprep.subr.bf16.mxu0 0
      %3509 = vmatpush1.bf16.msra.mxu0 0
      %3510 = vmatprep.subr.bf16.mxu0 0
      %3511 = vmatpush1.bf16.msra.mxu0 0
      %3512 = vmatprep.subr.bf16.mxu0 0
      %3513 = vmatpush1.bf16.msra.mxu0 0
      %3514 = vmatprep.subr.bf16.mxu0 0
      %3515 = vmatpush1.bf16.msra.mxu0 0
      %3516 = vmatprep.subr.bf16.mxu0 0
      %3517 = vmatpush1.bf16.msra.mxu0 0
      %3518 = vmatprep.subr.bf16.mxu0 0
      %3519 = vmatpush1.bf16.msra.mxu0 0
      %3520 = vmatprep.subr.bf16.mxu0 0
      %3521 = vmatpush1.bf16.msra.mxu0 0
      %3522 = vmatprep.subr.bf16.mxu0 0
      %3523 = vmatpush1.bf16.msra.mxu0 0
      %3524 = vmatprep.subr.bf16.mxu0 0
      %3525 = vmatpush1.bf16.msra.mxu0 0
      %3526 = vmatprep.subr.bf16.mxu0 0
      %3527 = vmatpush1.bf16.msra.mxu0 0
      %3528 = vmatprep.subr.bf16.mxu0 0
      %3529 = vmatpush1.bf16.msra.mxu0 0
      %3530 = vmatprep.subr.bf16.mxu0 0
      %3531 = vmatpush1.bf16.msra.mxu0 0
      %3532 = vmatprep.subr.bf16.mxu0 0
      %3533 = vmatpush1.bf16.msra.mxu0 0
      %3534 = vmatprep.mubr.bf16.mxu0 0
      %3535 = vmatmul.mubr.bf16.gmra.mrb[0].mxu0 %v3494
      %v3536 = vpop.f32.mrb[0].mxu0
      %v3537 = vadd.f32 0.0, %v3536
      %v3538 = vpop.f32.mrb[0].mxu0
      %v3539 = vpop.f32.mrb[0].mxu0
      %v3540 = vadd.f32 0.0, %v3539
      %v3541 = vpop.f32.mrb[0].mxu0
      %3542 = vmatprep.mubr.bf16.mxu0 0
      %3543 = vmatmul.mubr.bf16.gmra.mrb[0].mxu0 %v3497
      %v3544 = vpop.f32.mrb[0].mxu0
      %v3545 = vadd.f32 0.0, %v3544
      %v3546 = vpop.f32.mrb[0].mxu0
      %v3547 = vpop.f32.mrb[0].mxu0
      %v3548 = vpop.f32.mrb[0].mxu0
      %3549 = vdwg.mxu0
      %3552 = vrot.lane.b32.xlu0 %v3392, 96
      %v3553 = vpop.permute.xlu0 %3552
      %3554 = vrot.lane.b32.xlu0 %v3393, 96
      %v3555 = vpop.permute.xlu0 %3554
      %3558 = vrot.lane.b32.xlu0 %v3394, 96
      %v3559 = vpop.permute.xlu0 %3558
      %3560 = vrot.lane.b32.xlu0 %v3395, 96
      %v3561 = vpop.permute.xlu0 %3560
      %v3563 = vsel %vm1758, %v3553, 0
      %v3566 = vsel %vm1758, %v3555, 0
      %v3569 = vsel %vm1758, %v3559, 0
      %v3572 = vsel %vm1758, %v3561, 0
      %3574 = vmatprep.subr.bf16.mxu0 0
      %3575 = vmatpush1.bf16.xpose.msra.mxu0 %v3569
      %3576 = vmatprep.subr.bf16.mxu0 0
      %3577 = vmatpush1.bf16.xpose.msra.mxu0 %v3572
      %3578 = vmatprep.subr.bf16.mxu0 0
      %3579 = vmatpush1.bf16.xpose.msra.mxu0 0
      %3580 = vmatprep.subr.bf16.mxu0 0
      %3581 = vmatpush1.bf16.xpose.msra.mxu0 0
      %3582 = vmatprep.subr.bf16.mxu0 0
      %3583 = vmatpush1.bf16.xpose.msra.mxu0 0
      %3584 = vmatprep.subr.bf16.mxu0 0
      %3585 = vmatpush1.bf16.xpose.msra.mxu0 0
      %3586 = vmatprep.subr.bf16.mxu0 0
      %3587 = vmatpush1.bf16.xpose.msra.mxu0 0
      %3588 = vmatprep.subr.bf16.mxu0 0
      %3589 = vmatpush1.bf16.xpose.msra.mxu0 0
      %3590 = vmatprep.subr.bf16.mxu0 0
      %3591 = vmatpush1.bf16.xpose.msra.mxu0 0
      %3592 = vmatprep.subr.bf16.mxu0 0
      %3593 = vmatpush1.bf16.xpose.msra.mxu0 0
      %3594 = vmatprep.subr.bf16.mxu0 0
      %3595 = vmatpush1.bf16.xpose.msra.mxu0 0
      %3596 = vmatprep.subr.bf16.mxu0 0
      %3597 = vmatpush1.bf16.xpose.msra.mxu0 0
      %3598 = vmatprep.subr.bf16.mxu0 0
      %3599 = vmatpush1.bf16.xpose.msra.mxu0 0
      %3600 = vmatprep.subr.bf16.mxu0 0
      %3601 = vmatpush1.bf16.xpose.msra.mxu0 0
      %3602 = vmatprep.subr.bf16.mxu0 0
      %3603 = vmatpush1.bf16.xpose.msra.mxu0 0
      %3604 = vmatprep.subr.bf16.mxu0 0
      %3605 = vmatpush1.bf16.xpose.msra.mxu0 0
      %3606 = vmatprep.mubr.bf16.mxu0 0
      %3607 = vmatmul.mubr.bf16.gmra.mrb[0].mxu0 %v3563
      %v3608 = vpop.f32.mrb[0].mxu0
      %v3609 = vadd.f32 0.0, %v3608
      %v3610 = vpop.f32.mrb[0].mxu0
      %v3611 = vpop.f32.mrb[0].mxu0
      %v3612 = vadd.f32 0.0, %v3611
      %v3613 = vpop.f32.mrb[0].mxu0
      %3614 = vmatprep.mubr.bf16.mxu0 0
      %3615 = vmatmul.mubr.bf16.gmra.mrb[0].mxu0 %v3566
      %v3616 = vpop.f32.mrb[0].mxu0
      %v3617 = vadd.f32 0.0, %v3616
      %v3618 = vpop.f32.mrb[0].mxu0
      %v3619 = vpop.f32.mrb[0].mxu0
      %v3620 = vpop.f32.mrb[0].mxu0
      %3621 = vdwg.mxu0
      %v3622 = vsel %vm1819, %v3609, -inf
      %3623 = vmax.xlane.f32.xlu0 %v3622
      %v3624 = vpop.xlane.xlu0 %3623
      %v3625 = vsel %vm1819, %v3612, -inf
      %3626 = vmax.xlane.f32.xlu0 %v3625
      %v3627 = vpop.xlane.xlu0 %3626
      %v3628 = vsel %vm1826, %v3617, -inf
      %3629 = vmax.xlane.f32.xlu0 %v3628
      %v3630 = vpop.xlane.xlu0 %3629
      %v3631 = vsub.f32 %v3609, %v3624
      %v3632 = vsub.f32 %v3612, %v3627
      %v3633 = vsub.f32 %v3617, %v3630
      %v3634 = vmul.f32 %v3631, 1.442695
      %v3635 = vpow.pop %v3634
      %v3636 = vmul.f32 %v3632, 1.442695
      %v3637 = vpow.pop %v3636
      %v3638 = vmul.f32 %v3633, 1.442695
      %v3639 = vpow.pop %v3638
      %v3640 = vsel %vm1819, %v3635, 0.0
      %3641 = vadd.xlane.f32.xlu0 %v3640
      %v3642 = vpop.xlane.xlu0 %3641
      %v3643 = vsel %vm1819, %v3637, 0.0
      %3644 = vadd.xlane.f32.xlu0 %v3643
      %v3645 = vpop.xlane.xlu0 %3644
      %v3646 = vsel %vm1826, %v3639, 0.0
      %3647 = vadd.xlane.f32.xlu0 %v3646
      %v3648 = vpop.xlane.xlu0 %3647
      %v3649 = vrcp.pop %v3642
      %v3650 = vrcp.pop %v3645
      %v3651 = vrcp.pop %v3648
      %v3652 = vmul.f32 %v3635, %v3649
      %v3653 = vmul.f32 %v3637, %v3650
      %v3654 = vmul.f32 %v3639, %v3651
      %v3655 = vpack.c.bf16 %v3653, %v3652
      %v3656 = vpack.c.bf16 %v3654, %v3654
      %3659 = vrot.lane.b32.xlu0 %v3491, 96
      %v3660 = vpop.permute.xlu0 %3659
      %3661 = vrot.lane.b32.xlu0 %v3492, 96
      %v3662 = vpop.permute.xlu0 %3661
      %v3665 = vsel %vm1819, %v3655, 0
      %v3668 = vsel %vm1819, %v3656, 0
      %v3671 = vand.u32 %v3662, %v1865
      %3673 = vmatprep.subr.bf16.mxu0 0
      %3674 = vmatpush1.bf16.msra.mxu0 %v3660
      %3675 = vmatprep.subr.bf16.mxu0 0
      %3676 = vmatpush1.bf16.msra.mxu0 %v3671
      %3677 = vmatprep.subr.bf16.mxu0 0
      %3678 = vmatpush1.bf16.msra.mxu0 0
      %3679 = vmatprep.subr.bf16.mxu0 0
      %3680 = vmatpush1.bf16.msra.mxu0 0
      %3681 = vmatprep.subr.bf16.mxu0 0
      %3682 = vmatpush1.bf16.msra.mxu0 0
      %3683 = vmatprep.subr.bf16.mxu0 0
      %3684 = vmatpush1.bf16.msra.mxu0 0
      %3685 = vmatprep.subr.bf16.mxu0 0
      %3686 = vmatpush1.bf16.msra.mxu0 0
      %3687 = vmatprep.subr.bf16.mxu0 0
      %3688 = vmatpush1.bf16.msra.mxu0 0
      %3689 = vmatprep.subr.bf16.mxu0 0
      %3690 = vmatpush1.bf16.msra.mxu0 0
      %3691 = vmatprep.subr.bf16.mxu0 0
      %3692 = vmatpush1.bf16.msra.mxu0 0
      %3693 = vmatprep.subr.bf16.mxu0 0
      %3694 = vmatpush1.bf16.msra.mxu0 0
      %3695 = vmatprep.subr.bf16.mxu0 0
      %3696 = vmatpush1.bf16.msra.mxu0 0
      %3697 = vmatprep.subr.bf16.mxu0 0
      %3698 = vmatpush1.bf16.msra.mxu0 0
      %3699 = vmatprep.subr.bf16.mxu0 0
      %3700 = vmatpush1.bf16.msra.mxu0 0
      %3701 = vmatprep.subr.bf16.mxu0 0
      %3702 = vmatpush1.bf16.msra.mxu0 0
      %3703 = vmatprep.subr.bf16.mxu0 0
      %3704 = vmatpush1.bf16.msra.mxu0 0
      %3705 = vmatprep.mubr.bf16.mxu0 0
      %3706 = vmatmul.mubr.bf16.gmra.mrb[0].mxu0 %v3665
      %v3707 = vpop.f32.mrb[0].mxu0
      %v3708 = vadd.f32 0.0, %v3707
      %v3709 = vpop.f32.mrb[0].mxu0
      %v3710 = vpop.f32.mrb[0].mxu0
      %v3711 = vadd.f32 0.0, %v3710
      %v3712 = vpop.f32.mrb[0].mxu0
      %3713 = vmatprep.mubr.bf16.mxu0 0
      %3714 = vmatmul.mubr.bf16.gmra.mrb[0].mxu0 %v3668
      %v3715 = vpop.f32.mrb[0].mxu0
      %v3716 = vadd.f32 0.0, %v3715
      %v3717 = vpop.f32.mrb[0].mxu0
      %v3718 = vpop.f32.mrb[0].mxu0
      %v3719 = vpop.f32.mrb[0].mxu0
      %3720 = vdwg.mxu0
      %3721 = vrot.lane.b32.xlu0 %v3392, 64
      %v3722 = vpop.permute.xlu0 %3721
      %3723 = vrot.lane.b32.xlu0 %v3393, 64
      %v3724 = vpop.permute.xlu0 %3723
      %3725 = vrot.lane.b32.xlu0 %v3394, 64
      %v3726 = vpop.permute.xlu0 %3725
      %3727 = vrot.lane.b32.xlu0 %v3395, 64
      %v3728 = vpop.permute.xlu0 %3727
      %v3730 = vsel %vm1758, %v3722, 0
      %v3733 = vsel %vm1758, %v3724, 0
      %v3736 = vsel %vm1758, %v3726, 0
      %v3739 = vsel %vm1758, %v3728, 0
      %3741 = vmatprep.subr.bf16.mxu0 0
      %3742 = vmatpush1.bf16.xpose.msra.mxu0 %v3736
      %3743 = vmatprep.subr.bf16.mxu0 0
      %3744 = vmatpush1.bf16.xpose.msra.mxu0 %v3739
      %3745 = vmatprep.subr.bf16.mxu0 0
      %3746 = vmatpush1.bf16.xpose.msra.mxu0 0
      %3747 = vmatprep.subr.bf16.mxu0 0
      %3748 = vmatpush1.bf16.xpose.msra.mxu0 0
      %3749 = vmatprep.subr.bf16.mxu0 0
      %3750 = vmatpush1.bf16.xpose.msra.mxu0 0
      %3751 = vmatprep.subr.bf16.mxu0 0
      %3752 = vmatpush1.bf16.xpose.msra.mxu0 0
      %3753 = vmatprep.subr.bf16.mxu0 0
      %3754 = vmatpush1.bf16.xpose.msra.mxu0 0
      %3755 = vmatprep.subr.bf16.mxu0 0
      %3756 = vmatpush1.bf16.xpose.msra.mxu0 0
      %3757 = vmatprep.subr.bf16.mxu0 0
      %3758 = vmatpush1.bf16.xpose.msra.mxu0 0
      %3759 = vmatprep.subr.bf16.mxu0 0
      %3760 = vmatpush1.bf16.xpose.msra.mxu0 0
      %3761 = vmatprep.subr.bf16.mxu0 0
      %3762 = vmatpush1.bf16.xpose.msra.mxu0 0
      %3763 = vmatprep.subr.bf16.mxu0 0
      %3764 = vmatpush1.bf16.xpose.msra.mxu0 0
      %3765 = vmatprep.subr.bf16.mxu0 0
      %3766 = vmatpush1.bf16.xpose.msra.mxu0 0
      %3767 = vmatprep.subr.bf16.mxu0 0
      %3768 = vmatpush1.bf16.xpose.msra.mxu0 0
      %3769 = vmatprep.subr.bf16.mxu0 0
      %3770 = vmatpush1.bf16.xpose.msra.mxu0 0
      %3771 = vmatprep.subr.bf16.mxu0 0
      %3772 = vmatpush1.bf16.xpose.msra.mxu0 0
      %3773 = vmatprep.mubr.bf16.mxu0 0
      %3774 = vmatmul.mubr.bf16.gmra.mrb[0].mxu0 %v3730
      %v3775 = vpop.f32.mrb[0].mxu0
      %v3776 = vadd.f32 0.0, %v3775
      %v3777 = vpop.f32.mrb[0].mxu0
      %v3778 = vpop.f32.mrb[0].mxu0
      %v3779 = vadd.f32 0.0, %v3778
      %v3780 = vpop.f32.mrb[0].mxu0
      %3781 = vmatprep.mubr.bf16.mxu0 0
      %3782 = vmatmul.mubr.bf16.gmra.mrb[0].mxu0 %v3733
      %v3783 = vpop.f32.mrb[0].mxu0
      %v3784 = vadd.f32 0.0, %v3783
      %v3785 = vpop.f32.mrb[0].mxu0
      %v3786 = vpop.f32.mrb[0].mxu0
      %v3787 = vpop.f32.mrb[0].mxu0
      %3788 = vdwg.mxu0
      %v3789 = vsel %vm1819, %v3776, -inf
      %3790 = vmax.xlane.f32.xlu0 %v3789
      %v3791 = vpop.xlane.xlu0 %3790
      %v3792 = vsel %vm1819, %v3779, -inf
      %3793 = vmax.xlane.f32.xlu0 %v3792
      %v3794 = vpop.xlane.xlu0 %3793
      %v3795 = vsel %vm1826, %v3784, -inf
      %3796 = vmax.xlane.f32.xlu0 %v3795
      %v3797 = vpop.xlane.xlu0 %3796
      %v3798 = vsub.f32 %v3776, %v3791
      %v3799 = vsub.f32 %v3779, %v3794
      %v3800 = vsub.f32 %v3784, %v3797
      %v3801 = vmul.f32 %v3798, 1.442695
      %v3802 = vpow.pop %v3801
      %v3803 = vmul.f32 %v3799, 1.442695
      %v3804 = vpow.pop %v3803
      %v3805 = vmul.f32 %v3800, 1.442695
      %v3806 = vpow.pop %v3805
      %v3807 = vsel %vm1819, %v3802, 0.0
      %3808 = vadd.xlane.f32.xlu0 %v3807
      %v3809 = vpop.xlane.xlu0 %3808
      %v3810 = vsel %vm1819, %v3804, 0.0
      %3811 = vadd.xlane.f32.xlu0 %v3810
      %v3812 = vpop.xlane.xlu0 %3811
      %v3813 = vsel %vm1826, %v3806, 0.0
      %3814 = vadd.xlane.f32.xlu0 %v3813
      %v3815 = vpop.xlane.xlu0 %3814
      %v3816 = vrcp.pop %v3809
      %v3817 = vrcp.pop %v3812
      %v3818 = vrcp.pop %v3815
      %v3819 = vmul.f32 %v3802, %v3816
      %v3820 = vmul.f32 %v3804, %v3817
      %v3821 = vmul.f32 %v3806, %v3818
      %v3822 = vpack.c.bf16 %v3820, %v3819
      %v3823 = vpack.c.bf16 %v3821, %v3821
      %3824 = vrot.lane.b32.xlu0 %v3491, 64
      %v3825 = vpop.permute.xlu0 %3824
      %3826 = vrot.lane.b32.xlu0 %v3492, 64
      %v3827 = vpop.permute.xlu0 %3826
      %v3830 = vsel %vm1819, %v3822, 0
      %v3833 = vsel %vm1819, %v3823, 0
      %v3836 = vand.u32 %v3827, %v1865
      %3838 = vmatprep.subr.bf16.mxu0 0
      %3839 = vmatpush1.bf16.msra.mxu0 %v3825
      %3840 = vmatprep.subr.bf16.mxu0 0
      %3841 = vmatpush1.bf16.msra.mxu0 %v3836
      %3842 = vmatprep.subr.bf16.mxu0 0
      %3843 = vmatpush1.bf16.msra.mxu0 0
      %3844 = vmatprep.subr.bf16.mxu0 0
      %3845 = vmatpush1.bf16.msra.mxu0 0
      %3846 = vmatprep.subr.bf16.mxu0 0
      %3847 = vmatpush1.bf16.msra.mxu0 0
      %3848 = vmatprep.subr.bf16.mxu0 0
      %3849 = vmatpush1.bf16.msra.mxu0 0
      %3850 = vmatprep.subr.bf16.mxu0 0
      %3851 = vmatpush1.bf16.msra.mxu0 0
      %3852 = vmatprep.subr.bf16.mxu0 0
      %3853 = vmatpush1.bf16.msra.mxu0 0
      %3854 = vmatprep.subr.bf16.mxu0 0
      %3855 = vmatpush1.bf16.msra.mxu0 0
      %3856 = vmatprep.subr.bf16.mxu0 0
      %3857 = vmatpush1.bf16.msra.mxu0 0
      %3858 = vmatprep.subr.bf16.mxu0 0
      %3859 = vmatpush1.bf16.msra.mxu0 0
      %3860 = vmatprep.subr.bf16.mxu0 0
      %3861 = vmatpush1.bf16.msra.mxu0 0
      %3862 = vmatprep.subr.bf16.mxu0 0
      %3863 = vmatpush1.bf16.msra.mxu0 0
      %3864 = vmatprep.subr.bf16.mxu0 0
      %3865 = vmatpush1.bf16.msra.mxu0 0
      %3866 = vmatprep.subr.bf16.mxu0 0
      %3867 = vmatpush1.bf16.msra.mxu0 0
      %3868 = vmatprep.subr.bf16.mxu0 0
      %3869 = vmatpush1.bf16.msra.mxu0 0
      %3870 = vmatprep.mubr.bf16.mxu0 0
      %3871 = vmatmul.mubr.bf16.gmra.mrb[0].mxu0 %v3830
      %v3872 = vpop.f32.mrb[0].mxu0
      %v3873 = vadd.f32 0.0, %v3872
      %v3874 = vpop.f32.mrb[0].mxu0
      %v3875 = vpop.f32.mrb[0].mxu0
      %v3876 = vadd.f32 0.0, %v3875
      %v3877 = vpop.f32.mrb[0].mxu0
      %3878 = vmatprep.mubr.bf16.mxu0 0
      %3879 = vmatmul.mubr.bf16.gmra.mrb[0].mxu0 %v3833
      %v3880 = vpop.f32.mrb[0].mxu0
      %v3881 = vadd.f32 0.0, %v3880
      %v3882 = vpop.f32.mrb[0].mxu0
      %v3883 = vpop.f32.mrb[0].mxu0
      %v3884 = vpop.f32.mrb[0].mxu0
      %3885 = vdwg.mxu0
      %3886 = vrot.lane.b32.xlu0 %v3392, 32
      %v3887 = vpop.permute.xlu0 %3886
      %3888 = vrot.lane.b32.xlu0 %v3393, 32
      %v3889 = vpop.permute.xlu0 %3888
      %3890 = vrot.lane.b32.xlu0 %v3394, 32
      %v3891 = vpop.permute.xlu0 %3890
      %3892 = vrot.lane.b32.xlu0 %v3395, 32
      %v3893 = vpop.permute.xlu0 %3892
      %v3895 = vsel %vm1758, %v3887, 0
      %v3898 = vsel %vm1758, %v3889, 0
      %v3901 = vsel %vm1758, %v3891, 0
      %v3904 = vsel %vm1758, %v3893, 0
      %3906 = vmatprep.subr.bf16.mxu0 0
      %3907 = vmatpush1.bf16.xpose.msra.mxu0 %v3901
      %3908 = vmatprep.subr.bf16.mxu0 0
      %3909 = vmatpush1.bf16.xpose.msra.mxu0 %v3904
      %3910 = vmatprep.subr.bf16.mxu0 0
      %3911 = vmatpush1.bf16.xpose.msra.mxu0 0
      %3912 = vmatprep.subr.bf16.mxu0 0
      %3913 = vmatpush1.bf16.xpose.msra.mxu0 0
      %3914 = vmatprep.subr.bf16.mxu0 0
      %3915 = vmatpush1.bf16.xpose.msra.mxu0 0
      %3916 = vmatprep.subr.bf16.mxu0 0
      %3917 = vmatpush1.bf16.xpose.msra.mxu0 0
      %3918 = vmatprep.subr.bf16.mxu0 0
      %3919 = vmatpush1.bf16.xpose.msra.mxu0 0
      %3920 = vmatprep.subr.bf16.mxu0 0
      %3921 = vmatpush1.bf16.xpose.msra.mxu0 0
      %3922 = vmatprep.subr.bf16.mxu0 0
      %3923 = vmatpush1.bf16.xpose.msra.mxu0 0
      %3924 = vmatprep.subr.bf16.mxu0 0
      %3925 = vmatpush1.bf16.xpose.msra.mxu0 0
      %3926 = vmatprep.subr.bf16.mxu0 0
      %3927 = vmatpush1.bf16.xpose.msra.mxu0 0
      %3928 = vmatprep.subr.bf16.mxu0 0
      %3929 = vmatpush1.bf16.xpose.msra.mxu0 0
      %3930 = vmatprep.subr.bf16.mxu0 0
      %3931 = vmatpush1.bf16.xpose.msra.mxu0 0
      %3932 = vmatprep.subr.bf16.mxu0 0
      %3933 = vmatpush1.bf16.xpose.msra.mxu0 0
      %3934 = vmatprep.subr.bf16.mxu0 0
      %3935 = vmatpush1.bf16.xpose.msra.mxu0 0
      %3936 = vmatprep.subr.bf16.mxu0 0
      %3937 = vmatpush1.bf16.xpose.msra.mxu0 0
      %3938 = vmatprep.mubr.bf16.mxu0 0
      %3939 = vmatmul.mubr.bf16.gmra.mrb[0].mxu0 %v3895
      %v3940 = vpop.f32.mrb[0].mxu0
      %v3941 = vadd.f32 0.0, %v3940
      %v3942 = vpop.f32.mrb[0].mxu0
      %v3943 = vpop.f32.mrb[0].mxu0
      %v3944 = vadd.f32 0.0, %v3943
      %v3945 = vpop.f32.mrb[0].mxu0
      %3946 = vmatprep.mubr.bf16.mxu0 0
      %3947 = vmatmul.mubr.bf16.gmra.mrb[0].mxu0 %v3898
      %v3948 = vpop.f32.mrb[0].mxu0
      %v3949 = vadd.f32 0.0, %v3948
      %v3950 = vpop.f32.mrb[0].mxu0
      %v3951 = vpop.f32.mrb[0].mxu0
      %v3952 = vpop.f32.mrb[0].mxu0
      %3953 = vdwg.mxu0
      %v3954 = vsel %vm1819, %v3941, -inf
      %3955 = vmax.xlane.f32.xlu0 %v3954
      %v3956 = vpop.xlane.xlu0 %3955
      %v3957 = vsel %vm1819, %v3944, -inf
      %3958 = vmax.xlane.f32.xlu0 %v3957
      %v3959 = vpop.xlane.xlu0 %3958
      %v3960 = vsel %vm1826, %v3949, -inf
      %3961 = vmax.xlane.f32.xlu0 %v3960
      %v3962 = vpop.xlane.xlu0 %3961
      %v3963 = vsub.f32 %v3941, %v3956
      %v3964 = vsub.f32 %v3944, %v3959
      %v3965 = vsub.f32 %v3949, %v3962
      %v3966 = vmul.f32 %v3963, 1.442695
      %v3967 = vpow.pop %v3966
      %v3968 = vmul.f32 %v3964, 1.442695
      %v3969 = vpow.pop %v3968
      %v3970 = vmul.f32 %v3965, 1.442695
      %v3971 = vpow.pop %v3970
      %v3972 = vsel %vm1819, %v3967, 0.0
      %3973 = vadd.xlane.f32.xlu0 %v3972
      %v3974 = vpop.xlane.xlu0 %3973
      %v3975 = vsel %vm1819, %v3969, 0.0
      %3976 = vadd.xlane.f32.xlu0 %v3975
      %v3977 = vpop.xlane.xlu0 %3976
      %v3978 = vsel %vm1826, %v3971, 0.0
      %3979 = vadd.xlane.f32.xlu0 %v3978
      %v3980 = vpop.xlane.xlu0 %3979
      %v3981 = vrcp.pop %v3974
      %v3982 = vrcp.pop %v3977
      %v3983 = vrcp.pop %v3980
      %v3984 = vmul.f32 %v3967, %v3981
      %v3985 = vmul.f32 %v3969, %v3982
      %v3986 = vmul.f32 %v3971, %v3983
      %v3987 = vpack.c.bf16 %v3985, %v3984
      %v3988 = vpack.c.bf16 %v3986, %v3986
      %3989 = vrot.lane.b32.xlu0 %v3491, 32
      %v3990 = vpop.permute.xlu0 %3989
      %3991 = vrot.lane.b32.xlu0 %v3492, 32
      %v3992 = vpop.permute.xlu0 %3991
      %v3995 = vsel %vm1819, %v3987, 0
      %v3998 = vsel %vm1819, %v3988, 0
      %v4001 = vand.u32 %v3992, %v1865
      %4003 = vmatprep.subr.bf16.mxu0 0
      %4004 = vmatpush1.bf16.msra.mxu0 %v3990
      %4005 = vmatprep.subr.bf16.mxu0 0
      %4006 = vmatpush1.bf16.msra.mxu0 %v4001
      %4007 = vmatprep.subr.bf16.mxu0 0
      %4008 = vmatpush1.bf16.msra.mxu0 0
      %4009 = vmatprep.subr.bf16.mxu0 0
      %4010 = vmatpush1.bf16.msra.mxu0 0
      %4011 = vmatprep.subr.bf16.mxu0 0
      %4012 = vmatpush1.bf16.msra.mxu0 0
      %4013 = vmatprep.subr.bf16.mxu0 0
      %4014 = vmatpush1.bf16.msra.mxu0 0
      %4015 = vmatprep.subr.bf16.mxu0 0
      %4016 = vmatpush1.bf16.msra.mxu0 0
      %4017 = vmatprep.subr.bf16.mxu0 0
      %4018 = vmatpush1.bf16.msra.mxu0 0
      %4019 = vmatprep.subr.bf16.mxu0 0
      %4020 = vmatpush1.bf16.msra.mxu0 0
      %4021 = vmatprep.subr.bf16.mxu0 0
      %4022 = vmatpush1.bf16.msra.mxu0 0
      %4023 = vmatprep.subr.bf16.mxu0 0
      %4024 = vmatpush1.bf16.msra.mxu0 0
      %4025 = vmatprep.subr.bf16.mxu0 0
      %4026 = vmatpush1.bf16.msra.mxu0 0
      %4027 = vmatprep.subr.bf16.mxu0 0
      %4028 = vmatpush1.bf16.msra.mxu0 0
      %4029 = vmatprep.subr.bf16.mxu0 0
      %4030 = vmatpush1.bf16.msra.mxu0 0
      %4031 = vmatprep.subr.bf16.mxu0 0
      %4032 = vmatpush1.bf16.msra.mxu0 0
      %4033 = vmatprep.subr.bf16.mxu0 0
      %4034 = vmatpush1.bf16.msra.mxu0 0
      %4035 = vmatprep.mubr.bf16.mxu0 0
      %4036 = vmatmul.mubr.bf16.gmra.mrb[0].mxu0 %v3995
      %v4037 = vpop.f32.mrb[0].mxu0
      %v4038 = vadd.f32 0.0, %v4037
      %v4039 = vpop.f32.mrb[0].mxu0
      %v4040 = vpop.f32.mrb[0].mxu0
      %v4041 = vadd.f32 0.0, %v4040
      %v4042 = vpop.f32.mrb[0].mxu0
      %4043 = vmatprep.mubr.bf16.mxu0 0
      %4044 = vmatmul.mubr.bf16.gmra.mrb[0].mxu0 %v3998
      %v4045 = vpop.f32.mrb[0].mxu0
      %v4046 = vadd.f32 0.0, %v4045
      %v4047 = vpop.f32.mrb[0].mxu0
      %v4048 = vpop.f32.mrb[0].mxu0
      %v4049 = vpop.f32.mrb[0].mxu0
      %4050 = vdwg.mxu0
      %4054 = vrot.lane.b32.xlu0 %v3708, 32
      %v4055 = vpop.permute.xlu0 %4054
      %4056 = vrot.lane.b32.xlu0 %v3711, 32
      %v4057 = vpop.permute.xlu0 %4056
      %4058 = vrot.lane.b32.xlu0 %v3716, 32
      %v4059 = vpop.permute.xlu0 %4058
      %4066 = vrot.lane.b32.xlu0 %v3873, 64
      %v4067 = vpop.permute.xlu0 %4066
      %4068 = vrot.lane.b32.xlu0 %v3876, 64
      %v4069 = vpop.permute.xlu0 %4068
      %4070 = vrot.lane.b32.xlu0 %v3881, 64
      %v4071 = vpop.permute.xlu0 %4070
      %4078 = vrot.lane.b32.xlu0 %v4038, 96
      %v4079 = vpop.permute.xlu0 %4078
      %4080 = vrot.lane.b32.xlu0 %v4041, 96
      %v4081 = vpop.permute.xlu0 %4080
      %4082 = vrot.lane.b32.xlu0 %v4046, 96
      %v4083 = vpop.permute.xlu0 %4082
      %v4087 = vsel %vm1758, %v3537, %v4055
      %v4088 = vsel %vm1758, %v3540, %v4057
      %v4089 = vsel %vm1758, %v3545, %v4059
      %v4090 = vsel %vm2457, %v4087, %v4067
      %v4091 = vsel %vm2457, %v4088, %v4069
      %v4092 = vsel %vm2457, %v4089, %v4071
      %v4093 = vsel %vm2461, %v4090, %v4079
      %v4094 = vsel %vm2461, %v4091, %v4081
      %v4095 = vsel %vm2461, %v4092, %v4083
      %v4096 = vpack.c.bf16 %v4094, %v4093
      %v4097 = vpack.c.bf16 %v4095, %v4095
      %s4098 = scalar_lea.vmem %s9, 64
      %v4099 = vld [vmem:[%s4098] sm:$0xf]
      %v4100 = vld [vmem:[%s4098 + $0x4] sm:$0xf]
      %v4101 = vld [vmem:[%s4098 + $0x8] sm:$0xf]
      %v4102 = vld [vmem:[%s4098 + $0xc] sm:$0xf]
      %v4103 = vld [vmem:[%s4098 + $0x10] sm:$0xf]
      %v4104 = vld [vmem:[%s4098 + $0x14] sm:$0xf]
      %v4105 = vld [vmem:[%s4098 + $0x18] sm:$0xf]
      %v4106 = vld [vmem:[%s4098 + $0x1c] sm:$0xf]
      %v4107 = vld [vmem:[%s4098 + $0x20] sm:$0xf]
      %v4108 = vld [vmem:[%s4098 + $0x24] sm:$0xf]
      %v4109 = vld [vmem:[%s4098 + $0x28] sm:$0xf]
      %v4110 = vld [vmem:[%s4098 + $0x2c] sm:$0xf]
      %v4111 = vld [vmem:[%s4098 + $0x30] sm:$0xf]
      %v4112 = vld [vmem:[%s4098 + $0x34] sm:$0xf]
      %v4113 = vld [vmem:[%s4098 + $0x38] sm:$0xf]
      %v4114 = vld [vmem:[%s4098 + $0x3c] sm:$0xf]
      %v4131 = vunpack.c.l.b16 %v4099
      %v4132 = vunpack.c.l.b16 %v4100
      %v4133 = vunpack.c.l.b16 %v4101
      %v4134 = vunpack.c.l.b16 %v4102
      %v4135 = vunpack.c.l.b16 %v4103
      %v4136 = vunpack.c.l.b16 %v4104
      %v4137 = vunpack.c.l.b16 %v4105
      %v4138 = vunpack.c.l.b16 %v4106
      %v4139 = vunpack.c.l.b16 %v4107
      %v4140 = vunpack.c.l.b16 %v4108
      %v4141 = vunpack.c.l.b16 %v4109
      %v4142 = vunpack.c.l.b16 %v4110
      %v4143 = vunpack.c.l.b16 %v4111
      %v4144 = vunpack.c.l.b16 %v4112
      %v4145 = vunpack.c.l.b16 %v4113
      %v4146 = vunpack.c.l.b16 %v4114
      %v4147 = vpack.c.b16 %v4132, %v4131
      %v4148 = vpack.c.b16 %v4134, %v4133
      %v4149 = vpack.c.b16 %v4136, %v4135
      %v4150 = vpack.c.b16 %v4138, %v4137
      %v4151 = vpack.c.b16 %v4140, %v4139
      %v4152 = vpack.c.b16 %v4142, %v4141
      %v4153 = vpack.c.b16 %v4144, %v4143
      %v4154 = vpack.c.b16 %v4146, %v4145
      %4163 = vmatprep.subr.bf16.mxu0 0
      %4164 = vmatpush1.bf16.msra.mxu0 %v4147
      %4165 = vmatprep.subr.bf16.mxu0 0
      %4166 = vmatpush1.bf16.msra.mxu0 %v4148
      %4167 = vmatprep.subr.bf16.mxu0 0
      %4168 = vmatpush1.bf16.msra.mxu0 %v4149
      %4169 = vmatprep.subr.bf16.mxu0 0
      %4170 = vmatpush1.bf16.msra.mxu0 %v4150
      %4171 = vmatprep.subr.bf16.mxu0 0
      %4172 = vmatpush1.bf16.msra.mxu0 %v4151
      %4173 = vmatprep.subr.bf16.mxu0 0
      %4174 = vmatpush1.bf16.msra.mxu0 %v4152
      %4175 = vmatprep.subr.bf16.mxu0 0
      %4176 = vmatpush1.bf16.msra.mxu0 %v4153
      %4177 = vmatprep.subr.bf16.mxu0 0
      %4178 = vmatpush1.bf16.msra.mxu0 %v4154
      %4179 = vmatprep.subr.bf16.mxu0 0
      %4180 = vmatpush1.bf16.msra.mxu0 0
      %4181 = vmatprep.subr.bf16.mxu0 0
      %4182 = vmatpush1.bf16.msra.mxu0 0
      %4183 = vmatprep.subr.bf16.mxu0 0
      %4184 = vmatpush1.bf16.msra.mxu0 0
      %4185 = vmatprep.subr.bf16.mxu0 0
      %4186 = vmatpush1.bf16.msra.mxu0 0
      %4187 = vmatprep.subr.bf16.mxu0 0
      %4188 = vmatpush1.bf16.msra.mxu0 0
      %4189 = vmatprep.subr.bf16.mxu0 0
      %4190 = vmatpush1.bf16.msra.mxu0 0
      %4191 = vmatprep.subr.bf16.mxu0 0
      %4192 = vmatpush1.bf16.msra.mxu0 0
      %4193 = vmatprep.subr.bf16.mxu0 0
      %4194 = vmatpush1.bf16.msra.mxu0 0
      %4195 = vmatprep.mubr.bf16.mxu0 0
      %4196 = vmatmul.mubr.bf16.gmra.mrb[0].mxu0 %v4096
      %v4197 = vpop.f32.mrb[0].mxu0
      %v4198 = vadd.f32 0.0, %v4197
      %v4199 = vpop.f32.mrb[0].mxu0
      %v4200 = vpop.f32.mrb[0].mxu0
      %v4201 = vadd.f32 0.0, %v4200
      %v4202 = vpop.f32.mrb[0].mxu0
      %4203 = vmatprep.mubr.bf16.mxu0 0
      %4204 = vmatmul.mubr.bf16.gmra.mrb[0].mxu0 %v4097
      %v4205 = vpop.f32.mrb[0].mxu0
      %v4206 = vadd.f32 0.0, %v4205
      %v4207 = vpop.f32.mrb[0].mxu0
      %v4208 = vpop.f32.mrb[0].mxu0
      %v4209 = vpop.f32.mrb[0].mxu0
      %4210 = vdwg.mxu0
      %v4211 = vadd.f32 %v3052, %v4198
      %v4212 = vadd.f32 %v3053, %v4201
      %v4213 = vadd.f32 %v3054, %v4206
      %s4214 = scalar_lea.vmem %s10, 1
      %v4215 = vld [vmem:[%s4214] sm:$0x1]
      %v4217 = vlaneseq
      %v4218 = vshrl.u32 %v4217, 7
      %v4219 = vsub.s32 0, %v4218
      %v4220 = vrot.slane %v4215, %v4219
      %v4222 = vadd.f32 %v4211, %v4220
      %v4223 = vadd.f32 %v4212, %v4220
      %v4224 = vadd.f32 %v4213, %v4220
      %s4225 = scalar_lea.vmem %s11, 1
      %v4226 = vld [vmem:[%s4225] sm:$0x1]
      %s4227 = scalar_lea.vmem %s12, 1
      %v4228 = vld [vmem:[%s4227] sm:$0x1]
      %4229 = vadd.xlane.f32.xlu0 %v4222
      %v4230 = vpop.xlane.xlu0 %4229
      %4231 = vadd.xlane.f32.xlu0 %v4223
      %v4232 = vpop.xlane.xlu0 %4231
      %v4233 = vsel %vm1406, %v4224, 0.0
      %4234 = vadd.xlane.f32.xlu0 %v4233
      %v4235 = vpop.xlane.xlu0 %4234
      %v4236 = vmul.f32 %v4230, %v1429
      %v4237 = vmul.f32 %v4232, %v1429
      %v4238 = vmul.f32 %v4235, %v1429
      %v4239 = vsub.f32 %v4222, %v4236
      %v4240 = vsub.f32 %v4223, %v4237
      %v4241 = vsub.f32 %v4224, %v4238
      %v4242 = vmul.f32 %v4239, %v4239
      %v4243 = vmul.f32 %v4240, %v4240
      %v4244 = vmul.f32 %v4241, %v4241
      %4245 = vadd.xlane.f32.xlu0 %v4242
      %v4246 = vpop.xlane.xlu0 %4245
      %4247 = vadd.xlane.f32.xlu0 %v4243
      %v4248 = vpop.xlane.xlu0 %4247
      %v4249 = vsel %vm1406, %v4244, 0.0
      %4250 = vadd.xlane.f32.xlu0 %v4249
      %v4251 = vpop.xlane.xlu0 %4250
      %v4252 = vmul.f32 %v4246, %v1429
      %v4253 = vmul.f32 %v4248, %v1429
      %v4254 = vmul.f32 %v4251, %v1429
      %v4255 = vadd.f32 %v4252, 1e-06
      %v4256 = vadd.f32 %v4253, 1e-06
      %v4257 = vadd.f32 %v4254, 1e-06
      %v4258 = vrsqrt.pop %v4255
      %v4259 = vrsqrt.pop %v4256
      %v4260 = vrsqrt.pop %v4257
      %v4261 = vmul.f32 %v4239, %v4258
      %v4262 = vmul.f32 %v4240, %v4259
      %v4263 = vmul.f32 %v4241, %v4260
      %v4265 = vlaneseq
      %v4266 = vshrl.u32 %v4265, 7
      %v4267 = vsub.s32 0, %v4266
      %v4268 = vrot.slane %v4226, %v4267
      %v4270 = vmul.f32 %v4261, %v4268
      %v4271 = vmul.f32 %v4262, %v4268
      %v4272 = vmul.f32 %v4263, %v4268
      %v4274 = vlaneseq
      %v4275 = vshrl.u32 %v4274, 7
      %v4276 = vsub.s32 0, %v4275
      %v4277 = vrot.slane %v4228, %v4276
      %v4279 = vadd.f32 %v4270, %v4277
      %v4280 = vadd.f32 %v4271, %v4277
      %v4281 = vadd.f32 %v4272, %v4277
      %v4282 = vpack.c.bf16 %v4280, %v4279
      %v4283 = vpack.c.bf16 %v4281, %v4281
      %s4284 = scalar_lea.vmem %s13, 128
      %v4285 = vld [vmem:[%s4284] sm:$0xff]
      %v4286 = vld [vmem:[%s4284 + $0x8] sm:$0xff]
      %v4287 = vld [vmem:[%s4284 + $0x10] sm:$0xff]
      %v4288 = vld [vmem:[%s4284 + $0x18] sm:$0xff]
      %v4289 = vld [vmem:[%s4284 + $0x20] sm:$0xff]
      %v4290 = vld [vmem:[%s4284 + $0x28] sm:$0xff]
      %v4291 = vld [vmem:[%s4284 + $0x30] sm:$0xff]
      %v4292 = vld [vmem:[%s4284 + $0x38] sm:$0xff]
      %v4293 = vld [vmem:[%s4284 + $0x40] sm:$0xff]
      %v4294 = vld [vmem:[%s4284 + $0x48] sm:$0xff]
      %v4295 = vld [vmem:[%s4284 + $0x50] sm:$0xff]
      %v4296 = vld [vmem:[%s4284 + $0x58] sm:$0xff]
      %v4297 = vld [vmem:[%s4284 + $0x60] sm:$0xff]
      %v4298 = vld [vmem:[%s4284 + $0x68] sm:$0xff]
      %v4299 = vld [vmem:[%s4284 + $0x70] sm:$0xff]
      %v4300 = vld [vmem:[%s4284 + $0x78] sm:$0xff]
      %s4301 = scalar_lea.vmem %s14, 2
      %v4302 = vld [vmem:[%s4301] sm:$0x3]
      %v4304 = vlaneseq
      %v4305 = vshrl.u32 %v4304, 7
      %v4306 = vsub.s32 0, %v4305
      %v4307 = vrot.slane %v4302, %v4306
      %v4308 = vlaneseq
      %v4309 = vshrl.u32 %v4308, 7
      %v4310 = vsub.s32 1, %v4309
      %v4311 = vrot.slane %v4302, %v4310
      %v4330 = vunpack.c.l.b16 %v4285
      %v4331 = vunpack.c.h.b16 %v4285
      %v4332 = vunpack.c.l.b16 %v4286
      %v4333 = vunpack.c.h.b16 %v4286
      %v4334 = vunpack.c.l.b16 %v4287
      %v4335 = vunpack.c.h.b16 %v4287
      %v4336 = vunpack.c.l.b16 %v4288
      %v4337 = vunpack.c.h.b16 %v4288
      %v4338 = vunpack.c.l.b16 %v4289
      %v4339 = vunpack.c.h.b16 %v4289
      %v4340 = vunpack.c.l.b16 %v4290
      %v4341 = vunpack.c.h.b16 %v4290
      %v4342 = vunpack.c.l.b16 %v4291
      %v4343 = vunpack.c.h.b16 %v4291
      %v4344 = vunpack.c.l.b16 %v4292
      %v4345 = vunpack.c.h.b16 %v4292
      %v4346 = vunpack.c.l.b16 %v4293
      %v4347 = vunpack.c.h.b16 %v4293
      %v4348 = vunpack.c.l.b16 %v4294
      %v4349 = vunpack.c.h.b16 %v4294
      %v4350 = vunpack.c.l.b16 %v4295
      %v4351 = vunpack.c.h.b16 %v4295
      %v4352 = vunpack.c.l.b16 %v4296
      %v4353 = vunpack.c.h.b16 %v4296
      %v4354 = vunpack.c.l.b16 %v4297
      %v4355 = vunpack.c.h.b16 %v4297
      %v4356 = vunpack.c.l.b16 %v4298
      %v4357 = vunpack.c.h.b16 %v4298
      %v4358 = vunpack.c.l.b16 %v4299
      %v4359 = vunpack.c.h.b16 %v4299
      %v4360 = vunpack.c.l.b16 %v4300
      %v4361 = vunpack.c.h.b16 %v4300
      %v4362 = vpack.c.b16 %v4332, %v4330
      %v4363 = vpack.c.b16 %v4333, %v4331
      %v4364 = vpack.c.b16 %v4336, %v4334
      %v4365 = vpack.c.b16 %v4337, %v4335
      %v4366 = vpack.c.b16 %v4340, %v4338
      %v4367 = vpack.c.b16 %v4341, %v4339
      %v4368 = vpack.c.b16 %v4344, %v4342
      %v4369 = vpack.c.b16 %v4345, %v4343
      %v4370 = vpack.c.b16 %v4348, %v4346
      %v4371 = vpack.c.b16 %v4349, %v4347
      %v4372 = vpack.c.b16 %v4352, %v4350
      %v4373 = vpack.c.b16 %v4353, %v4351
      %v4374 = vpack.c.b16 %v4356, %v4354
      %v4375 = vpack.c.b16 %v4357, %v4355
      %v4376 = vpack.c.b16 %v4360, %v4358
      %v4377 = vpack.c.b16 %v4361, %v4359
      %4394 = vmatprep.subr.bf16.mxu0 %v4363
      %4395 = vmatpush1.bf16.msra.mxu0 %v4362
      %4396 = vmatprep.subr.bf16.mxu0 %v4365
      %4397 = vmatpush1.bf16.msra.mxu0 %v4364
      %4398 = vmatprep.subr.bf16.mxu0 %v4367
      %4399 = vmatpush1.bf16.msra.mxu0 %v4366
      %4400 = vmatprep.subr.bf16.mxu0 %v4369
      %4401 = vmatpush1.bf16.msra.mxu0 %v4368
      %4402 = vmatprep.subr.bf16.mxu0 %v4371
      %4403 = vmatpush1.bf16.msra.mxu0 %v4370
      %4404 = vmatprep.subr.bf16.mxu0 %v4373
      %4405 = vmatpush1.bf16.msra.mxu0 %v4372
      %4406 = vmatprep.subr.bf16.mxu0 %v4375
      %4407 = vmatpush1.bf16.msra.mxu0 %v4374
      %4408 = vmatprep.subr.bf16.mxu0 %v4377
      %4409 = vmatpush1.bf16.msra.mxu0 %v4376
      %4410 = vmatprep.subr.bf16.mxu0 0
      %4411 = vmatpush1.bf16.msra.mxu0 0
      %4412 = vmatprep.subr.bf16.mxu0 0
      %4413 = vmatpush1.bf16.msra.mxu0 0
      %4414 = vmatprep.subr.bf16.mxu0 0
      %4415 = vmatpush1.bf16.msra.mxu0 0
      %4416 = vmatprep.subr.bf16.mxu0 0
      %4417 = vmatpush1.bf16.msra.mxu0 0
      %4418 = vmatprep.subr.bf16.mxu0 0
      %4419 = vmatpush1.bf16.msra.mxu0 0
      %4420 = vmatprep.subr.bf16.mxu0 0
      %4421 = vmatpush1.bf16.msra.mxu0 0
      %4422 = vmatprep.subr.bf16.mxu0 0
      %4423 = vmatpush1.bf16.msra.mxu0 0
      %4424 = vmatprep.subr.bf16.mxu0 0
      %4425 = vmatpush1.bf16.msra.mxu0 0
      %4426 = vmatprep.mubr.bf16.mxu0 0
      %4427 = vmatmul.mubr.bf16.gmra.mrb[0].mxu0 %v4282
      %v4428 = vpop.f32.mrb[0].mxu0
      %v4429 = vadd.f32 %v4307, %v4428
      %v4430 = vpop.f32.mrb[0].mxu0
      %v4431 = vadd.f32 %v4311, %v4430
      %v4432 = vpop.f32.mrb[0].mxu0
      %v4433 = vadd.f32 %v4307, %v4432
      %v4434 = vpop.f32.mrb[0].mxu0
      %v4435 = vadd.f32 %v4311, %v4434
      %4436 = vmatprep.mubr.bf16.mxu0 0
      %4437 = vmatmul.mubr.bf16.gmra.mrb[0].mxu0 %v4283
      %v4438 = vpop.f32.mrb[0].mxu0
      %v4439 = vadd.f32 %v4307, %v4438
      %v4440 = vpop.f32.mrb[0].mxu0
      %v4441 = vadd.f32 %v4311, %v4440
      %v4442 = vpop.f32.mrb[0].mxu0
      %v4443 = vpop.f32.mrb[0].mxu0
      %4444 = vdwg.mxu0
      %v4445 = vmul.f32 %v4429, %v4429
      %v4446 = vmul.f32 %v4431, %v4431
      %v4447 = vmul.f32 %v4433, %v4433
      %v4448 = vmul.f32 %v4435, %v4435
      %v4449 = vmul.f32 %v4439, %v4439
      %v4450 = vmul.f32 %v4441, %v4441
      %v4451 = vmul.f32 %v4429, %v4445
      %v4452 = vmul.f32 %v4431, %v4446
      %v4453 = vmul.f32 %v4433, %v4447
      %v4454 = vmul.f32 %v4435, %v4448
      %v4455 = vmul.f32 %v4439, %v4449
      %v4456 = vmul.f32 %v4441, %v4450
      %v4457 = vmul.f32 %v4451, 0.044715
      %v4458 = vmul.f32 %v4452, 0.044715
      %v4459 = vmul.f32 %v4453, 0.044715
      %v4460 = vmul.f32 %v4454, 0.044715
      %v4461 = vmul.f32 %v4455, 0.044715
      %v4462 = vmul.f32 %v4456, 0.044715
      %v4463 = vadd.f32 %v4429, %v4457
      %v4464 = vadd.f32 %v4431, %v4458
      %v4465 = vadd.f32 %v4433, %v4459
      %v4466 = vadd.f32 %v4435, %v4460
      %v4467 = vadd.f32 %v4439, %v4461
      %v4468 = vadd.f32 %v4441, %v4462
      %v4469 = vmul.f32 %v4463, 0.7978846
      %v4470 = vmul.f32 %v4464, 0.7978846
      %v4471 = vmul.f32 %v4465, 0.7978846
      %v4472 = vmul.f32 %v4466, 0.7978846
      %v4473 = vmul.f32 %v4467, 0.7978846
      %v4474 = vmul.f32 %v4468, 0.7978846
      %v4475 = vtanh.pop %v4469
      %v4476 = vtanh.pop %v4470
      %v4477 = vtanh.pop %v4471
      %v4478 = vtanh.pop %v4472
      %v4479 = vtanh.pop %v4473
      %v4480 = vtanh.pop %v4474
      %v4481 = vadd.f32 %v4475, 1.0
      %v4482 = vadd.f32 %v4476, 1.0
      %v4483 = vadd.f32 %v4477, 1.0
      %v4484 = vadd.f32 %v4478, 1.0
      %v4485 = vadd.f32 %v4479, 1.0
      %v4486 = vadd.f32 %v4480, 1.0
      %v4487 = vmul.f32 %v4481, 0.5
      %v4488 = vmul.f32 %v4482, 0.5
      %v4489 = vmul.f32 %v4483, 0.5
      %v4490 = vmul.f32 %v4484, 0.5
      %v4491 = vmul.f32 %v4485, 0.5
      %v4492 = vmul.f32 %v4486, 0.5
      %v4493 = vmul.f32 %v4429, %v4487
      %v4494 = vmul.f32 %v4431, %v4488
      %v4495 = vmul.f32 %v4433, %v4489
      %v4496 = vmul.f32 %v4435, %v4490
      %v4497 = vmul.f32 %v4439, %v4491
      %v4498 = vmul.f32 %v4441, %v4492
      %v4499 = vpack.c.bf16 %v4495, %v4493
      %v4500 = vpack.c.bf16 %v4496, %v4494
      %v4501 = vpack.c.bf16 %v4497, %v4497
      %v4502 = vpack.c.bf16 %v4498, %v4498
      %s4503 = scalar_lea.vmem %s15, 128
      %v4504 = vld [vmem:[%s4503] sm:$0xf]
      %v4505 = vld [vmem:[%s4503 + $0x4] sm:$0xf]
      %v4506 = vld [vmem:[%s4503 + $0x8] sm:$0xf]
      %v4507 = vld [vmem:[%s4503 + $0xc] sm:$0xf]
      %v4508 = vld [vmem:[%s4503 + $0x10] sm:$0xf]
      %v4509 = vld [vmem:[%s4503 + $0x14] sm:$0xf]
      %v4510 = vld [vmem:[%s4503 + $0x18] sm:$0xf]
      %v4511 = vld [vmem:[%s4503 + $0x1c] sm:$0xf]
      %v4512 = vld [vmem:[%s4503 + $0x20] sm:$0xf]
      %v4513 = vld [vmem:[%s4503 + $0x24] sm:$0xf]
      %v4514 = vld [vmem:[%s4503 + $0x28] sm:$0xf]
      %v4515 = vld [vmem:[%s4503 + $0x2c] sm:$0xf]
      %v4516 = vld [vmem:[%s4503 + $0x30] sm:$0xf]
      %v4517 = vld [vmem:[%s4503 + $0x34] sm:$0xf]
      %v4518 = vld [vmem:[%s4503 + $0x38] sm:$0xf]
      %v4519 = vld [vmem:[%s4503 + $0x3c] sm:$0xf]
      %v4520 = vld [vmem:[%s4503 + $0x40] sm:$0xf]
      %v4521 = vld [vmem:[%s4503 + $0x44] sm:$0xf]
      %v4522 = vld [vmem:[%s4503 + $0x48] sm:$0xf]
      %v4523 = vld [vmem:[%s4503 + $0x4c] sm:$0xf]
      %v4524 = vld [vmem:[%s4503 + $0x50] sm:$0xf]
      %v4525 = vld [vmem:[%s4503 + $0x54] sm:$0xf]
      %v4526 = vld [vmem:[%s4503 + $0x58] sm:$0xf]
      %v4527 = vld [vmem:[%s4503 + $0x5c] sm:$0xf]
      %v4528 = vld [vmem:[%s4503 + $0x60] sm:$0xf]
      %v4529 = vld [vmem:[%s4503 + $0x64] sm:$0xf]
      %v4530 = vld [vmem:[%s4503 + $0x68] sm:$0xf]
      %v4531 = vld [vmem:[%s4503 + $0x6c] sm:$0xf]
      %v4532 = vld [vmem:[%s4503 + $0x70] sm:$0xf]
      %v4533 = vld [vmem:[%s4503 + $0x74] sm:$0xf]
      %v4534 = vld [vmem:[%s4503 + $0x78] sm:$0xf]
      %v4535 = vld [vmem:[%s4503 + $0x7c] sm:$0xf]
      %v4568 = vunpack.c.l.b16 %v4504
      %v4569 = vunpack.c.l.b16 %v4505
      %v4570 = vunpack.c.l.b16 %v4506
      %v4571 = vunpack.c.l.b16 %v4507
      %v4572 = vunpack.c.l.b16 %v4508
      %v4573 = vunpack.c.l.b16 %v4509
      %v4574 = vunpack.c.l.b16 %v4510
      %v4575 = vunpack.c.l.b16 %v4511
      %v4576 = vunpack.c.l.b16 %v4512
      %v4577 = vunpack.c.l.b16 %v4513
      %v4578 = vunpack.c.l.b16 %v4514
      %v4579 = vunpack.c.l.b16 %v4515
      %v4580 = vunpack.c.l.b16 %v4516
      %v4581 = vunpack.c.l.b16 %v4517
      %v4582 = vunpack.c.l.b16 %v4518
      %v4583 = vunpack.c.l.b16 %v4519
      %v4584 = vunpack.c.l.b16 %v4520
      %v4585 = vunpack.c.l.b16 %v4521
      %v4586 = vunpack.c.l.b16 %v4522
      %v4587 = vunpack.c.l.b16 %v4523
      %v4588 = vunpack.c.l.b16 %v4524
      %v4589 = vunpack.c.l.b16 %v4525
      %v4590 = vunpack.c.l.b16 %v4526
      %v4591 = vunpack.c.l.b16 %v4527
      %v4592 = vunpack.c.l.b16 %v4528
      %v4593 = vunpack.c.l.b16 %v4529
      %v4594 = vunpack.c.l.b16 %v4530
      %v4595 = vunpack.c.l.b16 %v4531
      %v4596 = vunpack.c.l.b16 %v4532
      %v4597 = vunpack.c.l.b16 %v4533
      %v4598 = vunpack.c.l.b16 %v4534
      %v4599 = vunpack.c.l.b16 %v4535
      %v4600 = vpack.c.b16 %v4569, %v4568
      %v4601 = vpack.c.b16 %v4571, %v4570
      %v4602 = vpack.c.b16 %v4573, %v4572
      %v4603 = vpack.c.b16 %v4575, %v4574
      %v4604 = vpack.c.b16 %v4577, %v4576
      %v4605 = vpack.c.b16 %v4579, %v4578
      %v4606 = vpack.c.b16 %v4581, %v4580
      %v4607 = vpack.c.b16 %v4583, %v4582
      %v4608 = vpack.c.b16 %v4585, %v4584
      %v4609 = vpack.c.b16 %v4587, %v4586
      %v4610 = vpack.c.b16 %v4589, %v4588
      %v4611 = vpack.c.b16 %v4591, %v4590
      %v4612 = vpack.c.b16 %v4593, %v4592
      %v4613 = vpack.c.b16 %v4595, %v4594
      %v4614 = vpack.c.b16 %v4597, %v4596
      %v4615 = vpack.c.b16 %v4599, %v4598
      %4632 = vmatprep.subr.bf16.mxu0 0
      %4633 = vmatpush1.bf16.msra.mxu0 %v4600
      %4634 = vmatprep.subr.bf16.mxu0 0
      %4635 = vmatpush1.bf16.msra.mxu0 %v4601
      %4636 = vmatprep.subr.bf16.mxu0 0
      %4637 = vmatpush1.bf16.msra.mxu0 %v4602
      %4638 = vmatprep.subr.bf16.mxu0 0
      %4639 = vmatpush1.bf16.msra.mxu0 %v4603
      %4640 = vmatprep.subr.bf16.mxu0 0
      %4641 = vmatpush1.bf16.msra.mxu0 %v4604
      %4642 = vmatprep.subr.bf16.mxu0 0
      %4643 = vmatpush1.bf16.msra.mxu0 %v4605
      %4644 = vmatprep.subr.bf16.mxu0 0
      %4645 = vmatpush1.bf16.msra.mxu0 %v4606
      %4646 = vmatprep.subr.bf16.mxu0 0
      %4647 = vmatpush1.bf16.msra.mxu0 %v4607
      %4648 = vmatprep.subr.bf16.mxu0 0
      %4649 = vmatpush1.bf16.msra.mxu0 %v4608
      %4650 = vmatprep.subr.bf16.mxu0 0
      %4651 = vmatpush1.bf16.msra.mxu0 %v4609
      %4652 = vmatprep.subr.bf16.mxu0 0
      %4653 = vmatpush1.bf16.msra.mxu0 %v4610
      %4654 = vmatprep.subr.bf16.mxu0 0
      %4655 = vmatpush1.bf16.msra.mxu0 %v4611
      %4656 = vmatprep.subr.bf16.mxu0 0
      %4657 = vmatpush1.bf16.msra.mxu0 %v4612
      %4658 = vmatprep.subr.bf16.mxu0 0
      %4659 = vmatpush1.bf16.msra.mxu0 %v4613
      %4660 = vmatprep.subr.bf16.mxu0 0
      %4661 = vmatpush1.bf16.msra.mxu0 %v4614
      %4662 = vmatprep.subr.bf16.mxu0 0
      %4663 = vmatpush1.bf16.msra.mxu0 %v4615
      %4664 = vmatprep.mubr.bf16.mxu0 %v4500
      %4665 = vmatmul.mubr.bf16.gmra.mrb[0].mxu0 %v4499
      %v4666 = vpop.f32.mrb[0].mxu0
      %v4667 = vadd.f32 0.0, %v4666
      %v4668 = vpop.f32.mrb[0].mxu0
      %v4669 = vpop.f32.mrb[0].mxu0
      %v4670 = vadd.f32 0.0, %v4669
      %v4671 = vpop.f32.mrb[0].mxu0
      %4672 = vmatprep.mubr.bf16.mxu0 %v4502
      %4673 = vmatmul.mubr.bf16.gmra.mrb[0].mxu0 %v4501
      %v4674 = vpop.f32.mrb[0].mxu0
      %v4675 = vadd.f32 0.0, %v4674
      %v4676 = vpop.f32.mrb[0].mxu0
      %v4677 = vpop.f32.mrb[0].mxu0
      %v4678 = vpop.f32.mrb[0].mxu0
      %4679 = vdwg.mxu0
      %v4680 = vadd.f32 %v4222, %v4667
      %v4681 = vadd.f32 %v4223, %v4670
      %v4682 = vadd.f32 %v4224, %v4675
      %s4683 = scalar_lea.vmem %s16, 1
      %v4684 = vld [vmem:[%s4683] sm:$0x1]
      %v4686 = vlaneseq
      %v4687 = vshrl.u32 %v4686, 7
      %v4688 = vsub.s32 0, %v4687
      %v4689 = vrot.slane %v4684, %v4688
      %v4691 = vadd.f32 %v4680, %v4689
      %v4692 = vadd.f32 %v4681, %v4689
      %v4693 = vadd.f32 %v4682, %v4689
      %v4694 = vld [vmem:[%s17] sm:$0x1]
      %v4695 = vld [vmem:[%s18] sm:$0x1]
      %4696 = vadd.xlane.f32.xlu0 %v4691
      %v4697 = vpop.xlane.xlu0 %4696
      %4698 = vadd.xlane.f32.xlu0 %v4692
      %v4699 = vpop.xlane.xlu0 %4698
      %v4700 = vsel %vm1406, %v4693, 0.0
      %4701 = vadd.xlane.f32.xlu0 %v4700
      %v4702 = vpop.xlane.xlu0 %4701
      %v4703 = vmul.f32 %v4697, %v1429
      %v4704 = vmul.f32 %v4699, %v1429
      %v4705 = vmul.f32 %v4702, %v1429
      %v4706 = vsub.f32 %v4691, %v4703
      %v4707 = vsub.f32 %v4692, %v4704
      %v4708 = vsub.f32 %v4693, %v4705
      %v4709 = vmul.f32 %v4706, %v4706
      %v4710 = vmul.f32 %v4707, %v4707
      %v4711 = vmul.f32 %v4708, %v4708
      %4712 = vadd.xlane.f32.xlu0 %v4709
      %v4713 = vpop.xlane.xlu0 %4712
      %4714 = vadd.xlane.f32.xlu0 %v4710
      %v4715 = vpop.xlane.xlu0 %4714
      %v4716 = vsel %vm1406, %v4711, 0.0
      %4717 = vadd.xlane.f32.xlu0 %v4716
      %v4718 = vpop.xlane.xlu0 %4717
      %v4719 = vmul.f32 %v4713, %v1429
      %v4720 = vmul.f32 %v4715, %v1429
      %v4721 = vmul.f32 %v4718, %v1429
      %v4722 = vadd.f32 %v4719, 1e-06
      %v4723 = vadd.f32 %v4720, 1e-06
      %v4724 = vadd.f32 %v4721, 1e-06
      %v4725 = vrsqrt.pop %v4722
      %v4726 = vrsqrt.pop %v4723
      %v4727 = vrsqrt.pop %v4724
      %v4728 = vmul.f32 %v4706, %v4725
      %v4729 = vmul.f32 %v4707, %v4726
      %v4730 = vmul.f32 %v4708, %v4727
      %v4732 = vlaneseq
      %v4733 = vshrl.u32 %v4732, 7
      %v4734 = vsub.s32 0, %v4733
      %v4735 = vrot.slane %v4694, %v4734
      %v4737 = vmul.f32 %v4728, %v4735
      %v4738 = vmul.f32 %v4729, %v4735
      %v4739 = vmul.f32 %v4730, %v4735
      %v4741 = vlaneseq
      %v4742 = vshrl.u32 %v4741, 7
      %v4743 = vsub.s32 0, %v4742
      %v4744 = vrot.slane %v4695, %v4743
      %v4746 = vadd.f32 %v4737, %v4744
      %v4747 = vadd.f32 %v4738, %v4744
      %v4748 = vadd.f32 %v4739, %v4744
      %v4749 = vadd.f32 %v4746, %v4747
      %v4750 = vsel %vm1406, %v4748, 0.0
      %v4751 = vadd.f32 %v4749, %v4750
      %v4752 = vrot.slane %v4751, 4
      %v4753 = vadd.f32 %v4751, %v4752
      %v4754 = vrot.slane %v4753, 2
      %v4755 = vadd.f32 %v4753, %v4754
      %v4756 = vrot.slane %v4755, 1
      %v4757 = vadd.f32 %v4755, %v4756
      %v4758 = vrcp.pop 17.0
      %v4759 = vmul.f32 %v4757, %v4758
      %v4760 = vpack.c.bf16 %v4759, %v4759
      %v4761 = vld [vmem:[%s19] sm:$0xf]
      %v4762 = vld [vmem:[%s19 + $0x4] sm:$0xf]
      %v4763 = vld [vmem:[%s19 + $0x8] sm:$0xf]
      %v4764 = vld [vmem:[%s19 + $0xc] sm:$0xf]
      %v4765 = vld [vmem:[%s19 + $0x10] sm:$0xf]
      %v4766 = vld [vmem:[%s19 + $0x14] sm:$0xf]
      %v4767 = vld [vmem:[%s19 + $0x18] sm:$0xf]
      %v4768 = vld [vmem:[%s19 + $0x1c] sm:$0xf]
      %v4769 = vld [vmem:[%s19 + $0x20] sm:$0xf]
      %v4770 = vld [vmem:[%s19 + $0x24] sm:$0xf]
      %v4771 = vld [vmem:[%s19 + $0x28] sm:$0xf]
      %v4772 = vld [vmem:[%s19 + $0x2c] sm:$0xf]
      %v4773 = vld [vmem:[%s19 + $0x30] sm:$0xf]
      %v4774 = vld [vmem:[%s19 + $0x34] sm:$0xf]
      %v4775 = vld [vmem:[%s19 + $0x38] sm:$0xf]
      %v4776 = vld [vmem:[%s19 + $0x3c] sm:$0xf]
      %v4777 = vld [vmem:[%s20] sm:$0x1]
      %v4794 = vunpack.c.l.b16 %v4761
      %v4795 = vunpack.c.l.b16 %v4762
      %v4796 = vunpack.c.l.b16 %v4763
      %v4797 = vunpack.c.l.b16 %v4764
      %v4798 = vunpack.c.l.b16 %v4765
      %v4799 = vunpack.c.l.b16 %v4766
      %v4800 = vunpack.c.l.b16 %v4767
      %v4801 = vunpack.c.l.b16 %v4768
      %v4802 = vunpack.c.l.b16 %v4769
      %v4803 = vunpack.c.l.b16 %v4770
      %v4804 = vunpack.c.l.b16 %v4771
      %v4805 = vunpack.c.l.b16 %v4772
      %v4806 = vunpack.c.l.b16 %v4773
      %v4807 = vunpack.c.l.b16 %v4774
      %v4808 = vunpack.c.l.b16 %v4775
      %v4809 = vunpack.c.l.b16 %v4776
      %v4810 = vpack.c.b16 %v4795, %v4794
      %v4811 = vpack.c.b16 %v4797, %v4796
      %v4812 = vpack.c.b16 %v4799, %v4798
      %v4813 = vpack.c.b16 %v4801, %v4800
      %v4814 = vpack.c.b16 %v4803, %v4802
      %v4815 = vpack.c.b16 %v4805, %v4804
      %v4816 = vpack.c.b16 %v4807, %v4806
      %v4817 = vpack.c.b16 %v4809, %v4808
      %4826 = vmatprep.subr.bf16.mxu0 0
      %4827 = vmatpush1.bf16.msra.mxu0 %v4810
      %4828 = vmatprep.subr.bf16.mxu0 0
      %4829 = vmatpush1.bf16.msra.mxu0 %v4811
      %4830 = vmatprep.subr.bf16.mxu0 0
      %4831 = vmatpush1.bf16.msra.mxu0 %v4812
      %4832 = vmatprep.subr.bf16.mxu0 0
      %4833 = vmatpush1.bf16.msra.mxu0 %v4813
      %4834 = vmatprep.subr.bf16.mxu0 0
      %4835 = vmatpush1.bf16.msra.mxu0 %v4814
      %4836 = vmatprep.subr.bf16.mxu0 0
      %4837 = vmatpush1.bf16.msra.mxu0 %v4815
      %4838 = vmatprep.subr.bf16.mxu0 0
      %4839 = vmatpush1.bf16.msra.mxu0 %v4816
      %4840 = vmatprep.subr.bf16.mxu0 0
      %4841 = vmatpush1.bf16.msra.mxu0 %v4817
      %4842 = vmatprep.subr.bf16.mxu0 0
      %4843 = vmatpush1.bf16.msra.mxu0 0
      %4844 = vmatprep.subr.bf16.mxu0 0
      %4845 = vmatpush1.bf16.msra.mxu0 0
      %4846 = vmatprep.subr.bf16.mxu0 0
      %4847 = vmatpush1.bf16.msra.mxu0 0
      %4848 = vmatprep.subr.bf16.mxu0 0
      %4849 = vmatpush1.bf16.msra.mxu0 0
      %4850 = vmatprep.subr.bf16.mxu0 0
      %4851 = vmatpush1.bf16.msra.mxu0 0
      %4852 = vmatprep.subr.bf16.mxu0 0
      %4853 = vmatpush1.bf16.msra.mxu0 0
      %4854 = vmatprep.subr.bf16.mxu0 0
      %4855 = vmatpush1.bf16.msra.mxu0 0
      %4856 = vmatprep.subr.bf16.mxu0 0
      %4857 = vmatpush1.bf16.msra.mxu0 0
      %4858 = vmatprep.mubr.bf16.mxu0 0
      %4859 = vmatmul.mubr.bf16.gmra.mrb[0].mxu0 %v4760
      %v4860 = vpop.f32.mrb[0].mxu0
      %v4861 = vadd.f32 %v4777, %v4860
      %v4862 = vpop.f32.mrb[0].mxu0
      %v4863 = vpop.f32.mrb[0].mxu0
      %v4864 = vpop.f32.mrb[0].mxu0
      %4865 = vdwg.mxu0
      %v4866 = vld [vmem:[%s21] sm:$0x1]
      %v4867 = vmul.f32 %v4861, %v4866
      %v4868 = vld [vmem:[%s22] sm:$0x1]
      %v4869 = vadd.f32 %v4867, %v4868
      %v4870 = vpack.c.bf16 %v4869, %v4869
      %v4871 = vld [vmem:[%s23] sm:$0xf]
      %v4872 = vld [vmem:[%s23 + $0x4] sm:$0xf]
      %v4873 = vld [vmem:[%s23 + $0x8] sm:$0xf]
      %v4874 = vld [vmem:[%s23 + $0xc] sm:$0xf]
      %v4875 = vld [vmem:[%s23 + $0x10] sm:$0xf]
      %v4876 = vld [vmem:[%s23 + $0x14] sm:$0xf]
      %v4877 = vld [vmem:[%s23 + $0x18] sm:$0xf]
      %v4878 = vld [vmem:[%s23 + $0x1c] sm:$0xf]
      %v4879 = vld [vmem:[%s24] sm:$0x1]
      %v4888 = vunpack.c.l.b16 %v4871
      %v4889 = vunpack.c.l.b16 %v4872
      %v4890 = vunpack.c.l.b16 %v4873
      %v4891 = vunpack.c.l.b16 %v4874
      %v4892 = vunpack.c.l.b16 %v4875
      %v4893 = vunpack.c.l.b16 %v4876
      %v4894 = vunpack.c.l.b16 %v4877
      %v4895 = vunpack.c.l.b16 %v4878
      %v4896 = vpack.c.b16 %v4889, %v4888
      %v4897 = vpack.c.b16 %v4891, %v4890
      %v4898 = vpack.c.b16 %v4893, %v4892
      %v4899 = vpack.c.b16 %v4895, %v4894
      %v4905 = vsel %vm2457, %v4870, 0
      %4907 = vmatprep.subr.bf16.mxu0 0
      %4908 = vmatpush1.bf16.msra.mxu0 %v4896
      %4909 = vmatprep.subr.bf16.mxu0 0
      %4910 = vmatpush1.bf16.msra.mxu0 %v4897
      %4911 = vmatprep.subr.bf16.mxu0 0
      %4912 = vmatpush1.bf16.msra.mxu0 %v4898
      %4913 = vmatprep.subr.bf16.mxu0 0
      %4914 = vmatpush1.bf16.msra.mxu0 %v4899
      %4915 = vmatprep.subr.bf16.mxu0 0
      %4916 = vmatpush1.bf16.msra.mxu0 0
      %4917 = vmatprep.subr.bf16.mxu0 0
      %4918 = vmatpush1.bf16.msra.mxu0 0
      %4919 = vmatprep.subr.bf16.mxu0 0
      %4920 = vmatpush1.bf16.msra.mxu0 0
      %4921 = vmatprep.subr.bf16.mxu0 0
      %4922 = vmatpush1.bf16.msra.mxu0 0
      %4923 = vmatprep.subr.bf16.mxu0 0
      %4924 = vmatpush1.bf16.msra.mxu0 0
      %4925 = vmatprep.subr.bf16.mxu0 0
      %4926 = vmatpush1.bf16.msra.mxu0 0
      %4927 = vmatprep.subr.bf16.mxu0 0
      %4928 = vmatpush1.bf16.msra.mxu0 0
      %4929 = vmatprep.subr.bf16.mxu0 0
      %4930 = vmatpush1.bf16.msra.mxu0 0
      %4931 = vmatprep.subr.bf16.mxu0 0
      %4932 = vmatpush1.bf16.msra.mxu0 0
      %4933 = vmatprep.subr.bf16.mxu0 0
      %4934 = vmatpush1.bf16.msra.mxu0 0
      %4935 = vmatprep.subr.bf16.mxu0 0
      %4936 = vmatpush1.bf16.msra.mxu0 0
      %4937 = vmatprep.subr.bf16.mxu0 0
      %4938 = vmatpush1.bf16.msra.mxu0 0
      %4939 = vmatprep.mubr.bf16.mxu0 0
      %4940 = vmatmul.mubr.bf16.gmra.mrb[0].mxu0 %v4905
      %v4941 = vpop.f32.mrb[0].mxu0
      %v4942 = vadd.f32 %v4879, %v4941
      %v4943 = vpop.f32.mrb[0].mxu0
      %v4944 = vpop.f32.mrb[0].mxu0
      %v4945 = vpop.f32.mrb[0].mxu0
      %4946 = vdwg.mxu0
      %4948 = vrot.lane.b32.xlu0 %v4942, 64
      %v4949 = vpop.permute.xlu0 %4948
      %v4951 = vsel %vm2457, %v4869, %v4949
      %vm4952 = vcmask 654336
      %v4953 = vsel %vm4952, %v4951, 0.0
      %4954 = vst [vmem:[%s762] sm:$0x1] %v4953
      %p4955 = scmp.lt.s32.totalorder %s38, 1
      %s4956 = scalar_select %p4955, %s38, 1
      %s4957 = scalar_lea.vmem %s25, %s4956
      // Predicated region
      $region121: #{pivit_weak_forward.1} parent=119 // pred_check
        %p4958 = pneg %p586
      $region122: #{pivit_weak_forward.1} parent=119 // pred_check_branch
        %4960 = sbr.rel (%p4958) target = $region124
      $region123: #{pivit_weak_forward.1} parent=119 // pred_region
        _
      $region124: #{pivit_weak_forward.1} parent=119 // pred_fallthru
        _
    $region120: #{pivit_weak_forward.1} parent=5 // pred_fallthru
      _
    %p4961 = scmp.le.s32.totalorder 2, %s33
    // Predicated region
    $region125: #{pivit_weak_forward.1} parent=5 // pred_check
      %p4962 = pneg %p4961
    $region126: #{pivit_weak_forward.1} parent=5 // pred_check_branch
      %4964 = sbr.rel (%p4962) target = $region128
    $region127: #{pivit_weak_forward.1} parent=5 // pred_region
      %s4965 = ssub.s32 %s33, 2
      // Predicated region
      $region129: #{pivit_weak_forward.1} parent=127 // pred_check
        %p4966 = pneg %p592
      $region130: #{pivit_weak_forward.1} parent=127 // pred_check_branch
        %4968 = sbr.rel (%p4966) target = $region132
      $region131: #{pivit_weak_forward.1} parent=127 // pred_region
        %p4969 = scmp.lt.s32.totalorder %s39, 1
        %s4970 = scalar_select %p4969, %s39, 1
        %s4971 = scalar_lea.vmem %s25, %s4970
      $region132: #{pivit_weak_forward.1} parent=127 // pred_fallthru
        _
    $region128: #{pivit_weak_forward.1} parent=5 // pred_fallthru
      _
  $region6: #{pivit_weak_forward.1} parent=0 // loop_footer
    %s37 = sadd.s32 1, %s33
  $region7: #{pivit_weak_forward.1} parent=0 // loop_footer_branch
    %32 = sbr.rel target = $region3
  $region8: #{pivit_weak_forward.1} parent=0 // loop_exit
    _

</llo_original>
